<compile_context>
chip_gen: v7x
topology: tpu7x:2x2x1
jax: 0.10.0
libtpu: 0.0.40
codegen_flags: <defaults>
</compile_context>

<pallas_src>
import functools

import jax
import jax.numpy as jnp
from jax import lax
from jax.experimental import pallas as pl
from jax.experimental.pallas import tpu as pltpu

LN_EPS = 1e-5  # PyTorch nn.LayerNorm default


def _round_up(v, m):
    return ((v + m - 1) // m) * m


def _num_tensorcores():
    """Best-effort TensorCores-per-device (v7x: 2, v5e/v6e: 1).  Perf-only hint."""
    try:
        dev = jax.devices()[0]
        nc = getattr(dev, "num_cores", None)
        if nc:
            return max(1, min(2, int(nc)))
        kind = str(getattr(dev, "device_kind", "")).lower()
        if "v7" in kind:
            return 2
    except Exception:
        pass
    return 1


def _choose_tile(n, tile_n, num_cores):
    tile = _round_up(max(int(tile_n), 128), 128)
    tile = min(tile, _round_up(max(n, 1), 128))          # don't over-pad small N
    if num_cores > 1 and n > 128:
        # Keep the grid-step count a multiple of the core count so both
        # TensorCores on v7x get equal work; skip entirely on single-TC chips.
        steps = pl.cdiv(n, tile)
        steps = _round_up(steps, num_cores)
        tile = max(128, _round_up(pl.cdiv(n, steps), 128))
    return tile


def _mlp_kernel(node_major_out, d_out, x_ref, w0_ref, w1_ref, w2_ref, w3_ref,
                vec_ref, o_ref):
    """4x (Linear -> LayerNorm -> Tanh) on one tile of nodes.

    x_ref  : [tile_n, input_dim]   native node-major input block
    wK_ref : [drows, d_in]         rows [0, d_out) = W (PyTorch [out, in] layout),
                                   row d_out = mean(W, axis=0), rest zero padding
    vec_ref: [drows, 12]           cols (3k, 3k+1, 3k+2) = (b_aug, gamma, beta) layer k
    o_ref  : [tile_n, d_out] if node_major_out else [d_out, tile_n]
    """
    w_refs = (w0_ref, w1_ref, w2_ref, w3_ref)
    vecs = vec_ref[...]                                   # [drows, 12]
    x_blk = x_ref[...].astype(jnp.float32)                # [tile_n, d_in]
    inv_d = 1.0 / d_out

    h = None
    for li in range(4):
        w = w_refs[li][...]                               # [drows, d_in]
        b_aug = vecs[:, 3 * li + 0: 3 * li + 1]           # [drows, 1]
        gamma = vecs[:d_out, 3 * li + 1: 3 * li + 2]      # [d_out, 1]
        beta = vecs[:d_out, 3 * li + 2: 3 * li + 3]       # [d_out, 1]

        if li == 0:
            # Contract over the feature axis of the node-major block: the MXU
            # absorbs the layout change; result is lane-dense [drows, tile_n].
            z = lax.dot_general(w, x_blk, (((1,), (1,)), ((), ())),
                                preferred_element_type=jnp.float32)
        else:
            z = jnp.dot(w, h, preferred_element_type=jnp.float32)
        z = z + b_aug                                      # [drows, tile_n]

        h_lin = z[:d_out, :]                               # [d_out, tile_n]
        mean = z[d_out:d_out + 1, :]                       # [1, tile_n] (MXU-computed)

        # LayerNorm over the feature (sublane) axis; only E[h^2] uses the XLU.
        ex2 = jnp.sum(h_lin * h_lin, axis=0, keepdims=True) * inv_d
        var = jnp.maximum(ex2 - mean * mean, 0.0)
        hn = (h_lin - mean) * lax.rsqrt(var + LN_EPS)
        h = jnp.tanh(hn * gamma + beta)                    # EUP

    if node_major_out:
        # In-VMEM transpose to node-major layout: avoids a separate XLA
        # transpose pass over the output in HBM.
        o_ref[...] = h.T.astype(o_ref.dtype)
    else:
        o_ref[...] = h.astype(o_ref.dtype)


def _build_call(x, weights, vecs, n, input_dim, output_dim, drows, tile, grid,
                kernel_transpose, out_dtype):
    in_specs = [pl.BlockSpec((tile, input_dim), lambda i: (i, 0))]
    in_specs += [pl.BlockSpec(w.shape, lambda i: (0, 0)) for w in weights]
    in_specs += [pl.BlockSpec((drows, 12), lambda i: (0, 0))]

    if kernel_transpose:
        out_shape = jax.ShapeDtypeStruct((n, output_dim), out_dtype)
        out_spec = pl.BlockSpec((tile, output_dim), lambda i: (i, 0))
    else:
        out_shape = jax.ShapeDtypeStruct((output_dim, n), out_dtype)
        out_spec = pl.BlockSpec((output_dim, tile), lambda i: (0, i))

    kernel = functools.partial(_mlp_kernel, kernel_transpose, output_dim)
    return pl.pallas_call(
        kernel,
        out_shape=out_shape,
        grid_spec=pltpu.PrefetchScalarGridSpec(
            num_scalar_prefetch=0,
            grid=grid,
            in_specs=in_specs,
            out_specs=out_spec,
        ),
        compiler_params=pltpu.CompilerParams(
            dimension_semantics=("parallel",),
        ),
    )(x, *weights, vecs)


def node_network_forward(x, params, *, tile_n=2048, node_major_output=True,
                         out_dtype=jnp.float32):
    """params: list of 4 tuples (W[out,in], b[out], gamma[out], beta[out]) (PyTorch layout).

    x: [N, input_dim]  ->  [N, output_dim] (node_major_output=True, PyTorch layout)
                       or  [output_dim, N] (node_major_output=False, cheapest).
    """
    assert len(params) == 4
    n, input_dim = x.shape
    output_dim = params[0][0].shape[0]
    drows = _round_up(output_dim + 1, 8)   # d_out rows + 1 mean row, sublane padded

    tile = _choose_tile(n, tile_n, _num_tensorcores())
    grid = (pl.cdiv(n, tile),)

    # Host-side parameter prep: augmented weights (extra mean(W) row so the
    # LayerNorm mean falls out of the matmul) and one packed [drows, 12] slab.
    weights, vec_cols = [], []
    for (w, b, g, be) in params:
        w = jnp.asarray(w, jnp.float32)
        d_out, d_in = w.shape
        w_aug = jnp.concatenate(
            [w, jnp.mean(w, axis=0, keepdims=True),
             jnp.zeros((drows - d_out - 1, d_in), jnp.float32)], axis=0)
        weights.append(w_aug)
        b = jnp.asarray(b, jnp.float32).reshape(d_out)
        pad1 = jnp.zeros((drows - d_out - 1,), jnp.float32)
        pad0 = jnp.zeros((drows - d_out,), jnp.float32)
        vec_cols.append(jnp.concatenate([b, jnp.mean(b)[None], pad1]))
        vec_cols.append(jnp.concatenate([jnp.asarray(g, jnp.float32).reshape(d_out), pad0]))
        vec_cols.append(jnp.concatenate([jnp.asarray(be, jnp.float32).reshape(d_out), pad0]))
    vecs = jnp.stack(vec_cols, axis=1)                    # [drows, 12]

    if not node_major_output:
        return _build_call(x, weights, vecs, n, input_dim, output_dim, drows,
                           tile, grid, False, out_dtype)
    try:
        return _build_call(x, weights, vecs, n, input_dim, output_dim, drows,
                           tile, grid, True, out_dtype)
    except Exception:
        # TODO(synk): fallback only if the in-kernel transpose fails to lower on
        # this backend; costs one extra XLA transpose pass over the output.
        out_t = _build_call(x, weights, vecs, n, input_dim, output_dim, drows,
                            tile, grid, False, out_dtype)
        return out_t.T


def _reference_forward(x, params):
    h = x.astype(jnp.float32)
    for (w, b, g, be) in params:
        h = h @ w.T + b
        mean = jnp.mean(h, axis=-1, keepdims=True)
        var = jnp.mean(jnp.square(h - mean), axis=-1, keepdims=True)
        h = (h - mean) / jnp.sqrt(var + LN_EPS)
        h = h * g + be
        h = jnp.tanh(h)
    return h


def make_params(key, input_dim, output_dim):
    """Deterministic synthetic params with PyTorch shapes (affine LN randomized)."""
    params = []
    dims = [input_dim] + [output_dim] * 4
    for li in range(4):
        d_in, d_out = dims[li], dims[li + 1]
        key, kw, kb, kg, ke = jax.random.split(key, 5)
        bound = 1.0 / (d_in ** 0.5)
        w = jax.random.uniform(kw, (d_out, d_in), jnp.float32, -bound, bound)
        b = jax.random.uniform(kb, (d_out,), jnp.float32, -bound, bound)
        g = 1.0 + 0.1 * jax.random.normal(kg, (d_out,), jnp.float32)
        be = 0.1 * jax.random.normal(ke, (d_out,), jnp.float32)
        params.append((w, b, g, be))
    return params


if __name__ == "__main__":
    key = jax.random.PRNGKey(0)
    k_x, k_p = jax.random.split(key)

    # N deliberately not a multiple of tile_n: exercises the ragged tail block.
    N, INPUT_DIM, OUTPUT_DIM = 1000, 16, 32
    x = jax.random.normal(k_x, (N, INPUT_DIM), jnp.float32)
    params = make_params(k_p, INPUT_DIM, OUTPUT_DIM)

    out = node_network_forward(x, params, tile_n=512)
    out = jax.block_until_ready(out)

    ref = _reference_forward(x, params)
    assert out.shape == (N, OUTPUT_DIM)
    max_err = float(jnp.max(jnp.abs(out - ref)))
    assert jnp.allclose(out, ref, atol=1e-4, rtol=1e-4), max_err

    print("KERNEL_OK")
</pallas_src>

<mosaic_0001>
module attributes {stable_mosaic.version = 11 : i64} {
  func.func @_mlp_kernel(%arg0: i32, %arg1: memref<512x16xf32, #tpu.memory_space<vmem>>, %arg2: memref<40x16xf32, #tpu.memory_space<vmem>>, %arg3: memref<40x32xf32, #tpu.memory_space<vmem>>, %arg4: memref<40x32xf32, #tpu.memory_space<vmem>>, %arg5: memref<40x32xf32, #tpu.memory_space<vmem>>, %arg6: memref<40x12xf32, #tpu.memory_space<vmem>>, %arg7: memref<512x32xf32, #tpu.memory_space<vmem>>) attributes {dimension_semantics = [#tpu.dimension_semantics<parallel>], iteration_bounds = array<i64: 2>, scalar_prefetch = 0 : i64, scratch_operands = 0 : i64, tpu.core_type = #tpu.core_type<tc>, window_params = [{transform_indices = @transform_0, window_bounds = array<i64: 512, 16>}, {pipeline_mode = #tpu.pipeline_mode<synchronous>, transform_indices = @transform_1, window_bounds = array<i64: 40, 16>}, {pipeline_mode = #tpu.pipeline_mode<synchronous>, transform_indices = @transform_2, window_bounds = array<i64: 40, 32>}, {pipeline_mode = #tpu.pipeline_mode<synchronous>, transform_indices = @transform_3, window_bounds = array<i64: 40, 32>}, {pipeline_mode = #tpu.pipeline_mode<synchronous>, transform_indices = @transform_4, window_bounds = array<i64: 40, 32>}, {pipeline_mode = #tpu.pipeline_mode<synchronous>, transform_indices = @transform_5, window_bounds = array<i64: 40, 12>}, {transform_indices = @transform_6, window_bounds = array<i64: 512, 32>}]} {
    %c0 = arith.constant 0 : index
    %c0_0 = arith.constant 0 : index
    %0 = vector.load %arg6[%c0, %c0_0] : memref<40x12xf32, #tpu.memory_space<vmem>>, vector<40x12xf32>
    %c0_1 = arith.constant 0 : index
    %c0_2 = arith.constant 0 : index
    %1 = vector.load %arg1[%c0_1, %c0_2] : memref<512x16xf32, #tpu.memory_space<vmem>>, vector<512x16xf32>
    %c0_3 = arith.constant 0 : index
    %c0_4 = arith.constant 0 : index
    %2 = vector.load %arg2[%c0_3, %c0_4] : memref<40x16xf32, #tpu.memory_space<vmem>>, vector<40x16xf32>
    %3 = vector.extract_strided_slice %0 {offsets = [0, 0], sizes = [40, 1], strides = [1, 1]} : vector<40x12xf32> to vector<40x1xf32>
    %4 = vector.extract_strided_slice %0 {offsets = [0, 1], sizes = [32, 1], strides = [1, 1]} : vector<40x12xf32> to vector<32x1xf32>
    %5 = vector.extract_strided_slice %0 {offsets = [0, 2], sizes = [32, 1], strides = [1, 1]} : vector<40x12xf32> to vector<32x1xf32>
    %cst = arith.constant dense<0.000000e+00> : vector<40x512xf32>
    %6 = tpu.matmul %2, %1, %cst {dimension_numbers = #tpu.dot_dimension_numbers<[1], [1], [0], [0], [0, 0, 1, 0], [], []>} : vector<40x16xf32>, vector<512x16xf32>, vector<40x512xf32> -> vector<40x512xf32>
    %7 = vector.broadcast %3 : vector<40x1xf32> to vector<40x512xf32>
    %8 = arith.addf %6, %7 : vector<40x512xf32>
    %9 = vector.extract_strided_slice %8 {offsets = [0, 0], sizes = [32, 512], strides = [1, 1]} : vector<40x512xf32> to vector<32x512xf32>
    %10 = vector.extract_strided_slice %8 {offsets = [32, 0], sizes = [1, 512], strides = [1, 1]} : vector<40x512xf32> to vector<1x512xf32>
    %11 = arith.mulf %9, %9 : vector<32x512xf32>
    %cst_5 = arith.constant dense<0.000000e+00> : vector<512xf32>
    %12 = vector.multi_reduction <add>, %11, %cst_5 [0] : vector<32x512xf32> to vector<512xf32>
    %13 = vector.shape_cast %12 : vector<512xf32> to vector<1x512xf32>
    %cst_6 = arith.constant 3.125000e-02 : f32
    %14 = vector.broadcast %cst_6 : f32 to vector<1x512xf32>
    %15 = arith.mulf %13, %14 : vector<1x512xf32>
    %16 = arith.mulf %10, %10 : vector<1x512xf32>
    %17 = arith.subf %15, %16 : vector<1x512xf32>
    %cst_7 = arith.constant 0.000000e+00 : f32
    %18 = vector.broadcast %cst_7 : f32 to vector<1x512xf32>
    %19 = arith.maximumf %17, %18 : vector<1x512xf32>
    %20 = vector.broadcast %10 : vector<1x512xf32> to vector<32x512xf32>
    %21 = arith.subf %9, %20 : vector<32x512xf32>
    %cst_8 = arith.constant 9.99999974E-6 : f32
    %22 = vector.broadcast %cst_8 : f32 to vector<1x512xf32>
    %23 = arith.addf %19, %22 : vector<1x512xf32>
    %24 = math.rsqrt %23 : vector<1x512xf32>
    %25 = vector.broadcast %24 : vector<1x512xf32> to vector<32x512xf32>
    %26 = arith.mulf %21, %25 : vector<32x512xf32>
    %27 = vector.broadcast %4 : vector<32x1xf32> to vector<32x512xf32>
    %28 = arith.mulf %26, %27 : vector<32x512xf32>
    %29 = vector.broadcast %5 : vector<32x1xf32> to vector<32x512xf32>
    %30 = arith.addf %28, %29 : vector<32x512xf32>
    %31 = math.tanh %30 : vector<32x512xf32>
    %c0_9 = arith.constant 0 : index
    %c0_10 = arith.constant 0 : index
    %32 = vector.load %arg3[%c0_9, %c0_10] : memref<40x32xf32, #tpu.memory_space<vmem>>, vector<40x32xf32>
    %33 = vector.extract_strided_slice %0 {offsets = [0, 3], sizes = [40, 1], strides = [1, 1]} : vector<40x12xf32> to vector<40x1xf32>
    %34 = vector.extract_strided_slice %0 {offsets = [0, 4], sizes = [32, 1], strides = [1, 1]} : vector<40x12xf32> to vector<32x1xf32>
    %35 = vector.extract_strided_slice %0 {offsets = [0, 5], sizes = [32, 1], strides = [1, 1]} : vector<40x12xf32> to vector<32x1xf32>
    %cst_11 = arith.constant dense<0.000000e+00> : vector<40x512xf32>
    %36 = tpu.matmul %32, %31, %cst_11 {dimension_numbers = #tpu.dot_dimension_numbers<[1], [0], [0], [1], [0, 0, 1, 1], [], []>} : vector<40x32xf32>, vector<32x512xf32>, vector<40x512xf32> -> vector<40x512xf32>
    %37 = vector.broadcast %33 : vector<40x1xf32> to vector<40x512xf32>
    %38 = arith.addf %36, %37 : vector<40x512xf32>
    %39 = vector.extract_strided_slice %38 {offsets = [0, 0], sizes = [32, 512], strides = [1, 1]} : vector<40x512xf32> to vector<32x512xf32>
    %40 = vector.extract_strided_slice %38 {offsets = [32, 0], sizes = [1, 512], strides = [1, 1]} : vector<40x512xf32> to vector<1x512xf32>
    %41 = arith.mulf %39, %39 : vector<32x512xf32>
    %cst_12 = arith.constant dense<0.000000e+00> : vector<512xf32>
    %42 = vector.multi_reduction <add>, %41, %cst_12 [0] : vector<32x512xf32> to vector<512xf32>
    %43 = vector.shape_cast %42 : vector<512xf32> to vector<1x512xf32>
    %cst_13 = arith.constant 3.125000e-02 : f32
    %44 = vector.broadcast %cst_13 : f32 to vector<1x512xf32>
    %45 = arith.mulf %43, %44 : vector<1x512xf32>
    %46 = arith.mulf %40, %40 : vector<1x512xf32>
    %47 = arith.subf %45, %46 : vector<1x512xf32>
    %cst_14 = arith.constant 0.000000e+00 : f32
    %48 = vector.broadcast %cst_14 : f32 to vector<1x512xf32>
    %49 = arith.maximumf %47, %48 : vector<1x512xf32>
    %50 = vector.broadcast %40 : vector<1x512xf32> to vector<32x512xf32>
    %51 = arith.subf %39, %50 : vector<32x512xf32>
    %cst_15 = arith.constant 9.99999974E-6 : f32
    %52 = vector.broadcast %cst_15 : f32 to vector<1x512xf32>
    %53 = arith.addf %49, %52 : vector<1x512xf32>
    %54 = math.rsqrt %53 : vector<1x512xf32>
    %55 = vector.broadcast %54 : vector<1x512xf32> to vector<32x512xf32>
    %56 = arith.mulf %51, %55 : vector<32x512xf32>
    %57 = vector.broadcast %34 : vector<32x1xf32> to vector<32x512xf32>
    %58 = arith.mulf %56, %57 : vector<32x512xf32>
    %59 = vector.broadcast %35 : vector<32x1xf32> to vector<32x512xf32>
    %60 = arith.addf %58, %59 : vector<32x512xf32>
    %61 = math.tanh %60 : vector<32x512xf32>
    %c0_16 = arith.constant 0 : index
    %c0_17 = arith.constant 0 : index
    %62 = vector.load %arg4[%c0_16, %c0_17] : memref<40x32xf32, #tpu.memory_space<vmem>>, vector<40x32xf32>
    %63 = vector.extract_strided_slice %0 {offsets = [0, 6], sizes = [40, 1], strides = [1, 1]} : vector<40x12xf32> to vector<40x1xf32>
    %64 = vector.extract_strided_slice %0 {offsets = [0, 7], sizes = [32, 1], strides = [1, 1]} : vector<40x12xf32> to vector<32x1xf32>
    %65 = vector.extract_strided_slice %0 {offsets = [0, 8], sizes = [32, 1], strides = [1, 1]} : vector<40x12xf32> to vector<32x1xf32>
    %cst_18 = arith.constant dense<0.000000e+00> : vector<40x512xf32>
    %66 = tpu.matmul %62, %61, %cst_18 {dimension_numbers = #tpu.dot_dimension_numbers<[1], [0], [0], [1], [0, 0, 1, 1], [], []>} : vector<40x32xf32>, vector<32x512xf32>, vector<40x512xf32> -> vector<40x512xf32>
    %67 = vector.broadcast %63 : vector<40x1xf32> to vector<40x512xf32>
    %68 = arith.addf %66, %67 : vector<40x512xf32>
    %69 = vector.extract_strided_slice %68 {offsets = [0, 0], sizes = [32, 512], strides = [1, 1]} : vector<40x512xf32> to vector<32x512xf32>
    %70 = vector.extract_strided_slice %68 {offsets = [32, 0], sizes = [1, 512], strides = [1, 1]} : vector<40x512xf32> to vector<1x512xf32>
    %71 = arith.mulf %69, %69 : vector<32x512xf32>
    %cst_19 = arith.constant dense<0.000000e+00> : vector<512xf32>
    %72 = vector.multi_reduction <add>, %71, %cst_19 [0] : vector<32x512xf32> to vector<512xf32>
    %73 = vector.shape_cast %72 : vector<512xf32> to vector<1x512xf32>
    %cst_20 = arith.constant 3.125000e-02 : f32
    %74 = vector.broadcast %cst_20 : f32 to vector<1x512xf32>
    %75 = arith.mulf %73, %74 : vector<1x512xf32>
    %76 = arith.mulf %70, %70 : vector<1x512xf32>
    %77 = arith.subf %75, %76 : vector<1x512xf32>
    %cst_21 = arith.constant 0.000000e+00 : f32
    %78 = vector.broadcast %cst_21 : f32 to vector<1x512xf32>
    %79 = arith.maximumf %77, %78 : vector<1x512xf32>
    %80 = vector.broadcast %70 : vector<1x512xf32> to vector<32x512xf32>
    %81 = arith.subf %69, %80 : vector<32x512xf32>
    %cst_22 = arith.constant 9.99999974E-6 : f32
    %82 = vector.broadcast %cst_22 : f32 to vector<1x512xf32>
    %83 = arith.addf %79, %82 : vector<1x512xf32>
    %84 = math.rsqrt %83 : vector<1x512xf32>
    %85 = vector.broadcast %84 : vector<1x512xf32> to vector<32x512xf32>
    %86 = arith.mulf %81, %85 : vector<32x512xf32>
    %87 = vector.broadcast %64 : vector<32x1xf32> to vector<32x512xf32>
    %88 = arith.mulf %86, %87 : vector<32x512xf32>
    %89 = vector.broadcast %65 : vector<32x1xf32> to vector<32x512xf32>
    %90 = arith.addf %88, %89 : vector<32x512xf32>
    %91 = math.tanh %90 : vector<32x512xf32>
    %c0_23 = arith.constant 0 : index
    %c0_24 = arith.constant 0 : index
    %92 = vector.load %arg5[%c0_23, %c0_24] : memref<40x32xf32, #tpu.memory_space<vmem>>, vector<40x32xf32>
    %93 = vector.extract_strided_slice %0 {offsets = [0, 9], sizes = [40, 1], strides = [1, 1]} : vector<40x12xf32> to vector<40x1xf32>
    %94 = vector.extract_strided_slice %0 {offsets = [0, 10], sizes = [32, 1], strides = [1, 1]} : vector<40x12xf32> to vector<32x1xf32>
    %95 = vector.extract_strided_slice %0 {offsets = [0, 11], sizes = [32, 1], strides = [1, 1]} : vector<40x12xf32> to vector<32x1xf32>
    %cst_25 = arith.constant dense<0.000000e+00> : vector<40x512xf32>
    %96 = tpu.matmul %92, %91, %cst_25 {dimension_numbers = #tpu.dot_dimension_numbers<[1], [0], [0], [1], [0, 0, 1, 1], [], []>} : vector<40x32xf32>, vector<32x512xf32>, vector<40x512xf32> -> vector<40x512xf32>
    %97 = vector.broadcast %93 : vector<40x1xf32> to vector<40x512xf32>
    %98 = arith.addf %96, %97 : vector<40x512xf32>
    %99 = vector.extract_strided_slice %98 {offsets = [0, 0], sizes = [32, 512], strides = [1, 1]} : vector<40x512xf32> to vector<32x512xf32>
    %100 = vector.extract_strided_slice %98 {offsets = [32, 0], sizes = [1, 512], strides = [1, 1]} : vector<40x512xf32> to vector<1x512xf32>
    %101 = arith.mulf %99, %99 : vector<32x512xf32>
    %cst_26 = arith.constant dense<0.000000e+00> : vector<512xf32>
    %102 = vector.multi_reduction <add>, %101, %cst_26 [0] : vector<32x512xf32> to vector<512xf32>
    %103 = vector.shape_cast %102 : vector<512xf32> to vector<1x512xf32>
    %cst_27 = arith.constant 3.125000e-02 : f32
    %104 = vector.broadcast %cst_27 : f32 to vector<1x512xf32>
    %105 = arith.mulf %103, %104 : vector<1x512xf32>
    %106 = arith.mulf %100, %100 : vector<1x512xf32>
    %107 = arith.subf %105, %106 : vector<1x512xf32>
    %cst_28 = arith.constant 0.000000e+00 : f32
    %108 = vector.broadcast %cst_28 : f32 to vector<1x512xf32>
    %109 = arith.maximumf %107, %108 : vector<1x512xf32>
    %110 = vector.broadcast %100 : vector<1x512xf32> to vector<32x512xf32>
    %111 = arith.subf %99, %110 : vector<32x512xf32>
    %cst_29 = arith.constant 9.99999974E-6 : f32
    %112 = vector.broadcast %cst_29 : f32 to vector<1x512xf32>
    %113 = arith.addf %109, %112 : vector<1x512xf32>
    %114 = math.rsqrt %113 : vector<1x512xf32>
    %115 = vector.broadcast %114 : vector<1x512xf32> to vector<32x512xf32>
    %116 = arith.mulf %111, %115 : vector<32x512xf32>
    %117 = vector.broadcast %94 : vector<32x1xf32> to vector<32x512xf32>
    %118 = arith.mulf %116, %117 : vector<32x512xf32>
    %119 = vector.broadcast %95 : vector<32x1xf32> to vector<32x512xf32>
    %120 = arith.addf %118, %119 : vector<32x512xf32>
    %121 = math.tanh %120 : vector<32x512xf32>
    %122 = tpu.transpose %121, [1, 0] : vector<32x512xf32> -> vector<512x32xf32>
    %c0_30 = arith.constant 0 : index
    %c0_31 = arith.constant 0 : index
    %123 = vector.load %arg7[%c0_30, %c0_31] : memref<512x32xf32, #tpu.memory_space<vmem>>, vector<512x32xf32>
    tpu.vector_store %arg7[%c0_30, %c0_31], %122 {strides = array<i32>} : memref<512x32xf32, #tpu.memory_space<vmem>>, vector<512x32xf32>,
    return
  }
  func.func @transform_0(%arg0: i32) -> (i32, i32) {
    %c0_i32 = arith.constant 0 : i32
    %c0_i32_0 = arith.constant 0 : i32
    return %arg0, %c0_i32 : i32, i32
  }
  func.func @transform_1(%arg0: i32) -> (i32, i32) {
    %c0_i32 = arith.constant 0 : i32
    %c0_i32_0 = arith.constant 0 : i32
    %c0_i32_1 = arith.constant 0 : i32
    return %c0_i32, %c0_i32_0 : i32, i32
  }
  func.func @transform_2(%arg0: i32) -> (i32, i32) {
    %c0_i32 = arith.constant 0 : i32
    %c0_i32_0 = arith.constant 0 : i32
    %c0_i32_1 = arith.constant 0 : i32
    return %c0_i32, %c0_i32_0 : i32, i32
  }
  func.func @transform_3(%arg0: i32) -> (i32, i32) {
    %c0_i32 = arith.constant 0 : i32
    %c0_i32_0 = arith.constant 0 : i32
    %c0_i32_1 = arith.constant 0 : i32
    return %c0_i32, %c0_i32_0 : i32, i32
  }
  func.func @transform_4(%arg0: i32) -> (i32, i32) {
    %c0_i32 = arith.constant 0 : i32
    %c0_i32_0 = arith.constant 0 : i32
    %c0_i32_1 = arith.constant 0 : i32
    return %c0_i32, %c0_i32_0 : i32, i32
  }
  func.func @transform_5(%arg0: i32) -> (i32, i32) {
    %c0_i32 = arith.constant 0 : i32
    %c0_i32_0 = arith.constant 0 : i32
    %c0_i32_1 = arith.constant 0 : i32
    return %c0_i32, %c0_i32_0 : i32, i32
  }
  func.func @transform_6(%arg0: i32) -> (i32, i32) {
    %c0_i32 = arith.constant 0 : i32
    %c0_i32_0 = arith.constant 0 : i32
    return %arg0, %c0_i32 : i32, i32
  }
}

module attributes {stable_mosaic.version = 11 : i64} {
  func.func @_mlp_kernel(%arg0: i32, %arg1: memref<512x16xf32, #tpu.memory_space<vmem>>, %arg2: memref<40x16xf32, #tpu.memory_space<vmem>>, %arg3: memref<40x32xf32, #tpu.memory_space<vmem>>, %arg4: memref<40x32xf32, #tpu.memory_space<vmem>>, %arg5: memref<40x32xf32, #tpu.memory_space<vmem>>, %arg6: memref<40x12xf32, #tpu.memory_space<vmem>>, %arg7: memref<32x512xf32, #tpu.memory_space<vmem>>) attributes {dimension_semantics = [#tpu.dimension_semantics<parallel>], iteration_bounds = array<i64: 2>, scalar_prefetch = 0 : i64, scratch_operands = 0 : i64, tpu.core_type = #tpu.core_type<tc>, window_params = [{transform_indices = @transform_0, window_bounds = array<i64: 512, 16>}, {pipeline_mode = #tpu.pipeline_mode<synchronous>, transform_indices = @transform_1, window_bounds = array<i64: 40, 16>}, {pipeline_mode = #tpu.pipeline_mode<synchronous>, transform_indices = @transform_2, window_bounds = array<i64: 40, 32>}, {pipeline_mode = #tpu.pipeline_mode<synchronous>, transform_indices = @transform_3, window_bounds = array<i64: 40, 32>}, {pipeline_mode = #tpu.pipeline_mode<synchronous>, transform_indices = @transform_4, window_bounds = array<i64: 40, 32>}, {pipeline_mode = #tpu.pipeline_mode<synchronous>, transform_indices = @transform_5, window_bounds = array<i64: 40, 12>}, {transform_indices = @transform_6, window_bounds = array<i64: 32, 512>}]} {
    %c0 = arith.constant 0 : index
    %c0_0 = arith.constant 0 : index
    %0 = vector.load %arg6[%c0, %c0_0] : memref<40x12xf32, #tpu.memory_space<vmem>>, vector<40x12xf32>
    %c0_1 = arith.constant 0 : index
    %c0_2 = arith.constant 0 : index
    %1 = vector.load %arg1[%c0_1, %c0_2] : memref<512x16xf32, #tpu.memory_space<vmem>>, vector<512x16xf32>
    %c0_3 = arith.constant 0 : index
    %c0_4 = arith.constant 0 : index
    %2 = vector.load %arg2[%c0_3, %c0_4] : memref<40x16xf32, #tpu.memory_space<vmem>>, vector<40x16xf32>
    %3 = vector.extract_strided_slice %0 {offsets = [0, 0], sizes = [40, 1], strides = [1, 1]} : vector<40x12xf32> to vector<40x1xf32>
    %4 = vector.extract_strided_slice %0 {offsets = [0, 1], sizes = [32, 1], strides = [1, 1]} : vector<40x12xf32> to vector<32x1xf32>
    %5 = vector.extract_strided_slice %0 {offsets = [0, 2], sizes = [32, 1], strides = [1, 1]} : vector<40x12xf32> to vector<32x1xf32>
    %cst = arith.constant dense<0.000000e+00> : vector<40x512xf32>
    %6 = tpu.matmul %2, %1, %cst {dimension_numbers = #tpu.dot_dimension_numbers<[1], [1], [0], [0], [0, 0, 1, 0], [], []>} : vector<40x16xf32>, vector<512x16xf32>, vector<40x512xf32> -> vector<40x512xf32>
    %7 = vector.broadcast %3 : vector<40x1xf32> to vector<40x512xf32>
    %8 = arith.addf %6, %7 : vector<40x512xf32>
    %9 = vector.extract_strided_slice %8 {offsets = [0, 0], sizes = [32, 512], strides = [1, 1]} : vector<40x512xf32> to vector<32x512xf32>
    %10 = vector.extract_strided_slice %8 {offsets = [32, 0], sizes = [1, 512], strides = [1, 1]} : vector<40x512xf32> to vector<1x512xf32>
    %11 = arith.mulf %9, %9 : vector<32x512xf32>
    %cst_5 = arith.constant dense<0.000000e+00> : vector<512xf32>
    %12 = vector.multi_reduction <add>, %11, %cst_5 [0] : vector<32x512xf32> to vector<512xf32>
    %13 = vector.shape_cast %12 : vector<512xf32> to vector<1x512xf32>
    %cst_6 = arith.constant 3.125000e-02 : f32
    %14 = vector.broadcast %cst_6 : f32 to vector<1x512xf32>
    %15 = arith.mulf %13, %14 : vector<1x512xf32>
    %16 = arith.mulf %10, %10 : vector<1x512xf32>
    %17 = arith.subf %15, %16 : vector<1x512xf32>
    %cst_7 = arith.constant 0.000000e+00 : f32
    %18 = vector.broadcast %cst_7 : f32 to vector<1x512xf32>
    %19 = arith.maximumf %17, %18 : vector<1x512xf32>
    %20 = vector.broadcast %10 : vector<1x512xf32> to vector<32x512xf32>
    %21 = arith.subf %9, %20 : vector<32x512xf32>
    %cst_8 = arith.constant 9.99999974E-6 : f32
    %22 = vector.broadcast %cst_8 : f32 to vector<1x512xf32>
    %23 = arith.addf %19, %22 : vector<1x512xf32>
    %24 = math.rsqrt %23 : vector<1x512xf32>
    %25 = vector.broadcast %24 : vector<1x512xf32> to vector<32x512xf32>
    %26 = arith.mulf %21, %25 : vector<32x512xf32>
    %27 = vector.broadcast %4 : vector<32x1xf32> to vector<32x512xf32>
    %28 = arith.mulf %26, %27 : vector<32x512xf32>
    %29 = vector.broadcast %5 : vector<32x1xf32> to vector<32x512xf32>
    %30 = arith.addf %28, %29 : vector<32x512xf32>
    %31 = math.tanh %30 : vector<32x512xf32>
    %c0_9 = arith.constant 0 : index
    %c0_10 = arith.constant 0 : index
    %32 = vector.load %arg3[%c0_9, %c0_10] : memref<40x32xf32, #tpu.memory_space<vmem>>, vector<40x32xf32>
    %33 = vector.extract_strided_slice %0 {offsets = [0, 3], sizes = [40, 1], strides = [1, 1]} : vector<40x12xf32> to vector<40x1xf32>
    %34 = vector.extract_strided_slice %0 {offsets = [0, 4], sizes = [32, 1], strides = [1, 1]} : vector<40x12xf32> to vector<32x1xf32>
    %35 = vector.extract_strided_slice %0 {offsets = [0, 5], sizes = [32, 1], strides = [1, 1]} : vector<40x12xf32> to vector<32x1xf32>
    %cst_11 = arith.constant dense<0.000000e+00> : vector<40x512xf32>
    %36 = tpu.matmul %32, %31, %cst_11 {dimension_numbers = #tpu.dot_dimension_numbers<[1], [0], [0], [1], [0, 0, 1, 1], [], []>} : vector<40x32xf32>, vector<32x512xf32>, vector<40x512xf32> -> vector<40x512xf32>
    %37 = vector.broadcast %33 : vector<40x1xf32> to vector<40x512xf32>
    %38 = arith.addf %36, %37 : vector<40x512xf32>
    %39 = vector.extract_strided_slice %38 {offsets = [0, 0], sizes = [32, 512], strides = [1, 1]} : vector<40x512xf32> to vector<32x512xf32>
    %40 = vector.extract_strided_slice %38 {offsets = [32, 0], sizes = [1, 512], strides = [1, 1]} : vector<40x512xf32> to vector<1x512xf32>
    %41 = arith.mulf %39, %39 : vector<32x512xf32>
    %cst_12 = arith.constant dense<0.000000e+00> : vector<512xf32>
    %42 = vector.multi_reduction <add>, %41, %cst_12 [0] : vector<32x512xf32> to vector<512xf32>
    %43 = vector.shape_cast %42 : vector<512xf32> to vector<1x512xf32>
    %cst_13 = arith.constant 3.125000e-02 : f32
    %44 = vector.broadcast %cst_13 : f32 to vector<1x512xf32>
    %45 = arith.mulf %43, %44 : vector<1x512xf32>
    %46 = arith.mulf %40, %40 : vector<1x512xf32>
    %47 = arith.subf %45, %46 : vector<1x512xf32>
    %cst_14 = arith.constant 0.000000e+00 : f32
    %48 = vector.broadcast %cst_14 : f32 to vector<1x512xf32>
    %49 = arith.maximumf %47, %48 : vector<1x512xf32>
    %50 = vector.broadcast %40 : vector<1x512xf32> to vector<32x512xf32>
    %51 = arith.subf %39, %50 : vector<32x512xf32>
    %cst_15 = arith.constant 9.99999974E-6 : f32
    %52 = vector.broadcast %cst_15 : f32 to vector<1x512xf32>
    %53 = arith.addf %49, %52 : vector<1x512xf32>
    %54 = math.rsqrt %53 : vector<1x512xf32>
    %55 = vector.broadcast %54 : vector<1x512xf32> to vector<32x512xf32>
    %56 = arith.mulf %51, %55 : vector<32x512xf32>
    %57 = vector.broadcast %34 : vector<32x1xf32> to vector<32x512xf32>
    %58 = arith.mulf %56, %57 : vector<32x512xf32>
    %59 = vector.broadcast %35 : vector<32x1xf32> to vector<32x512xf32>
    %60 = arith.addf %58, %59 : vector<32x512xf32>
    %61 = math.tanh %60 : vector<32x512xf32>
    %c0_16 = arith.constant 0 : index
    %c0_17 = arith.constant 0 : index
    %62 = vector.load %arg4[%c0_16, %c0_17] : memref<40x32xf32, #tpu.memory_space<vmem>>, vector<40x32xf32>
    %63 = vector.extract_strided_slice %0 {offsets = [0, 6], sizes = [40, 1], strides = [1, 1]} : vector<40x12xf32> to vector<40x1xf32>
    %64 = vector.extract_strided_slice %0 {offsets = [0, 7], sizes = [32, 1], strides = [1, 1]} : vector<40x12xf32> to vector<32x1xf32>
    %65 = vector.extract_strided_slice %0 {offsets = [0, 8], sizes = [32, 1], strides = [1, 1]} : vector<40x12xf32> to vector<32x1xf32>
    %cst_18 = arith.constant dense<0.000000e+00> : vector<40x512xf32>
    %66 = tpu.matmul %62, %61, %cst_18 {dimension_numbers = #tpu.dot_dimension_numbers<[1], [0], [0], [1], [0, 0, 1, 1], [], []>} : vector<40x32xf32>, vector<32x512xf32>, vector<40x512xf32> -> vector<40x512xf32>
    %67 = vector.broadcast %63 : vector<40x1xf32> to vector<40x512xf32>
    %68 = arith.addf %66, %67 : vector<40x512xf32>
    %69 = vector.extract_strided_slice %68 {offsets = [0, 0], sizes = [32, 512], strides = [1, 1]} : vector<40x512xf32> to vector<32x512xf32>
    %70 = vector.extract_strided_slice %68 {offsets = [32, 0], sizes = [1, 512], strides = [1, 1]} : vector<40x512xf32> to vector<1x512xf32>
    %71 = arith.mulf %69, %69 : vector<32x512xf32>
    %cst_19 = arith.constant dense<0.000000e+00> : vector<512xf32>
    %72 = vector.multi_reduction <add>, %71, %cst_19 [0] : vector<32x512xf32> to vector<512xf32>
    %73 = vector.shape_cast %72 : vector<512xf32> to vector<1x512xf32>
    %cst_20 = arith.constant 3.125000e-02 : f32
    %74 = vector.broadcast %cst_20 : f32 to vector<1x512xf32>
    %75 = arith.mulf %73, %74 : vector<1x512xf32>
    %76 = arith.mulf %70, %70 : vector<1x512xf32>
    %77 = arith.subf %75, %76 : vector<1x512xf32>
    %cst_21 = arith.constant 0.000000e+00 : f32
    %78 = vector.broadcast %cst_21 : f32 to vector<1x512xf32>
    %79 = arith.maximumf %77, %78 : vector<1x512xf32>
    %80 = vector.broadcast %70 : vector<1x512xf32> to vector<32x512xf32>
    %81 = arith.subf %69, %80 : vector<32x512xf32>
    %cst_22 = arith.constant 9.99999974E-6 : f32
    %82 = vector.broadcast %cst_22 : f32 to vector<1x512xf32>
    %83 = arith.addf %79, %82 : vector<1x512xf32>
    %84 = math.rsqrt %83 : vector<1x512xf32>
    %85 = vector.broadcast %84 : vector<1x512xf32> to vector<32x512xf32>
    %86 = arith.mulf %81, %85 : vector<32x512xf32>
    %87 = vector.broadcast %64 : vector<32x1xf32> to vector<32x512xf32>
    %88 = arith.mulf %86, %87 : vector<32x512xf32>
    %89 = vector.broadcast %65 : vector<32x1xf32> to vector<32x512xf32>
    %90 = arith.addf %88, %89 : vector<32x512xf32>
    %91 = math.tanh %90 : vector<32x512xf32>
    %c0_23 = arith.constant 0 : index
    %c0_24 = arith.constant 0 : index
    %92 = vector.load %arg5[%c0_23, %c0_24] : memref<40x32xf32, #tpu.memory_space<vmem>>, vector<40x32xf32>
    %93 = vector.extract_strided_slice %0 {offsets = [0, 9], sizes = [40, 1], strides = [1, 1]} : vector<40x12xf32> to vector<40x1xf32>
    %94 = vector.extract_strided_slice %0 {offsets = [0, 10], sizes = [32, 1], strides = [1, 1]} : vector<40x12xf32> to vector<32x1xf32>
    %95 = vector.extract_strided_slice %0 {offsets = [0, 11], sizes = [32, 1], strides = [1, 1]} : vector<40x12xf32> to vector<32x1xf32>
    %cst_25 = arith.constant dense<0.000000e+00> : vector<40x512xf32>
    %96 = tpu.matmul %92, %91, %cst_25 {dimension_numbers = #tpu.dot_dimension_numbers<[1], [0], [0], [1], [0, 0, 1, 1], [], []>} : vector<40x32xf32>, vector<32x512xf32>, vector<40x512xf32> -> vector<40x512xf32>
    %97 = vector.broadcast %93 : vector<40x1xf32> to vector<40x512xf32>
    %98 = arith.addf %96, %97 : vector<40x512xf32>
    %99 = vector.extract_strided_slice %98 {offsets = [0, 0], sizes = [32, 512], strides = [1, 1]} : vector<40x512xf32> to vector<32x512xf32>
    %100 = vector.extract_strided_slice %98 {offsets = [32, 0], sizes = [1, 512], strides = [1, 1]} : vector<40x512xf32> to vector<1x512xf32>
    %101 = arith.mulf %99, %99 : vector<32x512xf32>
    %cst_26 = arith.constant dense<0.000000e+00> : vector<512xf32>
    %102 = vector.multi_reduction <add>, %101, %cst_26 [0] : vector<32x512xf32> to vector<512xf32>
    %103 = vector.shape_cast %102 : vector<512xf32> to vector<1x512xf32>
    %cst_27 = arith.constant 3.125000e-02 : f32
    %104 = vector.broadcast %cst_27 : f32 to vector<1x512xf32>
    %105 = arith.mulf %103, %104 : vector<1x512xf32>
    %106 = arith.mulf %100, %100 : vector<1x512xf32>
    %107 = arith.subf %105, %106 : vector<1x512xf32>
    %cst_28 = arith.constant 0.000000e+00 : f32
    %108 = vector.broadcast %cst_28 : f32 to vector<1x512xf32>
    %109 = arith.maximumf %107, %108 : vector<1x512xf32>
    %110 = vector.broadcast %100 : vector<1x512xf32> to vector<32x512xf32>
    %111 = arith.subf %99, %110 : vector<32x512xf32>
    %cst_29 = arith.constant 9.99999974E-6 : f32
    %112 = vector.broadcast %cst_29 : f32 to vector<1x512xf32>
    %113 = arith.addf %109, %112 : vector<1x512xf32>
    %114 = math.rsqrt %113 : vector<1x512xf32>
    %115 = vector.broadcast %114 : vector<1x512xf32> to vector<32x512xf32>
    %116 = arith.mulf %111, %115 : vector<32x512xf32>
    %117 = vector.broadcast %94 : vector<32x1xf32> to vector<32x512xf32>
    %118 = arith.mulf %116, %117 : vector<32x512xf32>
    %119 = vector.broadcast %95 : vector<32x1xf32> to vector<32x512xf32>
    %120 = arith.addf %118, %119 : vector<32x512xf32>
    %121 = math.tanh %120 : vector<32x512xf32>
    %c0_30 = arith.constant 0 : index
    %c0_31 = arith.constant 0 : index
    %122 = vector.load %arg7[%c0_30, %c0_31] : memref<32x512xf32, #tpu.memory_space<vmem>>, vector<32x512xf32>
    tpu.vector_store %arg7[%c0_30, %c0_31], %121 {strides = array<i32>} : memref<32x512xf32, #tpu.memory_space<vmem>>, vector<32x512xf32>,
    return
  }
  func.func @transform_0(%arg0: i32) -> (i32, i32) {
    %c0_i32 = arith.constant 0 : i32
    %c0_i32_0 = arith.constant 0 : i32
    return %arg0, %c0_i32 : i32, i32
  }
  func.func @transform_1(%arg0: i32) -> (i32, i32) {
    %c0_i32 = arith.constant 0 : i32
    %c0_i32_0 = arith.constant 0 : i32
    %c0_i32_1 = arith.constant 0 : i32
    return %c0_i32, %c0_i32_0 : i32, i32
  }
  func.func @transform_2(%arg0: i32) -> (i32, i32) {
    %c0_i32 = arith.constant 0 : i32
    %c0_i32_0 = arith.constant 0 : i32
    %c0_i32_1 = arith.constant 0 : i32
    return %c0_i32, %c0_i32_0 : i32, i32
  }
  func.func @transform_3(%arg0: i32) -> (i32, i32) {
    %c0_i32 = arith.constant 0 : i32
    %c0_i32_0 = arith.constant 0 : i32
    %c0_i32_1 = arith.constant 0 : i32
    return %c0_i32, %c0_i32_0 : i32, i32
  }
  func.func @transform_4(%arg0: i32) -> (i32, i32) {
    %c0_i32 = arith.constant 0 : i32
    %c0_i32_0 = arith.constant 0 : i32
    %c0_i32_1 = arith.constant 0 : i32
    return %c0_i32, %c0_i32_0 : i32, i32
  }
  func.func @transform_5(%arg0: i32) -> (i32, i32) {
    %c0_i32 = arith.constant 0 : i32
    %c0_i32_0 = arith.constant 0 : i32
    %c0_i32_1 = arith.constant 0 : i32
    return %c0_i32, %c0_i32_0 : i32, i32
  }
  func.func @transform_6(%arg0: i32) -> (i32, i32) {
    %c0_i32 = arith.constant 0 : i32
    %c0_i32_0 = arith.constant 0 : i32
    return %c0_i32, %arg0 : i32, i32
  }
}

</mosaic_0001>

<llo_original>
// kernel: tpu_custom_call.1
$region0: #{tpu_custom_call.1}
  #allocation0 [shape = 'u32[]', space=smem, size = 0x4, offset = 0x4, fixed_abs, tag = 'smem constant byte address 0x4 - core index']
  #allocation1 [shape = 'u32[144,128]{1,0:T(1,128)}', space=vmem, size = 0x12000, scoped, tag = 'internal scratch']
  %s0 = inlined_call_operand.vmem [shape: f32[1000,16], index: 0, kind: input, shape index: {}]
  %s1 = inlined_call_operand.vmem [shape: f32[40,16], index: 1, kind: input, shape index: {}]
  %s2 = inlined_call_operand.vmem [shape: f32[40,32], index: 2, kind: input, shape index: {}]
  %s3 = inlined_call_operand.vmem [shape: f32[40,32], index: 3, kind: input, shape index: {}]
  %s4 = inlined_call_operand.vmem [shape: f32[40,32], index: 4, kind: input, shape index: {}]
  %s5 = inlined_call_operand.vmem [shape: f32[40,12], index: 5, kind: input, shape index: {}]
  %s6 = inlined_call_operand.vmem [shape: f32[1000,32], index: 6, kind: output, shape index: {}]
  %s7 = sld [smem:[#allocation0]]
  $region105: #{tpu_custom_call.1} parent=0
    _
  %s9 = ssub.s32 1, %s7
  %s10 = scalar_select 0, %s9, %s7
  $region1: #{tpu_custom_call.1} parent=0
    #allocation2 [shape = 'u8[524288]{0}', space=vmem, size = 0x80000, scoped, tag = 'output window, operand 0']
    loop: start=0, step=1, limit=4
    $region2: #{tpu_custom_call.1} parent=1 // loop_pre_header
      _
    $region3: #{tpu_custom_call.1} parent=1 // loop_header
      %s12 = sphi 0, %s16
      %p13 = scmp.ge.s32.totalorder %s12, 4
      %s22 = sphi 0, %s24
      %s25 = sphi 0, %s22
      %s26 = sphi 0, %s25
      %s42 = sphi 0, %s26
      %s46 = sphi 0, %s46
      %s48 = sphi 0, %s46
      %s49 = sphi 0, %s48
      %s63 = sphi 0, %s49
      %s67 = sphi 0, %s67
      %s69 = sphi 0, %s67
      %s70 = sphi 0, %s69
      %s84 = sphi 0, %s70
      %s88 = sphi 0, %s88
      %s90 = sphi 0, %s88
      %s91 = sphi 0, %s90
      %s105 = sphi 0, %s91
      %s109 = sphi 0, %s109
      %s111 = sphi 0, %s109
      %s112 = sphi 0, %s111
      %s126 = sphi 0, %s112
      %s130 = sphi 0, %s130
      %s132 = sphi 0, %s130
      %s133 = sphi 0, %s132
      %s147 = sphi 0, %s133
      %s153 = sphi 0, %s155
      %s156 = sphi 0, %s153
      %s157 = sphi 0, %s156
      %s173 = sphi 0, %s157
    $region4: #{tpu_custom_call.1} parent=1 // loop_header_branch
      %15 = sbr.rel (%p13) target = $region8
    $region5: #{tpu_custom_call.1} parent=1 // loop_body
      %s17 = ssub.s32 %s12, 1
      %s18 = ssub.s32 %s12, 2
      %s19 = sadd.s32 %s12, 1
      %s20 = ssub.s32 %s12, %s19
      %p21 = scmp.eq.s32.totalorder %s20, 0
      %s23 = sadd.s32 %s22, 1
      %s24 = scalar_select %p21, %s22, %s23
      %p27 = pneg %p21
      %p28 = scmp.eq.s32.totalorder %s12, 1
      %p29 = por %p27, %p28
      %p30 = scmp.ne.s32.totalorder %s22, %s25
      %p31 = scmp.eq.s32.totalorder %s12, 0
      %p32 = por %p30, %p31
      %p33 = scmp.ne.s32.totalorder %s22, %s25
      %p34 = scmp.eq.s32.totalorder %s17, 1
      %p35 = por %p33, %p34
      %p36 = scmp.ne.s32.totalorder %s25, %s26
      %p37 = scmp.eq.s32.totalorder %s17, 0
      %p38 = por %p36, %p37
      %p39 = scmp.ne.s32.totalorder %s25, %s26
      %p40 = scmp.eq.s32.totalorder %s18, 1
      %p41 = por %p39, %p40
      %p43 = scmp.ne.s32.totalorder %s26, %s42
      %p44 = scmp.eq.s32.totalorder %s18, 0
      %p45 = por %p43, %p44
      %s47 = sadd.s32 %s46, 1
      %p50 = scmp.eq.s32.totalorder %s12, 1
      %p51 = scmp.ne.s32.totalorder %s46, %s48
      %p52 = scmp.eq.s32.totalorder %s12, 0
      %p53 = por %p51, %p52
      %p54 = scmp.ne.s32.totalorder %s46, %s48
      %p55 = scmp.eq.s32.totalorder %s17, 1
      %p56 = por %p54, %p55
      %p57 = scmp.ne.s32.totalorder %s48, %s49
      %p58 = scmp.eq.s32.totalorder %s17, 0
      %p59 = por %p57, %p58
      %p60 = scmp.ne.s32.totalorder %s48, %s49
      %p61 = scmp.eq.s32.totalorder %s18, 1
      %p62 = por %p60, %p61
      %p64 = scmp.ne.s32.totalorder %s49, %s63
      %p65 = scmp.eq.s32.totalorder %s18, 0
      %p66 = por %p64, %p65
      %s68 = sadd.s32 %s67, 1
      %p71 = scmp.eq.s32.totalorder %s12, 1
      %p72 = scmp.ne.s32.totalorder %s67, %s69
      %p73 = scmp.eq.s32.totalorder %s12, 0
      %p74 = por %p72, %p73
      %p75 = scmp.ne.s32.totalorder %s67, %s69
      %p76 = scmp.eq.s32.totalorder %s17, 1
      %p77 = por %p75, %p76
      %p78 = scmp.ne.s32.totalorder %s69, %s70
      %p79 = scmp.eq.s32.totalorder %s17, 0
      %p80 = por %p78, %p79
      %p81 = scmp.ne.s32.totalorder %s69, %s70
      %p82 = scmp.eq.s32.totalorder %s18, 1
      %p83 = por %p81, %p82
      %p85 = scmp.ne.s32.totalorder %s70, %s84
      %p86 = scmp.eq.s32.totalorder %s18, 0
      %p87 = por %p85, %p86
      %s89 = sadd.s32 %s88, 1
      %p92 = scmp.eq.s32.totalorder %s12, 1
      %p93 = scmp.ne.s32.totalorder %s88, %s90
      %p94 = scmp.eq.s32.totalorder %s12, 0
      %p95 = por %p93, %p94
      %p96 = scmp.ne.s32.totalorder %s88, %s90
      %p97 = scmp.eq.s32.totalorder %s17, 1
      %p98 = por %p96, %p97
      %p99 = scmp.ne.s32.totalorder %s90, %s91
      %p100 = scmp.eq.s32.totalorder %s17, 0
      %p101 = por %p99, %p100
      %p102 = scmp.ne.s32.totalorder %s90, %s91
      %p103 = scmp.eq.s32.totalorder %s18, 1
      %p104 = por %p102, %p103
      %p106 = scmp.ne.s32.totalorder %s91, %s105
      %p107 = scmp.eq.s32.totalorder %s18, 0
      %p108 = por %p106, %p107
      %s110 = sadd.s32 %s109, 1
      %p113 = scmp.eq.s32.totalorder %s12, 1
      %p114 = scmp.ne.s32.totalorder %s109, %s111
      %p115 = scmp.eq.s32.totalorder %s12, 0
      %p116 = por %p114, %p115
      %p117 = scmp.ne.s32.totalorder %s109, %s111
      %p118 = scmp.eq.s32.totalorder %s17, 1
      %p119 = por %p117, %p118
      %p120 = scmp.ne.s32.totalorder %s111, %s112
      %p121 = scmp.eq.s32.totalorder %s17, 0
      %p122 = por %p120, %p121
      %p123 = scmp.ne.s32.totalorder %s111, %s112
      %p124 = scmp.eq.s32.totalorder %s18, 1
      %p125 = por %p123, %p124
      %p127 = scmp.ne.s32.totalorder %s112, %s126
      %p128 = scmp.eq.s32.totalorder %s18, 0
      %p129 = por %p127, %p128
      %s131 = sadd.s32 %s130, 1
      %p134 = scmp.eq.s32.totalorder %s12, 1
      %p135 = scmp.ne.s32.totalorder %s130, %s132
      %p136 = scmp.eq.s32.totalorder %s12, 0
      %p137 = por %p135, %p136
      %p138 = scmp.ne.s32.totalorder %s130, %s132
      %p139 = scmp.eq.s32.totalorder %s17, 1
      %p140 = por %p138, %p139
      %p141 = scmp.ne.s32.totalorder %s132, %s133
      %p142 = scmp.eq.s32.totalorder %s17, 0
      %p143 = por %p141, %p142
      %p144 = scmp.ne.s32.totalorder %s132, %s133
      %p145 = scmp.eq.s32.totalorder %s18, 1
      %p146 = por %p144, %p145
      %p148 = scmp.ne.s32.totalorder %s133, %s147
      %p149 = scmp.eq.s32.totalorder %s18, 0
      %p150 = por %p148, %p149
      %s151 = ssub.s32 %s12, %s19
      %p152 = scmp.eq.s32.totalorder %s151, 0
      %s154 = sadd.s32 %s153, 1
      %s155 = scalar_select %p152, %s153, %s154
      %p158 = pneg %p152
      %p159 = scmp.eq.s32.totalorder %s12, 1
      %p160 = por %p158, %p159
      %p161 = scmp.ne.s32.totalorder %s153, %s156
      %p162 = scmp.eq.s32.totalorder %s12, 0
      %p163 = por %p161, %p162
      %p164 = scmp.ne.s32.totalorder %s153, %s156
      %p165 = scmp.eq.s32.totalorder %s17, 1
      %p166 = por %p164, %p165
      %p167 = scmp.ne.s32.totalorder %s156, %s157
      %p168 = scmp.eq.s32.totalorder %s17, 0
      %p169 = por %p167, %p168
      %p170 = scmp.ne.s32.totalorder %s156, %s157
      %p171 = scmp.eq.s32.totalorder %s18, 1
      %p172 = por %p170, %p171
      %p174 = scmp.ne.s32.totalorder %s157, %s173
      %p175 = scmp.eq.s32.totalorder %s18, 0
      %p176 = por %p174, %p175
      %p177 = scmp.le.s32.totalorder 1, %s12
      %p178 = scmp.lt.s32.totalorder %s12, 3
      %p179 = pnand %p177, %p178
      %p180 = pneg %p179
      // Predicated region
      $region9: #{tpu_custom_call.1} parent=5 // pred_check
        _
      $region10: #{tpu_custom_call.1} parent=5 // pred_check_branch
        %182 = sbr.rel (%p179) target = $region12
      $region11: #{tpu_custom_call.1} parent=5 // pred_region
        %s183 = ssub.s32 %s12, 1
        // Predicated region
        $region13: #{tpu_custom_call.1} parent=11 // pred_check
          %p184 = pneg %p59
        $region14: #{tpu_custom_call.1} parent=11 // pred_check_branch
          %186 = sbr.rel (%p184) target = $region16
        $region15: #{tpu_custom_call.1} parent=11 // pred_region
          _
        $region16: #{tpu_custom_call.1} parent=11 // pred_fallthru
          _
        // Predicated region
        $region17: #{tpu_custom_call.1} parent=11 // pred_check
          %p187 = pneg %p80
        $region18: #{tpu_custom_call.1} parent=11 // pred_check_branch
          %189 = sbr.rel (%p187) target = $region20
        $region19: #{tpu_custom_call.1} parent=11 // pred_region
          _
        $region20: #{tpu_custom_call.1} parent=11 // pred_fallthru
          _
        // Predicated region
        $region21: #{tpu_custom_call.1} parent=11 // pred_check
          %p190 = pneg %p101
        $region22: #{tpu_custom_call.1} parent=11 // pred_check_branch
          %192 = sbr.rel (%p190) target = $region24
        $region23: #{tpu_custom_call.1} parent=11 // pred_region
          _
        $region24: #{tpu_custom_call.1} parent=11 // pred_fallthru
          _
        // Predicated region
        $region25: #{tpu_custom_call.1} parent=11 // pred_check
          %p193 = pneg %p122
        $region26: #{tpu_custom_call.1} parent=11 // pred_check_branch
          %195 = sbr.rel (%p193) target = $region28
        $region27: #{tpu_custom_call.1} parent=11 // pred_region
          _
        $region28: #{tpu_custom_call.1} parent=11 // pred_fallthru
          _
        // Predicated region
        $region29: #{tpu_custom_call.1} parent=11 // pred_check
          %p196 = pneg %p143
        $region30: #{tpu_custom_call.1} parent=11 // pred_check_branch
          %198 = sbr.rel (%p196) target = $region32
        $region31: #{tpu_custom_call.1} parent=11 // pred_region
          _
        $region32: #{tpu_custom_call.1} parent=11 // pred_fallthru
          _
      $region12: #{tpu_custom_call.1} parent=5 // pred_fallthru
        _
      %p199 = scmp.lt.s32.totalorder %s12, 2
      // Predicated region
      $region33: #{tpu_custom_call.1} parent=5 // pred_check
        %p200 = pneg %p199
      $region34: #{tpu_custom_call.1} parent=5 // pred_check_branch
        %202 = sbr.rel (%p200) target = $region36
      $region35: #{tpu_custom_call.1} parent=5 // pred_region
        // Predicated region
        $region37: #{tpu_custom_call.1} parent=35 // pred_check
          %p203 = pneg %p32
        $region38: #{tpu_custom_call.1} parent=35 // pred_check_branch
          %205 = sbr.rel (%p203) target = $region40
        $region39: #{tpu_custom_call.1} parent=35 // pred_region
          %s206 = smul.u32 64, %s12
          %s207 = ssub.s32 125, %s206
          %p208 = scmp.lt.s32.totalorder %s207, 64
          %s209 = scalar_select %p208, %s207, 64
          %s210 = smul.u32 128, %s209
          %p211 = scmp.lt.s32.totalorder %s206, 124
          %s212 = scalar_select %p211, %s206, 124
          %s213 = smul.addr %s212, 8
          %s214 = scalar_lea.vmem %s0, %s213
          %s215 = smul.u32 64, %s12
          %s216 = ssub.s32 125, %s215
          %p217 = scmp.lt.s32.totalorder %s216, 64
          %s218 = scalar_select %p217, %s216, 64
          %s219 = smul.u32 128, %s218
        $region40: #{tpu_custom_call.1} parent=35 // pred_fallthru
          _
      $region36: #{tpu_custom_call.1} parent=5 // pred_fallthru
        _
      %p220 = scmp.le.s32.totalorder 1, %s12
      %p221 = scmp.lt.s32.totalorder %s12, 3
      %p222 = pnand %p220, %p221
      %p223 = pneg %p222
      // Predicated region
      $region41: #{tpu_custom_call.1} parent=5 // pred_check
        _
      $region42: #{tpu_custom_call.1} parent=5 // pred_check_branch
        %225 = sbr.rel (%p222) target = $region44
      $region43: #{tpu_custom_call.1} parent=5 // pred_region
        %s226 = ssub.s32 %s12, 1
        %s227 = smul.u32 64, %s17
        %s228 = ssub.s32 125, %s227
        %p229 = scmp.lt.s32.totalorder %s228, 64
        %s230 = scalar_select %p229, %s228, 64
        %s231 = smul.u32 128, %s230
        %p232 = scmp.lt.s32.totalorder %s227, 124
        %s233 = scalar_select %p232, %s227, 124
        %s234 = smul.addr %s233, 8
        %s235 = scalar_lea.vmem %s0, %s234
        %p236 = pneg %p38
        %p237 = pneg %p35
        %p238 = pneg %p59
        %p239 = pneg %p56
        %p240 = pneg %p80
        %p241 = pneg %p77
        %p242 = pneg %p101
        %p243 = pneg %p98
        %p244 = pneg %p122
        %p245 = pneg %p119
        %p246 = pneg %p143
        %p247 = pneg %p140
        %p248 = pneg %p169
        %p249 = pneg %p166
        %s250 = sand.u32 %s156, 1
        %s251 = sand.u32 %s156, 1
        %s252 = smul.addr %s251, 512
        %s253 = scalar_lea.vmem [#allocation2], %s252
        %s254 = smul.u32 64, %s17
        %s255 = ssub.s32 125, %s254
        %p256 = scmp.lt.s32.totalorder %s255, 64
        %s257 = scalar_select %p256, %s255, 64
        %s258 = smul.u32 128, %s257
        %p259 = scmp.lt.s32.totalorder %s254, 124
        %s260 = scalar_select %p259, %s254, 124
        %s261 = smul.addr %s260, 8
        %s262 = scalar_lea.vmem %s0, %s261
        %s263 = smul.u32 64, %s17
        %s264 = ssub.s32 125, %s263
        %p265 = scmp.lt.s32.totalorder %s264, 64
        %s266 = scalar_select %p265, %s264, 64
        %s267 = smul.u32 128, %s266
        %s268 = smul.u32 64, %s17
        %s269 = ssub.s32 125, %s268
        %p270 = scmp.lt.s32.totalorder %s269, 64
        %s271 = scalar_select %p270, %s269, 64
        %s272 = smul.u32 128, %s271
        %v273 = vld [vmem:[%s5] sm:$0xff]
        %v274 = vld [vmem:[%s5 + $0x8] sm:$0xff]
        %v275 = vld [vmem:[%s5 + $0x10] sm:$0xff]
        %v276 = vld [vmem:[%s5 + $0x18] sm:$0xff]
        %v277 = vld [vmem:[%s5 + $0x20] sm:$0xff]
        %v278 = vld [vmem:[%s262] sm:$0xff]
        %v279 = vld [vmem:[%s262 + $0x8] sm:$0xff]
        %v280 = vld [vmem:[%s262 + $0x10] sm:$0xff]
        %v281 = vld [vmem:[%s262 + $0x18] sm:$0xff]
        %v282 = vld [vmem:[%s262 + $0x20] sm:$0xff]
        %v283 = vld [vmem:[%s262 + $0x28] sm:$0xff]
        %v284 = vld [vmem:[%s262 + $0x30] sm:$0xff]
        %v285 = vld [vmem:[%s262 + $0x38] sm:$0xff]
        %v286 = vld [vmem:[%s262 + $0x40] sm:$0xff]
        %v287 = vld [vmem:[%s262 + $0x48] sm:$0xff]
        %v288 = vld [vmem:[%s262 + $0x50] sm:$0xff]
        %v289 = vld [vmem:[%s262 + $0x58] sm:$0xff]
        %v290 = vld [vmem:[%s262 + $0x60] sm:$0xff]
        %v291 = vld [vmem:[%s262 + $0x68] sm:$0xff]
        %v292 = vld [vmem:[%s262 + $0x70] sm:$0xff]
        %v293 = vld [vmem:[%s262 + $0x78] sm:$0xff]
        %v294 = vld [vmem:[%s262 + $0x80] sm:$0xff]
        %v295 = vld [vmem:[%s262 + $0x88] sm:$0xff]
        %v296 = vld [vmem:[%s262 + $0x90] sm:$0xff]
        %v297 = vld [vmem:[%s262 + $0x98] sm:$0xff]
        %v298 = vld [vmem:[%s262 + $0xa0] sm:$0xff]
        %v299 = vld [vmem:[%s262 + $0xa8] sm:$0xff]
        %v300 = vld [vmem:[%s262 + $0xb0] sm:$0xff]
        %v301 = vld [vmem:[%s262 + $0xb8] sm:$0xff]
        %v302 = vld [vmem:[%s262 + $0xc0] sm:$0xff]
        %v303 = vld [vmem:[%s262 + $0xc8] sm:$0xff]
        %v304 = vld [vmem:[%s262 + $0xd0] sm:$0xff]
        %v305 = vld [vmem:[%s262 + $0xd8] sm:$0xff]
        %v306 = vld [vmem:[%s262 + $0xe0] sm:$0xff]
        %v307 = vld [vmem:[%s262 + $0xe8] sm:$0xff]
        %v308 = vld [vmem:[%s262 + $0xf0] sm:$0xff]
        %v309 = vld [vmem:[%s262 + $0xf8] sm:$0xff]
        %v310 = vld [vmem:[%s262 + $0x100] sm:$0xff]
        %v311 = vld [vmem:[%s262 + $0x108] sm:$0xff]
        %v312 = vld [vmem:[%s262 + $0x110] sm:$0xff]
        %v313 = vld [vmem:[%s262 + $0x118] sm:$0xff]
        %v314 = vld [vmem:[%s262 + $0x120] sm:$0xff]
        %v315 = vld [vmem:[%s262 + $0x128] sm:$0xff]
        %v316 = vld [vmem:[%s262 + $0x130] sm:$0xff]
        %v317 = vld [vmem:[%s262 + $0x138] sm:$0xff]
        %v318 = vld [vmem:[%s262 + $0x140] sm:$0xff]
        %v319 = vld [vmem:[%s262 + $0x148] sm:$0xff]
        %v320 = vld [vmem:[%s262 + $0x150] sm:$0xff]
        %v321 = vld [vmem:[%s262 + $0x158] sm:$0xff]
        %v322 = vld [vmem:[%s262 + $0x160] sm:$0xff]
        %v323 = vld [vmem:[%s262 + $0x168] sm:$0xff]
        %v324 = vld [vmem:[%s262 + $0x170] sm:$0xff]
        %v325 = vld [vmem:[%s262 + $0x178] sm:$0xff]
        %v326 = vld [vmem:[%s262 + $0x180] sm:$0xff]
        %v327 = vld [vmem:[%s262 + $0x188] sm:$0xff]
        %v328 = vld [vmem:[%s262 + $0x190] sm:$0xff]
        %v329 = vld [vmem:[%s262 + $0x198] sm:$0xff]
        %v330 = vld [vmem:[%s262 + $0x1a0] sm:$0xff]
        %v331 = vld [vmem:[%s262 + $0x1a8] sm:$0xff]
        %v332 = vld [vmem:[%s262 + $0x1b0] sm:$0xff]
        %v333 = vld [vmem:[%s262 + $0x1b8] sm:$0xff]
        %v334 = vld [vmem:[%s262 + $0x1c0] sm:$0xff]
        %v335 = vld [vmem:[%s262 + $0x1c8] sm:$0xff]
        %v336 = vld [vmem:[%s262 + $0x1d0] sm:$0xff]
        %v337 = vld [vmem:[%s262 + $0x1d8] sm:$0xff]
        %v338 = vld [vmem:[%s262 + $0x1e0] sm:$0xff]
        %v339 = vld [vmem:[%s262 + $0x1e8] sm:$0xff]
        %v340 = vld [vmem:[%s262 + $0x1f0] sm:$0xff]
        %v341 = vld [vmem:[%s262 + $0x1f8] sm:$0xff]
        %v342 = vld [vmem:[%s1] sm:$0xff]
        %v343 = vld [vmem:[%s1 + $0x8] sm:$0xff]
        %v344 = vld [vmem:[%s1 + $0x10] sm:$0xff]
        %v345 = vld [vmem:[%s1 + $0x18] sm:$0xff]
        %v346 = vld [vmem:[%s1 + $0x20] sm:$0xff]
        %348 = vset.pattern.permute.xlu0 0
        %349 = vperm.xlu0 %348, %v273
        %v350 = vpop.permute.xlu0 %349
        %353 = vset.pattern.permute.xlu0 0
        %354 = vperm.xlu0 %353, %v274
        %v355 = vpop.permute.xlu0 %354
        %358 = vset.pattern.permute.xlu0 0
        %359 = vperm.xlu0 %358, %v275
        %v360 = vpop.permute.xlu0 %359
        %363 = vset.pattern.permute.xlu0 0
        %364 = vperm.xlu0 %363, %v276
        %v365 = vpop.permute.xlu0 %364
        %368 = vset.pattern.permute.xlu0 0
        %369 = vperm.xlu0 %368, %v277
        %v370 = vpop.permute.xlu0 %369
        %vm372 = vcmask 130048
        %v374 = vsel %vm372, %v342, 0
        %v377 = vsel %vm372, %v343, 0
        %v380 = vsel %vm372, %v344, 0
        %v383 = vsel %vm372, %v345, 0
        %v386 = vsel %vm372, %v346, 0
        %v389 = vsel %vm372, %v278, 0
        %v392 = vsel %vm372, %v279, 0
        %v395 = vsel %vm372, %v280, 0
        %v398 = vsel %vm372, %v281, 0
        %v401 = vsel %vm372, %v282, 0
        %v404 = vsel %vm372, %v283, 0
        %v407 = vsel %vm372, %v284, 0
        %v410 = vsel %vm372, %v285, 0
        %v413 = vsel %vm372, %v286, 0
        %v416 = vsel %vm372, %v287, 0
        %v419 = vsel %vm372, %v288, 0
        %v422 = vsel %vm372, %v289, 0
        %v425 = vsel %vm372, %v290, 0
        %v428 = vsel %vm372, %v291, 0
        %v431 = vsel %vm372, %v292, 0
        %v434 = vsel %vm372, %v293, 0
        %v437 = vsel %vm372, %v294, 0
        %v440 = vsel %vm372, %v295, 0
        %v443 = vsel %vm372, %v296, 0
        %v446 = vsel %vm372, %v297, 0
        %v449 = vsel %vm372, %v298, 0
        %v452 = vsel %vm372, %v299, 0
        %v455 = vsel %vm372, %v300, 0
        %v458 = vsel %vm372, %v301, 0
        %v461 = vsel %vm372, %v302, 0
        %v464 = vsel %vm372, %v303, 0
        %v467 = vsel %vm372, %v304, 0
        %v470 = vsel %vm372, %v305, 0
        %v473 = vsel %vm372, %v306, 0
        %v476 = vsel %vm372, %v307, 0
        %v479 = vsel %vm372, %v308, 0
        %v482 = vsel %vm372, %v309, 0
        %v485 = vsel %vm372, %v310, 0
        %v488 = vsel %vm372, %v311, 0
        %v491 = vsel %vm372, %v312, 0
        %v494 = vsel %vm372, %v313, 0
        %v497 = vsel %vm372, %v314, 0
        %v500 = vsel %vm372, %v315, 0
        %v503 = vsel %vm372, %v316, 0
        %v506 = vsel %vm372, %v317, 0
        %v509 = vsel %vm372, %v318, 0
        %v512 = vsel %vm372, %v319, 0
        %v515 = vsel %vm372, %v320, 0
        %v518 = vsel %vm372, %v321, 0
        %v521 = vsel %vm372, %v322, 0
        %v524 = vsel %vm372, %v323, 0
        %v527 = vsel %vm372, %v324, 0
        %v530 = vsel %vm372, %v325, 0
        %v533 = vsel %vm372, %v326, 0
        %v536 = vsel %vm372, %v327, 0
        %v539 = vsel %vm372, %v328, 0
        %v542 = vsel %vm372, %v329, 0
        %v545 = vsel %vm372, %v330, 0
        %v548 = vsel %vm372, %v331, 0
        %v551 = vsel %vm372, %v332, 0
        %v554 = vsel %vm372, %v333, 0
        %v557 = vsel %vm372, %v334, 0
        %v560 = vsel %vm372, %v335, 0
        %v563 = vsel %vm372, %v336, 0
        %v566 = vsel %vm372, %v337, 0
        %v569 = vsel %vm372, %v338, 0
        %v572 = vsel %vm372, %v339, 0
        %v575 = vsel %vm372, %v340, 0
        %v578 = vsel %vm372, %v341, 0
        %580 = vmatprep.subr.mxu0 0.0
        %581 = vmatpush1.xpose.msra.mxu0 %v389
        %582 = vmatprep.subr.mxu0 0.0
        %583 = vmatpush1.xpose.msra.mxu0 %v392
        %584 = vmatprep.subr.mxu0 0.0
        %585 = vmatpush1.xpose.msra.mxu0 %v395
        %586 = vmatprep.subr.mxu0 0.0
        %587 = vmatpush1.xpose.msra.mxu0 %v398
        %588 = vmatprep.subr.mxu0 0.0
        %589 = vmatpush1.xpose.msra.mxu0 %v401
        %590 = vmatprep.subr.mxu0 0.0
        %591 = vmatpush1.xpose.msra.mxu0 %v404
        %592 = vmatprep.subr.mxu0 0.0
        %593 = vmatpush1.xpose.msra.mxu0 %v407
        %594 = vmatprep.subr.mxu0 0.0
        %595 = vmatpush1.xpose.msra.mxu0 %v410
        %596 = vmatprep.subr.mxu0 0.0
        %597 = vmatpush1.xpose.msra.mxu0 %v413
        %598 = vmatprep.subr.mxu0 0.0
        %599 = vmatpush1.xpose.msra.mxu0 %v416
        %600 = vmatprep.subr.mxu0 0.0
        %601 = vmatpush1.xpose.msra.mxu0 %v419
        %602 = vmatprep.subr.mxu0 0.0
        %603 = vmatpush1.xpose.msra.mxu0 %v422
        %604 = vmatprep.subr.mxu0 0.0
        %605 = vmatpush1.xpose.msra.mxu0 %v425
        %606 = vmatprep.subr.mxu0 0.0
        %607 = vmatpush1.xpose.msra.mxu0 %v428
        %608 = vmatprep.subr.mxu0 0.0
        %609 = vmatpush1.xpose.msra.mxu0 %v431
        %610 = vmatprep.subr.mxu0 0.0
        %611 = vmatpush1.xpose.msra.mxu0 %v434
        %612 = vmatprep.subr.mxu0 0.0
        %613 = vmatpush1.xpose.msra.mxu0 %v437
        %614 = vmatprep.subr.mxu0 0.0
        %615 = vmatpush1.xpose.msra.mxu0 %v440
        %616 = vmatprep.subr.mxu0 0.0
        %617 = vmatpush1.xpose.msra.mxu0 %v443
        %618 = vmatprep.subr.mxu0 0.0
        %619 = vmatpush1.xpose.msra.mxu0 %v446
        %620 = vmatprep.subr.mxu0 0.0
        %621 = vmatpush1.xpose.msra.mxu0 %v449
        %622 = vmatprep.subr.mxu0 0.0
        %623 = vmatpush1.xpose.msra.mxu0 %v452
        %624 = vmatprep.subr.mxu0 0.0
        %625 = vmatpush1.xpose.msra.mxu0 %v455
        %626 = vmatprep.subr.mxu0 0.0
        %627 = vmatpush1.xpose.msra.mxu0 %v458
        %628 = vmatprep.subr.mxu0 0.0
        %629 = vmatpush1.xpose.msra.mxu0 %v461
        %630 = vmatprep.subr.mxu0 0.0
        %631 = vmatpush1.xpose.msra.mxu0 %v464
        %632 = vmatprep.subr.mxu0 0.0
        %633 = vmatpush1.xpose.msra.mxu0 %v467
        %634 = vmatprep.subr.mxu0 0.0
        %635 = vmatpush1.xpose.msra.mxu0 %v470
        %636 = vmatprep.subr.mxu0 0.0
        %637 = vmatpush1.xpose.msra.mxu0 %v473
        %638 = vmatprep.subr.mxu0 0.0
        %639 = vmatpush1.xpose.msra.mxu0 %v476
        %640 = vmatprep.subr.mxu0 0.0
        %641 = vmatpush1.xpose.msra.mxu0 %v479
        %642 = vmatprep.subr.mxu0 0.0
        %643 = vmatpush1.xpose.msra.mxu0 %v482
        %644 = vmatprep.mubr.f32.mxu0 0.0
        %645 = vmatmul.mubr.f32.gmra.mrb[0].mxu0 %v374
        %v646 = vpop.f32.mrb[0].mxu0
        %v647 = vadd.f32 %v350, %v646
        %v648 = vpop.f32.mrb[0].mxu0
        %v649 = vadd.f32 %v350, %v648
        %650 = vmatprep.mubr.f32.mxu0 0.0
        %651 = vmatmul.mubr.f32.gmra.mrb[0].mxu0 %v377
        %v652 = vpop.f32.mrb[0].mxu0
        %v653 = vadd.f32 %v355, %v652
        %v654 = vpop.f32.mrb[0].mxu0
        %v655 = vadd.f32 %v355, %v654
        %656 = vmatprep.mubr.f32.mxu0 0.0
        %657 = vmatmul.mubr.f32.gmra.mrb[0].mxu0 %v380
        %v658 = vpop.f32.mrb[0].mxu0
        %v659 = vadd.f32 %v360, %v658
        %v660 = vpop.f32.mrb[0].mxu0
        %v661 = vadd.f32 %v360, %v660
        %662 = vmatprep.mubr.f32.mxu0 0.0
        %663 = vmatmul.mubr.f32.gmra.mrb[0].mxu0 %v383
        %v664 = vpop.f32.mrb[0].mxu0
        %v665 = vadd.f32 %v365, %v664
        %v666 = vpop.f32.mrb[0].mxu0
        %v667 = vadd.f32 %v365, %v666
        %668 = vmatprep.mubr.f32.mxu0 0.0
        %669 = vmatmul.mubr.f32.gmra.mrb[0].mxu0 %v386
        %v670 = vpop.f32.mrb[0].mxu0
        %v671 = vadd.f32 %v370, %v670
        %v672 = vpop.f32.mrb[0].mxu0
        %v673 = vadd.f32 %v370, %v672
        %674 = vdwg.mxu0
        %675 = vmatprep.subr.mxu0 0.0
        %676 = vmatpush1.xpose.msra.mxu0 %v485
        %677 = vmatprep.subr.mxu0 0.0
        %678 = vmatpush1.xpose.msra.mxu0 %v488
        %679 = vmatprep.subr.mxu0 0.0
        %680 = vmatpush1.xpose.msra.mxu0 %v491
        %681 = vmatprep.subr.mxu0 0.0
        %682 = vmatpush1.xpose.msra.mxu0 %v494
        %683 = vmatprep.subr.mxu0 0.0
        %684 = vmatpush1.xpose.msra.mxu0 %v497
        %685 = vmatprep.subr.mxu0 0.0
        %686 = vmatpush1.xpose.msra.mxu0 %v500
        %687 = vmatprep.subr.mxu0 0.0
        %688 = vmatpush1.xpose.msra.mxu0 %v503
        %689 = vmatprep.subr.mxu0 0.0
        %690 = vmatpush1.xpose.msra.mxu0 %v506
        %691 = vmatprep.subr.mxu0 0.0
        %692 = vmatpush1.xpose.msra.mxu0 %v509
        %693 = vmatprep.subr.mxu0 0.0
        %694 = vmatpush1.xpose.msra.mxu0 %v512
        %695 = vmatprep.subr.mxu0 0.0
        %696 = vmatpush1.xpose.msra.mxu0 %v515
        %697 = vmatprep.subr.mxu0 0.0
        %698 = vmatpush1.xpose.msra.mxu0 %v518
        %699 = vmatprep.subr.mxu0 0.0
        %700 = vmatpush1.xpose.msra.mxu0 %v521
        %701 = vmatprep.subr.mxu0 0.0
        %702 = vmatpush1.xpose.msra.mxu0 %v524
        %703 = vmatprep.subr.mxu0 0.0
        %704 = vmatpush1.xpose.msra.mxu0 %v527
        %705 = vmatprep.subr.mxu0 0.0
        %706 = vmatpush1.xpose.msra.mxu0 %v530
        %707 = vmatprep.subr.mxu0 0.0
        %708 = vmatpush1.xpose.msra.mxu0 %v533
        %709 = vmatprep.subr.mxu0 0.0
        %710 = vmatpush1.xpose.msra.mxu0 %v536
        %711 = vmatprep.subr.mxu0 0.0
        %712 = vmatpush1.xpose.msra.mxu0 %v539
        %713 = vmatprep.subr.mxu0 0.0
        %714 = vmatpush1.xpose.msra.mxu0 %v542
        %715 = vmatprep.subr.mxu0 0.0
        %716 = vmatpush1.xpose.msra.mxu0 %v545
        %717 = vmatprep.subr.mxu0 0.0
        %718 = vmatpush1.xpose.msra.mxu0 %v548
        %719 = vmatprep.subr.mxu0 0.0
        %720 = vmatpush1.xpose.msra.mxu0 %v551
        %721 = vmatprep.subr.mxu0 0.0
        %722 = vmatpush1.xpose.msra.mxu0 %v554
        %723 = vmatprep.subr.mxu0 0.0
        %724 = vmatpush1.xpose.msra.mxu0 %v557
        %725 = vmatprep.subr.mxu0 0.0
        %726 = vmatpush1.xpose.msra.mxu0 %v560
        %727 = vmatprep.subr.mxu0 0.0
        %728 = vmatpush1.xpose.msra.mxu0 %v563
        %729 = vmatprep.subr.mxu0 0.0
        %730 = vmatpush1.xpose.msra.mxu0 %v566
        %731 = vmatprep.subr.mxu0 0.0
        %732 = vmatpush1.xpose.msra.mxu0 %v569
        %733 = vmatprep.subr.mxu0 0.0
        %734 = vmatpush1.xpose.msra.mxu0 %v572
        %735 = vmatprep.subr.mxu0 0.0
        %736 = vmatpush1.xpose.msra.mxu0 %v575
        %737 = vmatprep.subr.mxu0 0.0
        %738 = vmatpush1.xpose.msra.mxu0 %v578
        %739 = vmatprep.mubr.f32.mxu0 0.0
        %740 = vmatmul.mubr.f32.gmra.mrb[0].mxu0 %v374
        %v741 = vpop.f32.mrb[0].mxu0
        %v742 = vadd.f32 %v350, %v741
        %v743 = vpop.f32.mrb[0].mxu0
        %v744 = vadd.f32 %v350, %v743
        %745 = vmatprep.mubr.f32.mxu0 0.0
        %746 = vmatmul.mubr.f32.gmra.mrb[0].mxu0 %v377
        %v747 = vpop.f32.mrb[0].mxu0
        %v748 = vadd.f32 %v355, %v747
        %v749 = vpop.f32.mrb[0].mxu0
        %v750 = vadd.f32 %v355, %v749
        %751 = vmatprep.mubr.f32.mxu0 0.0
        %752 = vmatmul.mubr.f32.gmra.mrb[0].mxu0 %v380
        %v753 = vpop.f32.mrb[0].mxu0
        %v754 = vadd.f32 %v360, %v753
        %v755 = vpop.f32.mrb[0].mxu0
        %v756 = vadd.f32 %v360, %v755
        %757 = vmatprep.mubr.f32.mxu0 0.0
        %758 = vmatmul.mubr.f32.gmra.mrb[0].mxu0 %v383
        %v759 = vpop.f32.mrb[0].mxu0
        %v760 = vadd.f32 %v365, %v759
        %v761 = vpop.f32.mrb[0].mxu0
        %v762 = vadd.f32 %v365, %v761
        %763 = vmatprep.mubr.f32.mxu0 0.0
        %764 = vmatmul.mubr.f32.gmra.mrb[0].mxu0 %v386
        %v765 = vpop.f32.mrb[0].mxu0
        %v766 = vadd.f32 %v370, %v765
        %v767 = vpop.f32.mrb[0].mxu0
        %v768 = vadd.f32 %v370, %v767
        %769 = vdwg.mxu0
        %v770 = vmul.f32 %v647, %v647
        %v771 = vmul.f32 %v649, %v649
        %v772 = vmul.f32 %v742, %v742
        %v773 = vmul.f32 %v744, %v744
        %v774 = vmul.f32 %v653, %v653
        %v775 = vmul.f32 %v655, %v655
        %v776 = vmul.f32 %v748, %v748
        %v777 = vmul.f32 %v750, %v750
        %v778 = vmul.f32 %v659, %v659
        %v779 = vmul.f32 %v661, %v661
        %v780 = vmul.f32 %v754, %v754
        %v781 = vmul.f32 %v756, %v756
        %v782 = vmul.f32 %v665, %v665
        %v783 = vmul.f32 %v667, %v667
        %v784 = vmul.f32 %v760, %v760
        %v785 = vmul.f32 %v762, %v762
        %v786 = vadd.f32 %v770, %v774
        %v787 = vadd.f32 %v786, %v778
        %v788 = vadd.f32 %v787, %v782
        %v789 = vrot.slane %v788, 4
        %v790 = vadd.f32 %v788, %v789
        %v791 = vrot.slane %v790, 2
        %v792 = vadd.f32 %v790, %v791
        %v793 = vrot.slane %v792, 1
        %v794 = vadd.f32 %v792, %v793
        %v795 = vadd.f32 %v771, %v775
        %v796 = vadd.f32 %v795, %v779
        %v797 = vadd.f32 %v796, %v783
        %v798 = vrot.slane %v797, 4
        %v799 = vadd.f32 %v797, %v798
        %v800 = vrot.slane %v799, 2
        %v801 = vadd.f32 %v799, %v800
        %v802 = vrot.slane %v801, 1
        %v803 = vadd.f32 %v801, %v802
        %v804 = vadd.f32 %v772, %v776
        %v805 = vadd.f32 %v804, %v780
        %v806 = vadd.f32 %v805, %v784
        %v807 = vrot.slane %v806, 4
        %v808 = vadd.f32 %v806, %v807
        %v809 = vrot.slane %v808, 2
        %v810 = vadd.f32 %v808, %v809
        %v811 = vrot.slane %v810, 1
        %v812 = vadd.f32 %v810, %v811
        %v813 = vadd.f32 %v773, %v777
        %v814 = vadd.f32 %v813, %v781
        %v815 = vadd.f32 %v814, %v785
        %v816 = vrot.slane %v815, 4
        %v817 = vadd.f32 %v815, %v816
        %v818 = vrot.slane %v817, 2
        %v819 = vadd.f32 %v817, %v818
        %v820 = vrot.slane %v819, 1
        %v821 = vadd.f32 %v819, %v820
        %v822 = vmul.f32 %v794, 0.03125
        %v823 = vmul.f32 %v803, 0.03125
        %v824 = vmul.f32 %v812, 0.03125
        %v825 = vmul.f32 %v821, 0.03125
        %v826 = vmul.f32 %v671, %v671
        %v827 = vmul.f32 %v673, %v673
        %v828 = vmul.f32 %v766, %v766
        %v829 = vmul.f32 %v768, %v768
        %v830 = vsub.f32 %v822, %v826
        %v831 = vsub.f32 %v823, %v827
        %v832 = vsub.f32 %v824, %v828
        %v833 = vsub.f32 %v825, %v829
        %v834 = vmax.f32 %v830, 0.0
        %v835 = vmax.f32 %v831, 0.0
        %v836 = vmax.f32 %v832, 0.0
        %v837 = vmax.f32 %v833, 0.0
        %v838 = vlaneseq
        %v839 = vshrl.u32 %v838, 7
        %v840 = vsub.s32 0, %v839
        %v841 = vrot.slane %v671, %v840
        %v842 = vlaneseq
        %v843 = vshrl.u32 %v842, 7
        %v844 = vsub.s32 0, %v843
        %v845 = vrot.slane %v673, %v844
        %v846 = vlaneseq
        %v847 = vshrl.u32 %v846, 7
        %v848 = vsub.s32 0, %v847
        %v849 = vrot.slane %v766, %v848
        %v850 = vlaneseq
        %v851 = vshrl.u32 %v850, 7
        %v852 = vsub.s32 0, %v851
        %v853 = vrot.slane %v768, %v852
        %v854 = vsub.f32 %v647, %v841
        %v855 = vsub.f32 %v649, %v845
        %v856 = vsub.f32 %v742, %v849
        %v857 = vsub.f32 %v744, %v853
        %v858 = vsub.f32 %v653, %v841
        %v859 = vsub.f32 %v655, %v845
        %v860 = vsub.f32 %v748, %v849
        %v861 = vsub.f32 %v750, %v853
        %v862 = vsub.f32 %v659, %v841
        %v863 = vsub.f32 %v661, %v845
        %v864 = vsub.f32 %v754, %v849
        %v865 = vsub.f32 %v756, %v853
        %v866 = vsub.f32 %v665, %v841
        %v867 = vsub.f32 %v667, %v845
        %v868 = vsub.f32 %v760, %v849
        %v869 = vsub.f32 %v762, %v853
        %v870 = vadd.f32 %v834, 1e-05
        %v871 = vadd.f32 %v835, 1e-05
        %v872 = vadd.f32 %v836, 1e-05
        %v873 = vadd.f32 %v837, 1e-05
        %v874 = vrsqrt.pop %v870
        %v875 = vrsqrt.pop %v871
        %v876 = vrsqrt.pop %v872
        %v877 = vrsqrt.pop %v873
        %v878 = vlaneseq
        %v879 = vshrl.u32 %v878, 7
        %v880 = vsub.s32 0, %v879
        %v881 = vrot.slane %v874, %v880
        %v882 = vlaneseq
        %v883 = vshrl.u32 %v882, 7
        %v884 = vsub.s32 0, %v883
        %v885 = vrot.slane %v875, %v884
        %v886 = vlaneseq
        %v887 = vshrl.u32 %v886, 7
        %v888 = vsub.s32 0, %v887
        %v889 = vrot.slane %v876, %v888
        %v890 = vlaneseq
        %v891 = vshrl.u32 %v890, 7
        %v892 = vsub.s32 0, %v891
        %v893 = vrot.slane %v877, %v892
        %v894 = vmul.f32 %v854, %v881
        %v895 = vmul.f32 %v855, %v885
        %v896 = vmul.f32 %v856, %v889
        %v897 = vmul.f32 %v857, %v893
        %v898 = vmul.f32 %v858, %v881
        %v899 = vmul.f32 %v859, %v885
        %v900 = vmul.f32 %v860, %v889
        %v901 = vmul.f32 %v861, %v893
        %v902 = vmul.f32 %v862, %v881
        %v903 = vmul.f32 %v863, %v885
        %v904 = vmul.f32 %v864, %v889
        %v905 = vmul.f32 %v865, %v893
        %v906 = vmul.f32 %v866, %v881
        %v907 = vmul.f32 %v867, %v885
        %v908 = vmul.f32 %v868, %v889
        %v909 = vmul.f32 %v869, %v893
        %910 = vset.pattern.permute.xlu0 1
        %911 = vperm.xlu0 %910, %v273
        %v912 = vpop.permute.xlu0 %911
        %914 = vset.pattern.permute.xlu0 1
        %915 = vperm.xlu0 %914, %v274
        %v916 = vpop.permute.xlu0 %915
        %918 = vset.pattern.permute.xlu0 1
        %919 = vperm.xlu0 %918, %v275
        %v920 = vpop.permute.xlu0 %919
        %922 = vset.pattern.permute.xlu0 1
        %923 = vperm.xlu0 %922, %v276
        %v924 = vpop.permute.xlu0 %923
        %v926 = vmul.f32 %v894, %v912
        %v927 = vmul.f32 %v895, %v912
        %v928 = vmul.f32 %v896, %v912
        %v929 = vmul.f32 %v897, %v912
        %v930 = vmul.f32 %v898, %v916
        %v931 = vmul.f32 %v899, %v916
        %v932 = vmul.f32 %v900, %v916
        %v933 = vmul.f32 %v901, %v916
        %v934 = vmul.f32 %v902, %v920
        %v935 = vmul.f32 %v903, %v920
        %v936 = vmul.f32 %v904, %v920
        %v937 = vmul.f32 %v905, %v920
        %v938 = vmul.f32 %v906, %v924
        %v939 = vmul.f32 %v907, %v924
        %v940 = vmul.f32 %v908, %v924
        %v941 = vmul.f32 %v909, %v924
        %942 = vset.pattern.permute.xlu0 2
        %943 = vperm.xlu0 %942, %v273
        %v944 = vpop.permute.xlu0 %943
        %946 = vset.pattern.permute.xlu0 2
        %947 = vperm.xlu0 %946, %v274
        %v948 = vpop.permute.xlu0 %947
        %950 = vset.pattern.permute.xlu0 2
        %951 = vperm.xlu0 %950, %v275
        %v952 = vpop.permute.xlu0 %951
        %954 = vset.pattern.permute.xlu0 2
        %955 = vperm.xlu0 %954, %v276
        %v956 = vpop.permute.xlu0 %955
        %v958 = vadd.f32 %v926, %v944
        %v959 = vadd.f32 %v927, %v944
        %v960 = vadd.f32 %v928, %v944
        %v961 = vadd.f32 %v929, %v944
        %v962 = vadd.f32 %v930, %v948
        %v963 = vadd.f32 %v931, %v948
        %v964 = vadd.f32 %v932, %v948
        %v965 = vadd.f32 %v933, %v948
        %v966 = vadd.f32 %v934, %v952
        %v967 = vadd.f32 %v935, %v952
        %v968 = vadd.f32 %v936, %v952
        %v969 = vadd.f32 %v937, %v952
        %v970 = vadd.f32 %v938, %v956
        %v971 = vadd.f32 %v939, %v956
        %v972 = vadd.f32 %v940, %v956
        %v973 = vadd.f32 %v941, %v956
        %v974 = vtanh.pop %v958
        %v975 = vtanh.pop %v959
        %v976 = vtanh.pop %v960
        %v977 = vtanh.pop %v961
        %v978 = vtanh.pop %v962
        %v979 = vtanh.pop %v963
        %v980 = vtanh.pop %v964
        %v981 = vtanh.pop %v965
        %v982 = vtanh.pop %v966
        %v983 = vtanh.pop %v967
        %v984 = vtanh.pop %v968
        %v985 = vtanh.pop %v969
        %v986 = vtanh.pop %v970
        %v987 = vtanh.pop %v971
        %v988 = vtanh.pop %v972
        %v989 = vtanh.pop %v973
        %v990 = vld [vmem:[%s2] sm:$0xff]
        %v991 = vld [vmem:[%s2 + $0x8] sm:$0xff]
        %v992 = vld [vmem:[%s2 + $0x10] sm:$0xff]
        %v993 = vld [vmem:[%s2 + $0x18] sm:$0xff]
        %v994 = vld [vmem:[%s2 + $0x20] sm:$0xff]
        %995 = vset.pattern.permute.xlu0 3
        %996 = vperm.xlu0 %995, %v273
        %v997 = vpop.permute.xlu0 %996
        %999 = vset.pattern.permute.xlu0 3
        %1000 = vperm.xlu0 %999, %v274
        %v1001 = vpop.permute.xlu0 %1000
        %1003 = vset.pattern.permute.xlu0 3
        %1004 = vperm.xlu0 %1003, %v275
        %v1005 = vpop.permute.xlu0 %1004
        %1007 = vset.pattern.permute.xlu0 3
        %1008 = vperm.xlu0 %1007, %v276
        %v1009 = vpop.permute.xlu0 %1008
        %1011 = vset.pattern.permute.xlu0 3
        %1012 = vperm.xlu0 %1011, %v277
        %v1013 = vpop.permute.xlu0 %1012
        %vm1015 = vcmask 261120
        %v1017 = vsel %vm1015, %v990, 0
        %v1020 = vsel %vm1015, %v991, 0
        %v1023 = vsel %vm1015, %v992, 0
        %v1026 = vsel %vm1015, %v993, 0
        %v1029 = vsel %vm1015, %v994, 0
        %1031 = vmatprep.subr.mxu0 %v975
        %1032 = vmatpush1.msra.mxu0 %v974
        %1033 = vmatprep.subr.mxu0 %v979
        %1034 = vmatpush1.msra.mxu0 %v978
        %1035 = vmatprep.subr.mxu0 %v983
        %1036 = vmatpush1.msra.mxu0 %v982
        %1037 = vmatprep.subr.mxu0 %v987
        %1038 = vmatpush1.msra.mxu0 %v986
        %1039 = vmatprep.subr.mxu0 0.0
        %1040 = vmatpush1.msra.mxu0 0.0
        %1041 = vmatprep.subr.mxu0 0.0
        %1042 = vmatpush1.msra.mxu0 0.0
        %1043 = vmatprep.subr.mxu0 0.0
        %1044 = vmatpush1.msra.mxu0 0.0
        %1045 = vmatprep.subr.mxu0 0.0
        %1046 = vmatpush1.msra.mxu0 0.0
        %1047 = vmatprep.subr.mxu0 0.0
        %1048 = vmatpush1.msra.mxu0 0.0
        %1049 = vmatprep.subr.mxu0 0.0
        %1050 = vmatpush1.msra.mxu0 0.0
        %1051 = vmatprep.subr.mxu0 0.0
        %1052 = vmatpush1.msra.mxu0 0.0
        %1053 = vmatprep.subr.mxu0 0.0
        %1054 = vmatpush1.msra.mxu0 0.0
        %1055 = vmatprep.subr.mxu0 0.0
        %1056 = vmatpush1.msra.mxu0 0.0
        %1057 = vmatprep.subr.mxu0 0.0
        %1058 = vmatpush1.msra.mxu0 0.0
        %1059 = vmatprep.subr.mxu0 0.0
        %1060 = vmatpush1.msra.mxu0 0.0
        %1061 = vmatprep.subr.mxu0 0.0
        %1062 = vmatpush1.msra.mxu0 0.0
        %1063 = vmatprep.subr.mxu0 0.0
        %1064 = vmatpush1.msra.mxu0 0.0
        %1065 = vmatprep.subr.mxu0 0.0
        %1066 = vmatpush1.msra.mxu0 0.0
        %1067 = vmatprep.subr.mxu0 0.0
        %1068 = vmatpush1.msra.mxu0 0.0
        %1069 = vmatprep.subr.mxu0 0.0
        %1070 = vmatpush1.msra.mxu0 0.0
        %1071 = vmatprep.subr.mxu0 0.0
        %1072 = vmatpush1.msra.mxu0 0.0
        %1073 = vmatprep.subr.mxu0 0.0
        %1074 = vmatpush1.msra.mxu0 0.0
        %1075 = vmatprep.subr.mxu0 0.0
        %1076 = vmatpush1.msra.mxu0 0.0
        %1077 = vmatprep.subr.mxu0 0.0
        %1078 = vmatpush1.msra.mxu0 0.0
        %1079 = vmatprep.subr.mxu0 0.0
        %1080 = vmatpush1.msra.mxu0 0.0
        %1081 = vmatprep.subr.mxu0 0.0
        %1082 = vmatpush1.msra.mxu0 0.0
        %1083 = vmatprep.subr.mxu0 0.0
        %1084 = vmatpush1.msra.mxu0 0.0
        %1085 = vmatprep.subr.mxu0 0.0
        %1086 = vmatpush1.msra.mxu0 0.0
        %1087 = vmatprep.subr.mxu0 0.0
        %1088 = vmatpush1.msra.mxu0 0.0
        %1089 = vmatprep.subr.mxu0 0.0
        %1090 = vmatpush1.msra.mxu0 0.0
        %1091 = vmatprep.subr.mxu0 0.0
        %1092 = vmatpush1.msra.mxu0 0.0
        %1093 = vmatprep.subr.mxu0 0.0
        %1094 = vmatpush1.msra.mxu0 0.0
        %1095 = vmatprep.mubr.f32.mxu0 0.0
        %1096 = vmatmul.mubr.f32.gmra.mrb[0].mxu0 %v1017
        %v1097 = vpop.f32.mrb[0].mxu0
        %v1098 = vadd.f32 %v997, %v1097
        %v1099 = vpop.f32.mrb[0].mxu0
        %v1100 = vadd.f32 %v997, %v1099
        %1101 = vmatprep.mubr.f32.mxu0 0.0
        %1102 = vmatmul.mubr.f32.gmra.mrb[0].mxu0 %v1020
        %v1103 = vpop.f32.mrb[0].mxu0
        %v1104 = vadd.f32 %v1001, %v1103
        %v1105 = vpop.f32.mrb[0].mxu0
        %v1106 = vadd.f32 %v1001, %v1105
        %1107 = vmatprep.mubr.f32.mxu0 0.0
        %1108 = vmatmul.mubr.f32.gmra.mrb[0].mxu0 %v1023
        %v1109 = vpop.f32.mrb[0].mxu0
        %v1110 = vadd.f32 %v1005, %v1109
        %v1111 = vpop.f32.mrb[0].mxu0
        %v1112 = vadd.f32 %v1005, %v1111
        %1113 = vmatprep.mubr.f32.mxu0 0.0
        %1114 = vmatmul.mubr.f32.gmra.mrb[0].mxu0 %v1026
        %v1115 = vpop.f32.mrb[0].mxu0
        %v1116 = vadd.f32 %v1009, %v1115
        %v1117 = vpop.f32.mrb[0].mxu0
        %v1118 = vadd.f32 %v1009, %v1117
        %1119 = vmatprep.mubr.f32.mxu0 0.0
        %1120 = vmatmul.mubr.f32.gmra.mrb[0].mxu0 %v1029
        %v1121 = vpop.f32.mrb[0].mxu0
        %v1122 = vadd.f32 %v1013, %v1121
        %v1123 = vpop.f32.mrb[0].mxu0
        %v1124 = vadd.f32 %v1013, %v1123
        %1125 = vdwg.mxu0
        %1126 = vmatprep.subr.mxu0 %v977
        %1127 = vmatpush1.msra.mxu0 %v976
        %1128 = vmatprep.subr.mxu0 %v981
        %1129 = vmatpush1.msra.mxu0 %v980
        %1130 = vmatprep.subr.mxu0 %v985
        %1131 = vmatpush1.msra.mxu0 %v984
        %1132 = vmatprep.subr.mxu0 %v989
        %1133 = vmatpush1.msra.mxu0 %v988
        %1134 = vmatprep.subr.mxu0 0.0
        %1135 = vmatpush1.msra.mxu0 0.0
        %1136 = vmatprep.subr.mxu0 0.0
        %1137 = vmatpush1.msra.mxu0 0.0
        %1138 = vmatprep.subr.mxu0 0.0
        %1139 = vmatpush1.msra.mxu0 0.0
        %1140 = vmatprep.subr.mxu0 0.0
        %1141 = vmatpush1.msra.mxu0 0.0
        %1142 = vmatprep.subr.mxu0 0.0
        %1143 = vmatpush1.msra.mxu0 0.0
        %1144 = vmatprep.subr.mxu0 0.0
        %1145 = vmatpush1.msra.mxu0 0.0
        %1146 = vmatprep.subr.mxu0 0.0
        %1147 = vmatpush1.msra.mxu0 0.0
        %1148 = vmatprep.subr.mxu0 0.0
        %1149 = vmatpush1.msra.mxu0 0.0
        %1150 = vmatprep.subr.mxu0 0.0
        %1151 = vmatpush1.msra.mxu0 0.0
        %1152 = vmatprep.subr.mxu0 0.0
        %1153 = vmatpush1.msra.mxu0 0.0
        %1154 = vmatprep.subr.mxu0 0.0
        %1155 = vmatpush1.msra.mxu0 0.0
        %1156 = vmatprep.subr.mxu0 0.0
        %1157 = vmatpush1.msra.mxu0 0.0
        %1158 = vmatprep.subr.mxu0 0.0
        %1159 = vmatpush1.msra.mxu0 0.0
        %1160 = vmatprep.subr.mxu0 0.0
        %1161 = vmatpush1.msra.mxu0 0.0
        %1162 = vmatprep.subr.mxu0 0.0
        %1163 = vmatpush1.msra.mxu0 0.0
        %1164 = vmatprep.subr.mxu0 0.0
        %1165 = vmatpush1.msra.mxu0 0.0
        %1166 = vmatprep.subr.mxu0 0.0
        %1167 = vmatpush1.msra.mxu0 0.0
        %1168 = vmatprep.subr.mxu0 0.0
        %1169 = vmatpush1.msra.mxu0 0.0
        %1170 = vmatprep.subr.mxu0 0.0
        %1171 = vmatpush1.msra.mxu0 0.0
        %1172 = vmatprep.subr.mxu0 0.0
        %1173 = vmatpush1.msra.mxu0 0.0
        %1174 = vmatprep.subr.mxu0 0.0
        %1175 = vmatpush1.msra.mxu0 0.0
        %1176 = vmatprep.subr.mxu0 0.0
        %1177 = vmatpush1.msra.mxu0 0.0
        %1178 = vmatprep.subr.mxu0 0.0
        %1179 = vmatpush1.msra.mxu0 0.0
        %1180 = vmatprep.subr.mxu0 0.0
        %1181 = vmatpush1.msra.mxu0 0.0
        %1182 = vmatprep.subr.mxu0 0.0
        %1183 = vmatpush1.msra.mxu0 0.0
        %1184 = vmatprep.subr.mxu0 0.0
        %1185 = vmatpush1.msra.mxu0 0.0
        %1186 = vmatprep.subr.mxu0 0.0
        %1187 = vmatpush1.msra.mxu0 0.0
        %1188 = vmatprep.subr.mxu0 0.0
        %1189 = vmatpush1.msra.mxu0 0.0
        %1190 = vmatprep.mubr.f32.mxu0 0.0
        %1191 = vmatmul.mubr.f32.gmra.mrb[0].mxu0 %v1017
        %v1192 = vpop.f32.mrb[0].mxu0
        %v1193 = vadd.f32 %v997, %v1192
        %v1194 = vpop.f32.mrb[0].mxu0
        %v1195 = vadd.f32 %v997, %v1194
        %1196 = vmatprep.mubr.f32.mxu0 0.0
        %1197 = vmatmul.mubr.f32.gmra.mrb[0].mxu0 %v1020
        %v1198 = vpop.f32.mrb[0].mxu0
        %v1199 = vadd.f32 %v1001, %v1198
        %v1200 = vpop.f32.mrb[0].mxu0
        %v1201 = vadd.f32 %v1001, %v1200
        %1202 = vmatprep.mubr.f32.mxu0 0.0
        %1203 = vmatmul.mubr.f32.gmra.mrb[0].mxu0 %v1023
        %v1204 = vpop.f32.mrb[0].mxu0
        %v1205 = vadd.f32 %v1005, %v1204
        %v1206 = vpop.f32.mrb[0].mxu0
        %v1207 = vadd.f32 %v1005, %v1206
        %1208 = vmatprep.mubr.f32.mxu0 0.0
        %1209 = vmatmul.mubr.f32.gmra.mrb[0].mxu0 %v1026
        %v1210 = vpop.f32.mrb[0].mxu0
        %v1211 = vadd.f32 %v1009, %v1210
        %v1212 = vpop.f32.mrb[0].mxu0
        %v1213 = vadd.f32 %v1009, %v1212
        %1214 = vmatprep.mubr.f32.mxu0 0.0
        %1215 = vmatmul.mubr.f32.gmra.mrb[0].mxu0 %v1029
        %v1216 = vpop.f32.mrb[0].mxu0
        %v1217 = vadd.f32 %v1013, %v1216
        %v1218 = vpop.f32.mrb[0].mxu0
        %v1219 = vadd.f32 %v1013, %v1218
        %1220 = vdwg.mxu0
        %v1221 = vmul.f32 %v1098, %v1098
        %v1222 = vmul.f32 %v1100, %v1100
        %v1223 = vmul.f32 %v1193, %v1193
        %v1224 = vmul.f32 %v1195, %v1195
        %v1225 = vmul.f32 %v1104, %v1104
        %v1226 = vmul.f32 %v1106, %v1106
        %v1227 = vmul.f32 %v1199, %v1199
        %v1228 = vmul.f32 %v1201, %v1201
        %v1229 = vmul.f32 %v1110, %v1110
        %v1230 = vmul.f32 %v1112, %v1112
        %v1231 = vmul.f32 %v1205, %v1205
        %v1232 = vmul.f32 %v1207, %v1207
        %v1233 = vmul.f32 %v1116, %v1116
        %v1234 = vmul.f32 %v1118, %v1118
        %v1235 = vmul.f32 %v1211, %v1211
        %v1236 = vmul.f32 %v1213, %v1213
        %v1237 = vadd.f32 %v1221, %v1225
        %v1238 = vadd.f32 %v1237, %v1229
        %v1239 = vadd.f32 %v1238, %v1233
        %v1240 = vrot.slane %v1239, 4
        %v1241 = vadd.f32 %v1239, %v1240
        %v1242 = vrot.slane %v1241, 2
        %v1243 = vadd.f32 %v1241, %v1242
        %v1244 = vrot.slane %v1243, 1
        %v1245 = vadd.f32 %v1243, %v1244
        %v1246 = vadd.f32 %v1222, %v1226
        %v1247 = vadd.f32 %v1246, %v1230
        %v1248 = vadd.f32 %v1247, %v1234
        %v1249 = vrot.slane %v1248, 4
        %v1250 = vadd.f32 %v1248, %v1249
        %v1251 = vrot.slane %v1250, 2
        %v1252 = vadd.f32 %v1250, %v1251
        %v1253 = vrot.slane %v1252, 1
        %v1254 = vadd.f32 %v1252, %v1253
        %v1255 = vadd.f32 %v1223, %v1227
        %v1256 = vadd.f32 %v1255, %v1231
        %v1257 = vadd.f32 %v1256, %v1235
        %v1258 = vrot.slane %v1257, 4
        %v1259 = vadd.f32 %v1257, %v1258
        %v1260 = vrot.slane %v1259, 2
        %v1261 = vadd.f32 %v1259, %v1260
        %v1262 = vrot.slane %v1261, 1
        %v1263 = vadd.f32 %v1261, %v1262
        %v1264 = vadd.f32 %v1224, %v1228
        %v1265 = vadd.f32 %v1264, %v1232
        %v1266 = vadd.f32 %v1265, %v1236
        %v1267 = vrot.slane %v1266, 4
        %v1268 = vadd.f32 %v1266, %v1267
        %v1269 = vrot.slane %v1268, 2
        %v1270 = vadd.f32 %v1268, %v1269
        %v1271 = vrot.slane %v1270, 1
        %v1272 = vadd.f32 %v1270, %v1271
        %v1273 = vmul.f32 %v1245, 0.03125
        %v1274 = vmul.f32 %v1254, 0.03125
        %v1275 = vmul.f32 %v1263, 0.03125
        %v1276 = vmul.f32 %v1272, 0.03125
        %v1277 = vmul.f32 %v1122, %v1122
        %v1278 = vmul.f32 %v1124, %v1124
        %v1279 = vmul.f32 %v1217, %v1217
        %v1280 = vmul.f32 %v1219, %v1219
        %v1281 = vsub.f32 %v1273, %v1277
        %v1282 = vsub.f32 %v1274, %v1278
        %v1283 = vsub.f32 %v1275, %v1279
        %v1284 = vsub.f32 %v1276, %v1280
        %v1285 = vmax.f32 %v1281, 0.0
        %v1286 = vmax.f32 %v1282, 0.0
        %v1287 = vmax.f32 %v1283, 0.0
        %v1288 = vmax.f32 %v1284, 0.0
        %v1289 = vlaneseq
        %v1290 = vshrl.u32 %v1289, 7
        %v1291 = vsub.s32 0, %v1290
        %v1292 = vrot.slane %v1122, %v1291
        %v1293 = vlaneseq
        %v1294 = vshrl.u32 %v1293, 7
        %v1295 = vsub.s32 0, %v1294
        %v1296 = vrot.slane %v1124, %v1295
        %v1297 = vlaneseq
        %v1298 = vshrl.u32 %v1297, 7
        %v1299 = vsub.s32 0, %v1298
        %v1300 = vrot.slane %v1217, %v1299
        %v1301 = vlaneseq
        %v1302 = vshrl.u32 %v1301, 7
        %v1303 = vsub.s32 0, %v1302
        %v1304 = vrot.slane %v1219, %v1303
        %v1305 = vsub.f32 %v1098, %v1292
        %v1306 = vsub.f32 %v1100, %v1296
        %v1307 = vsub.f32 %v1193, %v1300
        %v1308 = vsub.f32 %v1195, %v1304
        %v1309 = vsub.f32 %v1104, %v1292
        %v1310 = vsub.f32 %v1106, %v1296
        %v1311 = vsub.f32 %v1199, %v1300
        %v1312 = vsub.f32 %v1201, %v1304
        %v1313 = vsub.f32 %v1110, %v1292
        %v1314 = vsub.f32 %v1112, %v1296
        %v1315 = vsub.f32 %v1205, %v1300
        %v1316 = vsub.f32 %v1207, %v1304
        %v1317 = vsub.f32 %v1116, %v1292
        %v1318 = vsub.f32 %v1118, %v1296
        %v1319 = vsub.f32 %v1211, %v1300
        %v1320 = vsub.f32 %v1213, %v1304
        %v1321 = vadd.f32 %v1285, 1e-05
        %v1322 = vadd.f32 %v1286, 1e-05
        %v1323 = vadd.f32 %v1287, 1e-05
        %v1324 = vadd.f32 %v1288, 1e-05
        %v1325 = vrsqrt.pop %v1321
        %v1326 = vrsqrt.pop %v1322
        %v1327 = vrsqrt.pop %v1323
        %v1328 = vrsqrt.pop %v1324
        %v1329 = vlaneseq
        %v1330 = vshrl.u32 %v1329, 7
        %v1331 = vsub.s32 0, %v1330
        %v1332 = vrot.slane %v1325, %v1331
        %v1333 = vlaneseq
        %v1334 = vshrl.u32 %v1333, 7
        %v1335 = vsub.s32 0, %v1334
        %v1336 = vrot.slane %v1326, %v1335
        %v1337 = vlaneseq
        %v1338 = vshrl.u32 %v1337, 7
        %v1339 = vsub.s32 0, %v1338
        %v1340 = vrot.slane %v1327, %v1339
        %v1341 = vlaneseq
        %v1342 = vshrl.u32 %v1341, 7
        %v1343 = vsub.s32 0, %v1342
        %v1344 = vrot.slane %v1328, %v1343
        %v1345 = vmul.f32 %v1305, %v1332
        %v1346 = vmul.f32 %v1306, %v1336
        %v1347 = vmul.f32 %v1307, %v1340
        %v1348 = vmul.f32 %v1308, %v1344
        %v1349 = vmul.f32 %v1309, %v1332
        %v1350 = vmul.f32 %v1310, %v1336
        %v1351 = vmul.f32 %v1311, %v1340
        %v1352 = vmul.f32 %v1312, %v1344
        %v1353 = vmul.f32 %v1313, %v1332
        %v1354 = vmul.f32 %v1314, %v1336
        %v1355 = vmul.f32 %v1315, %v1340
        %v1356 = vmul.f32 %v1316, %v1344
        %v1357 = vmul.f32 %v1317, %v1332
        %v1358 = vmul.f32 %v1318, %v1336
        %v1359 = vmul.f32 %v1319, %v1340
        %v1360 = vmul.f32 %v1320, %v1344
        %1361 = vset.pattern.permute.xlu0 4
        %1362 = vperm.xlu0 %1361, %v273
        %v1363 = vpop.permute.xlu0 %1362
        %1365 = vset.pattern.permute.xlu0 4
        %1366 = vperm.xlu0 %1365, %v274
        %v1367 = vpop.permute.xlu0 %1366
        %1369 = vset.pattern.permute.xlu0 4
        %1370 = vperm.xlu0 %1369, %v275
        %v1371 = vpop.permute.xlu0 %1370
        %1373 = vset.pattern.permute.xlu0 4
        %1374 = vperm.xlu0 %1373, %v276
        %v1375 = vpop.permute.xlu0 %1374
        %v1377 = vmul.f32 %v1345, %v1363
        %v1378 = vmul.f32 %v1346, %v1363
        %v1379 = vmul.f32 %v1347, %v1363
        %v1380 = vmul.f32 %v1348, %v1363
        %v1381 = vmul.f32 %v1349, %v1367
        %v1382 = vmul.f32 %v1350, %v1367
        %v1383 = vmul.f32 %v1351, %v1367
        %v1384 = vmul.f32 %v1352, %v1367
        %v1385 = vmul.f32 %v1353, %v1371
        %v1386 = vmul.f32 %v1354, %v1371
        %v1387 = vmul.f32 %v1355, %v1371
        %v1388 = vmul.f32 %v1356, %v1371
        %v1389 = vmul.f32 %v1357, %v1375
        %v1390 = vmul.f32 %v1358, %v1375
        %v1391 = vmul.f32 %v1359, %v1375
        %v1392 = vmul.f32 %v1360, %v1375
        %1393 = vset.pattern.permute.xlu0 5
        %1394 = vperm.xlu0 %1393, %v273
        %v1395 = vpop.permute.xlu0 %1394
        %1397 = vset.pattern.permute.xlu0 5
        %1398 = vperm.xlu0 %1397, %v274
        %v1399 = vpop.permute.xlu0 %1398
        %1401 = vset.pattern.permute.xlu0 5
        %1402 = vperm.xlu0 %1401, %v275
        %v1403 = vpop.permute.xlu0 %1402
        %1405 = vset.pattern.permute.xlu0 5
        %1406 = vperm.xlu0 %1405, %v276
        %v1407 = vpop.permute.xlu0 %1406
        %v1409 = vadd.f32 %v1377, %v1395
        %v1410 = vadd.f32 %v1378, %v1395
        %v1411 = vadd.f32 %v1379, %v1395
        %v1412 = vadd.f32 %v1380, %v1395
        %v1413 = vadd.f32 %v1381, %v1399
        %v1414 = vadd.f32 %v1382, %v1399
        %v1415 = vadd.f32 %v1383, %v1399
        %v1416 = vadd.f32 %v1384, %v1399
        %v1417 = vadd.f32 %v1385, %v1403
        %v1418 = vadd.f32 %v1386, %v1403
        %v1419 = vadd.f32 %v1387, %v1403
        %v1420 = vadd.f32 %v1388, %v1403
        %v1421 = vadd.f32 %v1389, %v1407
        %v1422 = vadd.f32 %v1390, %v1407
        %v1423 = vadd.f32 %v1391, %v1407
        %v1424 = vadd.f32 %v1392, %v1407
        %v1425 = vtanh.pop %v1409
        %v1426 = vtanh.pop %v1410
        %v1427 = vtanh.pop %v1411
        %v1428 = vtanh.pop %v1412
        %v1429 = vtanh.pop %v1413
        %v1430 = vtanh.pop %v1414
        %v1431 = vtanh.pop %v1415
        %v1432 = vtanh.pop %v1416
        %v1433 = vtanh.pop %v1417
        %v1434 = vtanh.pop %v1418
        %v1435 = vtanh.pop %v1419
        %v1436 = vtanh.pop %v1420
        %v1437 = vtanh.pop %v1421
        %v1438 = vtanh.pop %v1422
        %v1439 = vtanh.pop %v1423
        %v1440 = vtanh.pop %v1424
        %v1441 = vld [vmem:[%s3] sm:$0xff]
        %v1442 = vld [vmem:[%s3 + $0x8] sm:$0xff]
        %v1443 = vld [vmem:[%s3 + $0x10] sm:$0xff]
        %v1444 = vld [vmem:[%s3 + $0x18] sm:$0xff]
        %v1445 = vld [vmem:[%s3 + $0x20] sm:$0xff]
        %1446 = vset.pattern.permute.xlu0 6
        %1447 = vperm.xlu0 %1446, %v273
        %v1448 = vpop.permute.xlu0 %1447
        %1450 = vset.pattern.permute.xlu0 6
        %1451 = vperm.xlu0 %1450, %v274
        %v1452 = vpop.permute.xlu0 %1451
        %1454 = vset.pattern.permute.xlu0 6
        %1455 = vperm.xlu0 %1454, %v275
        %v1456 = vpop.permute.xlu0 %1455
        %1458 = vset.pattern.permute.xlu0 6
        %1459 = vperm.xlu0 %1458, %v276
        %v1460 = vpop.permute.xlu0 %1459
        %1462 = vset.pattern.permute.xlu0 6
        %1463 = vperm.xlu0 %1462, %v277
        %v1464 = vpop.permute.xlu0 %1463
        %v1467 = vsel %vm1015, %v1441, 0
        %v1470 = vsel %vm1015, %v1442, 0
        %v1473 = vsel %vm1015, %v1443, 0
        %v1476 = vsel %vm1015, %v1444, 0
        %v1479 = vsel %vm1015, %v1445, 0
        %1481 = vmatprep.subr.mxu0 %v1426
        %1482 = vmatpush1.msra.mxu0 %v1425
        %1483 = vmatprep.subr.mxu0 %v1430
        %1484 = vmatpush1.msra.mxu0 %v1429
        %1485 = vmatprep.subr.mxu0 %v1434
        %1486 = vmatpush1.msra.mxu0 %v1433
        %1487 = vmatprep.subr.mxu0 %v1438
        %1488 = vmatpush1.msra.mxu0 %v1437
        %1489 = vmatprep.subr.mxu0 0.0
        %1490 = vmatpush1.msra.mxu0 0.0
        %1491 = vmatprep.subr.mxu0 0.0
        %1492 = vmatpush1.msra.mxu0 0.0
        %1493 = vmatprep.subr.mxu0 0.0
        %1494 = vmatpush1.msra.mxu0 0.0
        %1495 = vmatprep.subr.mxu0 0.0
        %1496 = vmatpush1.msra.mxu0 0.0
        %1497 = vmatprep.subr.mxu0 0.0
        %1498 = vmatpush1.msra.mxu0 0.0
        %1499 = vmatprep.subr.mxu0 0.0
        %1500 = vmatpush1.msra.mxu0 0.0
        %1501 = vmatprep.subr.mxu0 0.0
        %1502 = vmatpush1.msra.mxu0 0.0
        %1503 = vmatprep.subr.mxu0 0.0
        %1504 = vmatpush1.msra.mxu0 0.0
        %1505 = vmatprep.subr.mxu0 0.0
        %1506 = vmatpush1.msra.mxu0 0.0
        %1507 = vmatprep.subr.mxu0 0.0
        %1508 = vmatpush1.msra.mxu0 0.0
        %1509 = vmatprep.subr.mxu0 0.0
        %1510 = vmatpush1.msra.mxu0 0.0
        %1511 = vmatprep.subr.mxu0 0.0
        %1512 = vmatpush1.msra.mxu0 0.0
        %1513 = vmatprep.subr.mxu0 0.0
        %1514 = vmatpush1.msra.mxu0 0.0
        %1515 = vmatprep.subr.mxu0 0.0
        %1516 = vmatpush1.msra.mxu0 0.0
        %1517 = vmatprep.subr.mxu0 0.0
        %1518 = vmatpush1.msra.mxu0 0.0
        %1519 = vmatprep.subr.mxu0 0.0
        %1520 = vmatpush1.msra.mxu0 0.0
        %1521 = vmatprep.subr.mxu0 0.0
        %1522 = vmatpush1.msra.mxu0 0.0
        %1523 = vmatprep.subr.mxu0 0.0
        %1524 = vmatpush1.msra.mxu0 0.0
        %1525 = vmatprep.subr.mxu0 0.0
        %1526 = vmatpush1.msra.mxu0 0.0
        %1527 = vmatprep.subr.mxu0 0.0
        %1528 = vmatpush1.msra.mxu0 0.0
        %1529 = vmatprep.subr.mxu0 0.0
        %1530 = vmatpush1.msra.mxu0 0.0
        %1531 = vmatprep.subr.mxu0 0.0
        %1532 = vmatpush1.msra.mxu0 0.0
        %1533 = vmatprep.subr.mxu0 0.0
        %1534 = vmatpush1.msra.mxu0 0.0
        %1535 = vmatprep.subr.mxu0 0.0
        %1536 = vmatpush1.msra.mxu0 0.0
        %1537 = vmatprep.subr.mxu0 0.0
        %1538 = vmatpush1.msra.mxu0 0.0
        %1539 = vmatprep.subr.mxu0 0.0
        %1540 = vmatpush1.msra.mxu0 0.0
        %1541 = vmatprep.subr.mxu0 0.0
        %1542 = vmatpush1.msra.mxu0 0.0
        %1543 = vmatprep.subr.mxu0 0.0
        %1544 = vmatpush1.msra.mxu0 0.0
        %1545 = vmatprep.mubr.f32.mxu0 0.0
        %1546 = vmatmul.mubr.f32.gmra.mrb[0].mxu0 %v1467
        %v1547 = vpop.f32.mrb[0].mxu0
        %v1548 = vadd.f32 %v1448, %v1547
        %v1549 = vpop.f32.mrb[0].mxu0
        %v1550 = vadd.f32 %v1448, %v1549
        %1551 = vmatprep.mubr.f32.mxu0 0.0
        %1552 = vmatmul.mubr.f32.gmra.mrb[0].mxu0 %v1470
        %v1553 = vpop.f32.mrb[0].mxu0
        %v1554 = vadd.f32 %v1452, %v1553
        %v1555 = vpop.f32.mrb[0].mxu0
        %v1556 = vadd.f32 %v1452, %v1555
        %1557 = vmatprep.mubr.f32.mxu0 0.0
        %1558 = vmatmul.mubr.f32.gmra.mrb[0].mxu0 %v1473
        %v1559 = vpop.f32.mrb[0].mxu0
        %v1560 = vadd.f32 %v1456, %v1559
        %v1561 = vpop.f32.mrb[0].mxu0
        %v1562 = vadd.f32 %v1456, %v1561
        %1563 = vmatprep.mubr.f32.mxu0 0.0
        %1564 = vmatmul.mubr.f32.gmra.mrb[0].mxu0 %v1476
        %v1565 = vpop.f32.mrb[0].mxu0
        %v1566 = vadd.f32 %v1460, %v1565
        %v1567 = vpop.f32.mrb[0].mxu0
        %v1568 = vadd.f32 %v1460, %v1567
        %1569 = vmatprep.mubr.f32.mxu0 0.0
        %1570 = vmatmul.mubr.f32.gmra.mrb[0].mxu0 %v1479
        %v1571 = vpop.f32.mrb[0].mxu0
        %v1572 = vadd.f32 %v1464, %v1571
        %v1573 = vpop.f32.mrb[0].mxu0
        %v1574 = vadd.f32 %v1464, %v1573
        %1575 = vdwg.mxu0
        %1576 = vmatprep.subr.mxu0 %v1428
        %1577 = vmatpush1.msra.mxu0 %v1427
        %1578 = vmatprep.subr.mxu0 %v1432
        %1579 = vmatpush1.msra.mxu0 %v1431
        %1580 = vmatprep.subr.mxu0 %v1436
        %1581 = vmatpush1.msra.mxu0 %v1435
        %1582 = vmatprep.subr.mxu0 %v1440
        %1583 = vmatpush1.msra.mxu0 %v1439
        %1584 = vmatprep.subr.mxu0 0.0
        %1585 = vmatpush1.msra.mxu0 0.0
        %1586 = vmatprep.subr.mxu0 0.0
        %1587 = vmatpush1.msra.mxu0 0.0
        %1588 = vmatprep.subr.mxu0 0.0
        %1589 = vmatpush1.msra.mxu0 0.0
        %1590 = vmatprep.subr.mxu0 0.0
        %1591 = vmatpush1.msra.mxu0 0.0
        %1592 = vmatprep.subr.mxu0 0.0
        %1593 = vmatpush1.msra.mxu0 0.0
        %1594 = vmatprep.subr.mxu0 0.0
        %1595 = vmatpush1.msra.mxu0 0.0
        %1596 = vmatprep.subr.mxu0 0.0
        %1597 = vmatpush1.msra.mxu0 0.0
        %1598 = vmatprep.subr.mxu0 0.0
        %1599 = vmatpush1.msra.mxu0 0.0
        %1600 = vmatprep.subr.mxu0 0.0
        %1601 = vmatpush1.msra.mxu0 0.0
        %1602 = vmatprep.subr.mxu0 0.0
        %1603 = vmatpush1.msra.mxu0 0.0
        %1604 = vmatprep.subr.mxu0 0.0
        %1605 = vmatpush1.msra.mxu0 0.0
        %1606 = vmatprep.subr.mxu0 0.0
        %1607 = vmatpush1.msra.mxu0 0.0
        %1608 = vmatprep.subr.mxu0 0.0
        %1609 = vmatpush1.msra.mxu0 0.0
        %1610 = vmatprep.subr.mxu0 0.0
        %1611 = vmatpush1.msra.mxu0 0.0
        %1612 = vmatprep.subr.mxu0 0.0
        %1613 = vmatpush1.msra.mxu0 0.0
        %1614 = vmatprep.subr.mxu0 0.0
        %1615 = vmatpush1.msra.mxu0 0.0
        %1616 = vmatprep.subr.mxu0 0.0
        %1617 = vmatpush1.msra.mxu0 0.0
        %1618 = vmatprep.subr.mxu0 0.0
        %1619 = vmatpush1.msra.mxu0 0.0
        %1620 = vmatprep.subr.mxu0 0.0
        %1621 = vmatpush1.msra.mxu0 0.0
        %1622 = vmatprep.subr.mxu0 0.0
        %1623 = vmatpush1.msra.mxu0 0.0
        %1624 = vmatprep.subr.mxu0 0.0
        %1625 = vmatpush1.msra.mxu0 0.0
        %1626 = vmatprep.subr.mxu0 0.0
        %1627 = vmatpush1.msra.mxu0 0.0
        %1628 = vmatprep.subr.mxu0 0.0
        %1629 = vmatpush1.msra.mxu0 0.0
        %1630 = vmatprep.subr.mxu0 0.0
        %1631 = vmatpush1.msra.mxu0 0.0
        %1632 = vmatprep.subr.mxu0 0.0
        %1633 = vmatpush1.msra.mxu0 0.0
        %1634 = vmatprep.subr.mxu0 0.0
        %1635 = vmatpush1.msra.mxu0 0.0
        %1636 = vmatprep.subr.mxu0 0.0
        %1637 = vmatpush1.msra.mxu0 0.0
        %1638 = vmatprep.subr.mxu0 0.0
        %1639 = vmatpush1.msra.mxu0 0.0
        %1640 = vmatprep.mubr.f32.mxu0 0.0
        %1641 = vmatmul.mubr.f32.gmra.mrb[0].mxu0 %v1467
        %v1642 = vpop.f32.mrb[0].mxu0
        %v1643 = vadd.f32 %v1448, %v1642
        %v1644 = vpop.f32.mrb[0].mxu0
        %v1645 = vadd.f32 %v1448, %v1644
        %1646 = vmatprep.mubr.f32.mxu0 0.0
        %1647 = vmatmul.mubr.f32.gmra.mrb[0].mxu0 %v1470
        %v1648 = vpop.f32.mrb[0].mxu0
        %v1649 = vadd.f32 %v1452, %v1648
        %v1650 = vpop.f32.mrb[0].mxu0
        %v1651 = vadd.f32 %v1452, %v1650
        %1652 = vmatprep.mubr.f32.mxu0 0.0
        %1653 = vmatmul.mubr.f32.gmra.mrb[0].mxu0 %v1473
        %v1654 = vpop.f32.mrb[0].mxu0
        %v1655 = vadd.f32 %v1456, %v1654
        %v1656 = vpop.f32.mrb[0].mxu0
        %v1657 = vadd.f32 %v1456, %v1656
        %1658 = vmatprep.mubr.f32.mxu0 0.0
        %1659 = vmatmul.mubr.f32.gmra.mrb[0].mxu0 %v1476
        %v1660 = vpop.f32.mrb[0].mxu0
        %v1661 = vadd.f32 %v1460, %v1660
        %v1662 = vpop.f32.mrb[0].mxu0
        %v1663 = vadd.f32 %v1460, %v1662
        %1664 = vmatprep.mubr.f32.mxu0 0.0
        %1665 = vmatmul.mubr.f32.gmra.mrb[0].mxu0 %v1479
        %v1666 = vpop.f32.mrb[0].mxu0
        %v1667 = vadd.f32 %v1464, %v1666
        %v1668 = vpop.f32.mrb[0].mxu0
        %v1669 = vadd.f32 %v1464, %v1668
        %1670 = vdwg.mxu0
        %v1671 = vmul.f32 %v1548, %v1548
        %v1672 = vmul.f32 %v1550, %v1550
        %v1673 = vmul.f32 %v1643, %v1643
        %v1674 = vmul.f32 %v1645, %v1645
        %v1675 = vmul.f32 %v1554, %v1554
        %v1676 = vmul.f32 %v1556, %v1556
        %v1677 = vmul.f32 %v1649, %v1649
        %v1678 = vmul.f32 %v1651, %v1651
        %v1679 = vmul.f32 %v1560, %v1560
        %v1680 = vmul.f32 %v1562, %v1562
        %v1681 = vmul.f32 %v1655, %v1655
        %v1682 = vmul.f32 %v1657, %v1657
        %v1683 = vmul.f32 %v1566, %v1566
        %v1684 = vmul.f32 %v1568, %v1568
        %v1685 = vmul.f32 %v1661, %v1661
        %v1686 = vmul.f32 %v1663, %v1663
        %v1687 = vadd.f32 %v1671, %v1675
        %v1688 = vadd.f32 %v1687, %v1679
        %v1689 = vadd.f32 %v1688, %v1683
        %v1690 = vrot.slane %v1689, 4
        %v1691 = vadd.f32 %v1689, %v1690
        %v1692 = vrot.slane %v1691, 2
        %v1693 = vadd.f32 %v1691, %v1692
        %v1694 = vrot.slane %v1693, 1
        %v1695 = vadd.f32 %v1693, %v1694
        %v1696 = vadd.f32 %v1672, %v1676
        %v1697 = vadd.f32 %v1696, %v1680
        %v1698 = vadd.f32 %v1697, %v1684
        %v1699 = vrot.slane %v1698, 4
        %v1700 = vadd.f32 %v1698, %v1699
        %v1701 = vrot.slane %v1700, 2
        %v1702 = vadd.f32 %v1700, %v1701
        %v1703 = vrot.slane %v1702, 1
        %v1704 = vadd.f32 %v1702, %v1703
        %v1705 = vadd.f32 %v1673, %v1677
        %v1706 = vadd.f32 %v1705, %v1681
        %v1707 = vadd.f32 %v1706, %v1685
        %v1708 = vrot.slane %v1707, 4
        %v1709 = vadd.f32 %v1707, %v1708
        %v1710 = vrot.slane %v1709, 2
        %v1711 = vadd.f32 %v1709, %v1710
        %v1712 = vrot.slane %v1711, 1
        %v1713 = vadd.f32 %v1711, %v1712
        %v1714 = vadd.f32 %v1674, %v1678
        %v1715 = vadd.f32 %v1714, %v1682
        %v1716 = vadd.f32 %v1715, %v1686
        %v1717 = vrot.slane %v1716, 4
        %v1718 = vadd.f32 %v1716, %v1717
        %v1719 = vrot.slane %v1718, 2
        %v1720 = vadd.f32 %v1718, %v1719
        %v1721 = vrot.slane %v1720, 1
        %v1722 = vadd.f32 %v1720, %v1721
        %v1723 = vmul.f32 %v1695, 0.03125
        %v1724 = vmul.f32 %v1704, 0.03125
        %v1725 = vmul.f32 %v1713, 0.03125
        %v1726 = vmul.f32 %v1722, 0.03125
        %v1727 = vmul.f32 %v1572, %v1572
        %v1728 = vmul.f32 %v1574, %v1574
        %v1729 = vmul.f32 %v1667, %v1667
        %v1730 = vmul.f32 %v1669, %v1669
        %v1731 = vsub.f32 %v1723, %v1727
        %v1732 = vsub.f32 %v1724, %v1728
        %v1733 = vsub.f32 %v1725, %v1729
        %v1734 = vsub.f32 %v1726, %v1730
        %v1735 = vmax.f32 %v1731, 0.0
        %v1736 = vmax.f32 %v1732, 0.0
        %v1737 = vmax.f32 %v1733, 0.0
        %v1738 = vmax.f32 %v1734, 0.0
        %v1739 = vlaneseq
        %v1740 = vshrl.u32 %v1739, 7
        %v1741 = vsub.s32 0, %v1740
        %v1742 = vrot.slane %v1572, %v1741
        %v1743 = vlaneseq
        %v1744 = vshrl.u32 %v1743, 7
        %v1745 = vsub.s32 0, %v1744
        %v1746 = vrot.slane %v1574, %v1745
        %v1747 = vlaneseq
        %v1748 = vshrl.u32 %v1747, 7
        %v1749 = vsub.s32 0, %v1748
        %v1750 = vrot.slane %v1667, %v1749
        %v1751 = vlaneseq
        %v1752 = vshrl.u32 %v1751, 7
        %v1753 = vsub.s32 0, %v1752
        %v1754 = vrot.slane %v1669, %v1753
        %v1755 = vsub.f32 %v1548, %v1742
        %v1756 = vsub.f32 %v1550, %v1746
        %v1757 = vsub.f32 %v1643, %v1750
        %v1758 = vsub.f32 %v1645, %v1754
        %v1759 = vsub.f32 %v1554, %v1742
        %v1760 = vsub.f32 %v1556, %v1746
        %v1761 = vsub.f32 %v1649, %v1750
        %v1762 = vsub.f32 %v1651, %v1754
        %v1763 = vsub.f32 %v1560, %v1742
        %v1764 = vsub.f32 %v1562, %v1746
        %v1765 = vsub.f32 %v1655, %v1750
        %v1766 = vsub.f32 %v1657, %v1754
        %v1767 = vsub.f32 %v1566, %v1742
        %v1768 = vsub.f32 %v1568, %v1746
        %v1769 = vsub.f32 %v1661, %v1750
        %v1770 = vsub.f32 %v1663, %v1754
        %v1771 = vadd.f32 %v1735, 1e-05
        %v1772 = vadd.f32 %v1736, 1e-05
        %v1773 = vadd.f32 %v1737, 1e-05
        %v1774 = vadd.f32 %v1738, 1e-05
        %v1775 = vrsqrt.pop %v1771
        %v1776 = vrsqrt.pop %v1772
        %v1777 = vrsqrt.pop %v1773
        %v1778 = vrsqrt.pop %v1774
        %v1779 = vlaneseq
        %v1780 = vshrl.u32 %v1779, 7
        %v1781 = vsub.s32 0, %v1780
        %v1782 = vrot.slane %v1775, %v1781
        %v1783 = vlaneseq
        %v1784 = vshrl.u32 %v1783, 7
        %v1785 = vsub.s32 0, %v1784
        %v1786 = vrot.slane %v1776, %v1785
        %v1787 = vlaneseq
        %v1788 = vshrl.u32 %v1787, 7
        %v1789 = vsub.s32 0, %v1788
        %v1790 = vrot.slane %v1777, %v1789
        %v1791 = vlaneseq
        %v1792 = vshrl.u32 %v1791, 7
        %v1793 = vsub.s32 0, %v1792
        %v1794 = vrot.slane %v1778, %v1793
        %v1795 = vmul.f32 %v1755, %v1782
        %v1796 = vmul.f32 %v1756, %v1786
        %v1797 = vmul.f32 %v1757, %v1790
        %v1798 = vmul.f32 %v1758, %v1794
        %v1799 = vmul.f32 %v1759, %v1782
        %v1800 = vmul.f32 %v1760, %v1786
        %v1801 = vmul.f32 %v1761, %v1790
        %v1802 = vmul.f32 %v1762, %v1794
        %v1803 = vmul.f32 %v1763, %v1782
        %v1804 = vmul.f32 %v1764, %v1786
        %v1805 = vmul.f32 %v1765, %v1790
        %v1806 = vmul.f32 %v1766, %v1794
        %v1807 = vmul.f32 %v1767, %v1782
        %v1808 = vmul.f32 %v1768, %v1786
        %v1809 = vmul.f32 %v1769, %v1790
        %v1810 = vmul.f32 %v1770, %v1794
        %1811 = vset.pattern.permute.xlu0 7
        %1812 = vperm.xlu0 %1811, %v273
        %v1813 = vpop.permute.xlu0 %1812
        %1815 = vset.pattern.permute.xlu0 7
        %1816 = vperm.xlu0 %1815, %v274
        %v1817 = vpop.permute.xlu0 %1816
        %1819 = vset.pattern.permute.xlu0 7
        %1820 = vperm.xlu0 %1819, %v275
        %v1821 = vpop.permute.xlu0 %1820
        %1823 = vset.pattern.permute.xlu0 7
        %1824 = vperm.xlu0 %1823, %v276
        %v1825 = vpop.permute.xlu0 %1824
        %v1827 = vmul.f32 %v1795, %v1813
        %v1828 = vmul.f32 %v1796, %v1813
        %v1829 = vmul.f32 %v1797, %v1813
        %v1830 = vmul.f32 %v1798, %v1813
        %v1831 = vmul.f32 %v1799, %v1817
        %v1832 = vmul.f32 %v1800, %v1817
        %v1833 = vmul.f32 %v1801, %v1817
        %v1834 = vmul.f32 %v1802, %v1817
        %v1835 = vmul.f32 %v1803, %v1821
        %v1836 = vmul.f32 %v1804, %v1821
        %v1837 = vmul.f32 %v1805, %v1821
        %v1838 = vmul.f32 %v1806, %v1821
        %v1839 = vmul.f32 %v1807, %v1825
        %v1840 = vmul.f32 %v1808, %v1825
        %v1841 = vmul.f32 %v1809, %v1825
        %v1842 = vmul.f32 %v1810, %v1825
        %1843 = vset.pattern.permute.xlu0 8
        %1844 = vperm.xlu0 %1843, %v273
        %v1845 = vpop.permute.xlu0 %1844
        %1847 = vset.pattern.permute.xlu0 8
        %1848 = vperm.xlu0 %1847, %v274
        %v1849 = vpop.permute.xlu0 %1848
        %1851 = vset.pattern.permute.xlu0 8
        %1852 = vperm.xlu0 %1851, %v275
        %v1853 = vpop.permute.xlu0 %1852
        %1855 = vset.pattern.permute.xlu0 8
        %1856 = vperm.xlu0 %1855, %v276
        %v1857 = vpop.permute.xlu0 %1856
        %v1859 = vadd.f32 %v1827, %v1845
        %v1860 = vadd.f32 %v1828, %v1845
        %v1861 = vadd.f32 %v1829, %v1845
        %v1862 = vadd.f32 %v1830, %v1845
        %v1863 = vadd.f32 %v1831, %v1849
        %v1864 = vadd.f32 %v1832, %v1849
        %v1865 = vadd.f32 %v1833, %v1849
        %v1866 = vadd.f32 %v1834, %v1849
        %v1867 = vadd.f32 %v1835, %v1853
        %v1868 = vadd.f32 %v1836, %v1853
        %v1869 = vadd.f32 %v1837, %v1853
        %v1870 = vadd.f32 %v1838, %v1853
        %v1871 = vadd.f32 %v1839, %v1857
        %v1872 = vadd.f32 %v1840, %v1857
        %v1873 = vadd.f32 %v1841, %v1857
        %v1874 = vadd.f32 %v1842, %v1857
        %v1875 = vtanh.pop %v1859
        %v1876 = vtanh.pop %v1860
        %v1877 = vtanh.pop %v1861
        %v1878 = vtanh.pop %v1862
        %v1879 = vtanh.pop %v1863
        %v1880 = vtanh.pop %v1864
        %v1881 = vtanh.pop %v1865
        %v1882 = vtanh.pop %v1866
        %v1883 = vtanh.pop %v1867
        %v1884 = vtanh.pop %v1868
        %v1885 = vtanh.pop %v1869
        %v1886 = vtanh.pop %v1870
        %v1887 = vtanh.pop %v1871
        %v1888 = vtanh.pop %v1872
        %v1889 = vtanh.pop %v1873
        %v1890 = vtanh.pop %v1874
        %v1891 = vld [vmem:[%s4] sm:$0xff]
        %v1892 = vld [vmem:[%s4 + $0x8] sm:$0xff]
        %v1893 = vld [vmem:[%s4 + $0x10] sm:$0xff]
        %v1894 = vld [vmem:[%s4 + $0x18] sm:$0xff]
        %v1895 = vld [vmem:[%s4 + $0x20] sm:$0xff]
        %1896 = vset.pattern.permute.xlu0 9
        %1897 = vperm.xlu0 %1896, %v273
        %v1898 = vpop.permute.xlu0 %1897
        %1900 = vset.pattern.permute.xlu0 9
        %1901 = vperm.xlu0 %1900, %v274
        %v1902 = vpop.permute.xlu0 %1901
        %1904 = vset.pattern.permute.xlu0 9
        %1905 = vperm.xlu0 %1904, %v275
        %v1906 = vpop.permute.xlu0 %1905
        %1908 = vset.pattern.permute.xlu0 9
        %1909 = vperm.xlu0 %1908, %v276
        %v1910 = vpop.permute.xlu0 %1909
        %1912 = vset.pattern.permute.xlu0 9
        %1913 = vperm.xlu0 %1912, %v277
        %v1914 = vpop.permute.xlu0 %1913
        %v1917 = vsel %vm1015, %v1891, 0
        %v1920 = vsel %vm1015, %v1892, 0
        %v1923 = vsel %vm1015, %v1893, 0
        %v1926 = vsel %vm1015, %v1894, 0
        %v1929 = vsel %vm1015, %v1895, 0
        %1931 = vmatprep.subr.mxu0 %v1876
        %1932 = vmatpush1.msra.mxu0 %v1875
        %1933 = vmatprep.subr.mxu0 %v1880
        %1934 = vmatpush1.msra.mxu0 %v1879
        %1935 = vmatprep.subr.mxu0 %v1884
        %1936 = vmatpush1.msra.mxu0 %v1883
        %1937 = vmatprep.subr.mxu0 %v1888
        %1938 = vmatpush1.msra.mxu0 %v1887
        %1939 = vmatprep.subr.mxu0 0.0
        %1940 = vmatpush1.msra.mxu0 0.0
        %1941 = vmatprep.subr.mxu0 0.0
        %1942 = vmatpush1.msra.mxu0 0.0
        %1943 = vmatprep.subr.mxu0 0.0
        %1944 = vmatpush1.msra.mxu0 0.0
        %1945 = vmatprep.subr.mxu0 0.0
        %1946 = vmatpush1.msra.mxu0 0.0
        %1947 = vmatprep.subr.mxu0 0.0
        %1948 = vmatpush1.msra.mxu0 0.0
        %1949 = vmatprep.subr.mxu0 0.0
        %1950 = vmatpush1.msra.mxu0 0.0
        %1951 = vmatprep.subr.mxu0 0.0
        %1952 = vmatpush1.msra.mxu0 0.0
        %1953 = vmatprep.subr.mxu0 0.0
        %1954 = vmatpush1.msra.mxu0 0.0
        %1955 = vmatprep.subr.mxu0 0.0
        %1956 = vmatpush1.msra.mxu0 0.0
        %1957 = vmatprep.subr.mxu0 0.0
        %1958 = vmatpush1.msra.mxu0 0.0
        %1959 = vmatprep.subr.mxu0 0.0
        %1960 = vmatpush1.msra.mxu0 0.0
        %1961 = vmatprep.subr.mxu0 0.0
        %1962 = vmatpush1.msra.mxu0 0.0
        %1963 = vmatprep.subr.mxu0 0.0
        %1964 = vmatpush1.msra.mxu0 0.0
        %1965 = vmatprep.subr.mxu0 0.0
        %1966 = vmatpush1.msra.mxu0 0.0
        %1967 = vmatprep.subr.mxu0 0.0
        %1968 = vmatpush1.msra.mxu0 0.0
        %1969 = vmatprep.subr.mxu0 0.0
        %1970 = vmatpush1.msra.mxu0 0.0
        %1971 = vmatprep.subr.mxu0 0.0
        %1972 = vmatpush1.msra.mxu0 0.0
        %1973 = vmatprep.subr.mxu0 0.0
        %1974 = vmatpush1.msra.mxu0 0.0
        %1975 = vmatprep.subr.mxu0 0.0
        %1976 = vmatpush1.msra.mxu0 0.0
        %1977 = vmatprep.subr.mxu0 0.0
        %1978 = vmatpush1.msra.mxu0 0.0
        %1979 = vmatprep.subr.mxu0 0.0
        %1980 = vmatpush1.msra.mxu0 0.0
        %1981 = vmatprep.subr.mxu0 0.0
        %1982 = vmatpush1.msra.mxu0 0.0
        %1983 = vmatprep.subr.mxu0 0.0
        %1984 = vmatpush1.msra.mxu0 0.0
        %1985 = vmatprep.subr.mxu0 0.0
        %1986 = vmatpush1.msra.mxu0 0.0
        %1987 = vmatprep.subr.mxu0 0.0
        %1988 = vmatpush1.msra.mxu0 0.0
        %1989 = vmatprep.subr.mxu0 0.0
        %1990 = vmatpush1.msra.mxu0 0.0
        %1991 = vmatprep.subr.mxu0 0.0
        %1992 = vmatpush1.msra.mxu0 0.0
        %1993 = vmatprep.subr.mxu0 0.0
        %1994 = vmatpush1.msra.mxu0 0.0
        %1995 = vmatprep.mubr.f32.mxu0 0.0
        %1996 = vmatmul.mubr.f32.gmra.mrb[0].mxu0 %v1917
        %v1997 = vpop.f32.mrb[0].mxu0
        %v1998 = vadd.f32 %v1898, %v1997
        %v1999 = vpop.f32.mrb[0].mxu0
        %v2000 = vadd.f32 %v1898, %v1999
        %2001 = vmatprep.mubr.f32.mxu0 0.0
        %2002 = vmatmul.mubr.f32.gmra.mrb[0].mxu0 %v1920
        %v2003 = vpop.f32.mrb[0].mxu0
        %v2004 = vadd.f32 %v1902, %v2003
        %v2005 = vpop.f32.mrb[0].mxu0
        %v2006 = vadd.f32 %v1902, %v2005
        %2007 = vmatprep.mubr.f32.mxu0 0.0
        %2008 = vmatmul.mubr.f32.gmra.mrb[0].mxu0 %v1923
        %v2009 = vpop.f32.mrb[0].mxu0
        %v2010 = vadd.f32 %v1906, %v2009
        %v2011 = vpop.f32.mrb[0].mxu0
        %v2012 = vadd.f32 %v1906, %v2011
        %2013 = vmatprep.mubr.f32.mxu0 0.0
        %2014 = vmatmul.mubr.f32.gmra.mrb[0].mxu0 %v1926
        %v2015 = vpop.f32.mrb[0].mxu0
        %v2016 = vadd.f32 %v1910, %v2015
        %v2017 = vpop.f32.mrb[0].mxu0
        %v2018 = vadd.f32 %v1910, %v2017
        %2019 = vmatprep.mubr.f32.mxu0 0.0
        %2020 = vmatmul.mubr.f32.gmra.mrb[0].mxu0 %v1929
        %v2021 = vpop.f32.mrb[0].mxu0
        %v2022 = vadd.f32 %v1914, %v2021
        %v2023 = vpop.f32.mrb[0].mxu0
        %v2024 = vadd.f32 %v1914, %v2023
        %2025 = vdwg.mxu0
        %2026 = vmatprep.subr.mxu0 %v1878
        %2027 = vmatpush1.msra.mxu0 %v1877
        %2028 = vmatprep.subr.mxu0 %v1882
        %2029 = vmatpush1.msra.mxu0 %v1881
        %2030 = vmatprep.subr.mxu0 %v1886
        %2031 = vmatpush1.msra.mxu0 %v1885
        %2032 = vmatprep.subr.mxu0 %v1890
        %2033 = vmatpush1.msra.mxu0 %v1889
        %2034 = vmatprep.subr.mxu0 0.0
        %2035 = vmatpush1.msra.mxu0 0.0
        %2036 = vmatprep.subr.mxu0 0.0
        %2037 = vmatpush1.msra.mxu0 0.0
        %2038 = vmatprep.subr.mxu0 0.0
        %2039 = vmatpush1.msra.mxu0 0.0
        %2040 = vmatprep.subr.mxu0 0.0
        %2041 = vmatpush1.msra.mxu0 0.0
        %2042 = vmatprep.subr.mxu0 0.0
        %2043 = vmatpush1.msra.mxu0 0.0
        %2044 = vmatprep.subr.mxu0 0.0
        %2045 = vmatpush1.msra.mxu0 0.0
        %2046 = vmatprep.subr.mxu0 0.0
        %2047 = vmatpush1.msra.mxu0 0.0
        %2048 = vmatprep.subr.mxu0 0.0
        %2049 = vmatpush1.msra.mxu0 0.0
        %2050 = vmatprep.subr.mxu0 0.0
        %2051 = vmatpush1.msra.mxu0 0.0
        %2052 = vmatprep.subr.mxu0 0.0
        %2053 = vmatpush1.msra.mxu0 0.0
        %2054 = vmatprep.subr.mxu0 0.0
        %2055 = vmatpush1.msra.mxu0 0.0
        %2056 = vmatprep.subr.mxu0 0.0
        %2057 = vmatpush1.msra.mxu0 0.0
        %2058 = vmatprep.subr.mxu0 0.0
        %2059 = vmatpush1.msra.mxu0 0.0
        %2060 = vmatprep.subr.mxu0 0.0
        %2061 = vmatpush1.msra.mxu0 0.0
        %2062 = vmatprep.subr.mxu0 0.0
        %2063 = vmatpush1.msra.mxu0 0.0
        %2064 = vmatprep.subr.mxu0 0.0
        %2065 = vmatpush1.msra.mxu0 0.0
        %2066 = vmatprep.subr.mxu0 0.0
        %2067 = vmatpush1.msra.mxu0 0.0
        %2068 = vmatprep.subr.mxu0 0.0
        %2069 = vmatpush1.msra.mxu0 0.0
        %2070 = vmatprep.subr.mxu0 0.0
        %2071 = vmatpush1.msra.mxu0 0.0
        %2072 = vmatprep.subr.mxu0 0.0
        %2073 = vmatpush1.msra.mxu0 0.0
        %2074 = vmatprep.subr.mxu0 0.0
        %2075 = vmatpush1.msra.mxu0 0.0
        %2076 = vmatprep.subr.mxu0 0.0
        %2077 = vmatpush1.msra.mxu0 0.0
        %2078 = vmatprep.subr.mxu0 0.0
        %2079 = vmatpush1.msra.mxu0 0.0
        %2080 = vmatprep.subr.mxu0 0.0
        %2081 = vmatpush1.msra.mxu0 0.0
        %2082 = vmatprep.subr.mxu0 0.0
        %2083 = vmatpush1.msra.mxu0 0.0
        %2084 = vmatprep.subr.mxu0 0.0
        %2085 = vmatpush1.msra.mxu0 0.0
        %2086 = vmatprep.subr.mxu0 0.0
        %2087 = vmatpush1.msra.mxu0 0.0
        %2088 = vmatprep.subr.mxu0 0.0
        %2089 = vmatpush1.msra.mxu0 0.0
        %2090 = vmatprep.mubr.f32.mxu0 0.0
        %2091 = vmatmul.mubr.f32.gmra.mrb[0].mxu0 %v1917
        %v2092 = vpop.f32.mrb[0].mxu0
        %v2093 = vadd.f32 %v1898, %v2092
        %v2094 = vpop.f32.mrb[0].mxu0
        %v2095 = vadd.f32 %v1898, %v2094
        %2096 = vmatprep.mubr.f32.mxu0 0.0
        %2097 = vmatmul.mubr.f32.gmra.mrb[0].mxu0 %v1920
        %v2098 = vpop.f32.mrb[0].mxu0
        %v2099 = vadd.f32 %v1902, %v2098
        %v2100 = vpop.f32.mrb[0].mxu0
        %v2101 = vadd.f32 %v1902, %v2100
        %2102 = vmatprep.mubr.f32.mxu0 0.0
        %2103 = vmatmul.mubr.f32.gmra.mrb[0].mxu0 %v1923
        %v2104 = vpop.f32.mrb[0].mxu0
        %v2105 = vadd.f32 %v1906, %v2104
        %v2106 = vpop.f32.mrb[0].mxu0
        %v2107 = vadd.f32 %v1906, %v2106
        %2108 = vmatprep.mubr.f32.mxu0 0.0
        %2109 = vmatmul.mubr.f32.gmra.mrb[0].mxu0 %v1926
        %v2110 = vpop.f32.mrb[0].mxu0
        %v2111 = vadd.f32 %v1910, %v2110
        %v2112 = vpop.f32.mrb[0].mxu0
        %v2113 = vadd.f32 %v1910, %v2112
        %2114 = vmatprep.mubr.f32.mxu0 0.0
        %2115 = vmatmul.mubr.f32.gmra.mrb[0].mxu0 %v1929
        %v2116 = vpop.f32.mrb[0].mxu0
        %v2117 = vadd.f32 %v1914, %v2116
        %v2118 = vpop.f32.mrb[0].mxu0
        %v2119 = vadd.f32 %v1914, %v2118
        %2120 = vdwg.mxu0
        %v2121 = vmul.f32 %v1998, %v1998
        %v2122 = vmul.f32 %v2000, %v2000
        %v2123 = vmul.f32 %v2093, %v2093
        %v2124 = vmul.f32 %v2095, %v2095
        %v2125 = vmul.f32 %v2004, %v2004
        %v2126 = vmul.f32 %v2006, %v2006
        %v2127 = vmul.f32 %v2099, %v2099
        %v2128 = vmul.f32 %v2101, %v2101
        %v2129 = vmul.f32 %v2010, %v2010
        %v2130 = vmul.f32 %v2012, %v2012
        %v2131 = vmul.f32 %v2105, %v2105
        %v2132 = vmul.f32 %v2107, %v2107
        %v2133 = vmul.f32 %v2016, %v2016
        %v2134 = vmul.f32 %v2018, %v2018
        %v2135 = vmul.f32 %v2111, %v2111
        %v2136 = vmul.f32 %v2113, %v2113
        %v2137 = vadd.f32 %v2121, %v2125
        %v2138 = vadd.f32 %v2137, %v2129
        %v2139 = vadd.f32 %v2138, %v2133
        %v2140 = vrot.slane %v2139, 4
        %v2141 = vadd.f32 %v2139, %v2140
        %v2142 = vrot.slane %v2141, 2
        %v2143 = vadd.f32 %v2141, %v2142
        %v2144 = vrot.slane %v2143, 1
        %v2145 = vadd.f32 %v2143, %v2144
        %v2146 = vadd.f32 %v2122, %v2126
        %v2147 = vadd.f32 %v2146, %v2130
        %v2148 = vadd.f32 %v2147, %v2134
        %v2149 = vrot.slane %v2148, 4
        %v2150 = vadd.f32 %v2148, %v2149
        %v2151 = vrot.slane %v2150, 2
        %v2152 = vadd.f32 %v2150, %v2151
        %v2153 = vrot.slane %v2152, 1
        %v2154 = vadd.f32 %v2152, %v2153
        %v2155 = vadd.f32 %v2123, %v2127
        %v2156 = vadd.f32 %v2155, %v2131
        %v2157 = vadd.f32 %v2156, %v2135
        %v2158 = vrot.slane %v2157, 4
        %v2159 = vadd.f32 %v2157, %v2158
        %v2160 = vrot.slane %v2159, 2
        %v2161 = vadd.f32 %v2159, %v2160
        %v2162 = vrot.slane %v2161, 1
        %v2163 = vadd.f32 %v2161, %v2162
        %v2164 = vadd.f32 %v2124, %v2128
        %v2165 = vadd.f32 %v2164, %v2132
        %v2166 = vadd.f32 %v2165, %v2136
        %v2167 = vrot.slane %v2166, 4
        %v2168 = vadd.f32 %v2166, %v2167
        %v2169 = vrot.slane %v2168, 2
        %v2170 = vadd.f32 %v2168, %v2169
        %v2171 = vrot.slane %v2170, 1
        %v2172 = vadd.f32 %v2170, %v2171
        %v2173 = vmul.f32 %v2145, 0.03125
        %v2174 = vmul.f32 %v2154, 0.03125
        %v2175 = vmul.f32 %v2163, 0.03125
        %v2176 = vmul.f32 %v2172, 0.03125
        %v2177 = vmul.f32 %v2022, %v2022
        %v2178 = vmul.f32 %v2024, %v2024
        %v2179 = vmul.f32 %v2117, %v2117
        %v2180 = vmul.f32 %v2119, %v2119
        %v2181 = vsub.f32 %v2173, %v2177
        %v2182 = vsub.f32 %v2174, %v2178
        %v2183 = vsub.f32 %v2175, %v2179
        %v2184 = vsub.f32 %v2176, %v2180
        %v2185 = vmax.f32 %v2181, 0.0
        %v2186 = vmax.f32 %v2182, 0.0
        %v2187 = vmax.f32 %v2183, 0.0
        %v2188 = vmax.f32 %v2184, 0.0
        %v2189 = vlaneseq
        %v2190 = vshrl.u32 %v2189, 7
        %v2191 = vsub.s32 0, %v2190
        %v2192 = vrot.slane %v2022, %v2191
        %v2193 = vlaneseq
        %v2194 = vshrl.u32 %v2193, 7
        %v2195 = vsub.s32 0, %v2194
        %v2196 = vrot.slane %v2024, %v2195
        %v2197 = vlaneseq
        %v2198 = vshrl.u32 %v2197, 7
        %v2199 = vsub.s32 0, %v2198
        %v2200 = vrot.slane %v2117, %v2199
        %v2201 = vlaneseq
        %v2202 = vshrl.u32 %v2201, 7
        %v2203 = vsub.s32 0, %v2202
        %v2204 = vrot.slane %v2119, %v2203
        %v2205 = vsub.f32 %v1998, %v2192
        %v2206 = vsub.f32 %v2000, %v2196
        %v2207 = vsub.f32 %v2093, %v2200
        %v2208 = vsub.f32 %v2095, %v2204
        %v2209 = vsub.f32 %v2004, %v2192
        %v2210 = vsub.f32 %v2006, %v2196
        %v2211 = vsub.f32 %v2099, %v2200
        %v2212 = vsub.f32 %v2101, %v2204
        %v2213 = vsub.f32 %v2010, %v2192
        %v2214 = vsub.f32 %v2012, %v2196
        %v2215 = vsub.f32 %v2105, %v2200
        %v2216 = vsub.f32 %v2107, %v2204
        %v2217 = vsub.f32 %v2016, %v2192
        %v2218 = vsub.f32 %v2018, %v2196
        %v2219 = vsub.f32 %v2111, %v2200
        %v2220 = vsub.f32 %v2113, %v2204
        %v2221 = vadd.f32 %v2185, 1e-05
        %v2222 = vadd.f32 %v2186, 1e-05
        %v2223 = vadd.f32 %v2187, 1e-05
        %v2224 = vadd.f32 %v2188, 1e-05
        %v2225 = vrsqrt.pop %v2221
        %v2226 = vrsqrt.pop %v2222
        %v2227 = vrsqrt.pop %v2223
        %v2228 = vrsqrt.pop %v2224
        %v2229 = vlaneseq
        %v2230 = vshrl.u32 %v2229, 7
        %v2231 = vsub.s32 0, %v2230
        %v2232 = vrot.slane %v2225, %v2231
        %v2233 = vlaneseq
        %v2234 = vshrl.u32 %v2233, 7
        %v2235 = vsub.s32 0, %v2234
        %v2236 = vrot.slane %v2226, %v2235
        %v2237 = vlaneseq
        %v2238 = vshrl.u32 %v2237, 7
        %v2239 = vsub.s32 0, %v2238
        %v2240 = vrot.slane %v2227, %v2239
        %v2241 = vlaneseq
        %v2242 = vshrl.u32 %v2241, 7
        %v2243 = vsub.s32 0, %v2242
        %v2244 = vrot.slane %v2228, %v2243
        %v2245 = vmul.f32 %v2205, %v2232
        %v2246 = vmul.f32 %v2206, %v2236
        %v2247 = vmul.f32 %v2207, %v2240
        %v2248 = vmul.f32 %v2208, %v2244
        %v2249 = vmul.f32 %v2209, %v2232
        %v2250 = vmul.f32 %v2210, %v2236
        %v2251 = vmul.f32 %v2211, %v2240
        %v2252 = vmul.f32 %v2212, %v2244
        %v2253 = vmul.f32 %v2213, %v2232
        %v2254 = vmul.f32 %v2214, %v2236
        %v2255 = vmul.f32 %v2215, %v2240
        %v2256 = vmul.f32 %v2216, %v2244
        %v2257 = vmul.f32 %v2217, %v2232
        %v2258 = vmul.f32 %v2218, %v2236
        %v2259 = vmul.f32 %v2219, %v2240
        %v2260 = vmul.f32 %v2220, %v2244
        %2261 = vset.pattern.permute.xlu0 10
        %2262 = vperm.xlu0 %2261, %v273
        %v2263 = vpop.permute.xlu0 %2262
        %2265 = vset.pattern.permute.xlu0 10
        %2266 = vperm.xlu0 %2265, %v274
        %v2267 = vpop.permute.xlu0 %2266
        %2269 = vset.pattern.permute.xlu0 10
        %2270 = vperm.xlu0 %2269, %v275
        %v2271 = vpop.permute.xlu0 %2270
        %2273 = vset.pattern.permute.xlu0 10
        %2274 = vperm.xlu0 %2273, %v276
        %v2275 = vpop.permute.xlu0 %2274
        %v2277 = vmul.f32 %v2245, %v2263
        %v2278 = vmul.f32 %v2246, %v2263
        %v2279 = vmul.f32 %v2247, %v2263
        %v2280 = vmul.f32 %v2248, %v2263
        %v2281 = vmul.f32 %v2249, %v2267
        %v2282 = vmul.f32 %v2250, %v2267
        %v2283 = vmul.f32 %v2251, %v2267
        %v2284 = vmul.f32 %v2252, %v2267
        %v2285 = vmul.f32 %v2253, %v2271
        %v2286 = vmul.f32 %v2254, %v2271
        %v2287 = vmul.f32 %v2255, %v2271
        %v2288 = vmul.f32 %v2256, %v2271
        %v2289 = vmul.f32 %v2257, %v2275
        %v2290 = vmul.f32 %v2258, %v2275
        %v2291 = vmul.f32 %v2259, %v2275
        %v2292 = vmul.f32 %v2260, %v2275
        %2293 = vset.pattern.permute.xlu0 11
        %2294 = vperm.xlu0 %2293, %v273
        %v2295 = vpop.permute.xlu0 %2294
        %2297 = vset.pattern.permute.xlu0 11
        %2298 = vperm.xlu0 %2297, %v274
        %v2299 = vpop.permute.xlu0 %2298
        %2301 = vset.pattern.permute.xlu0 11
        %2302 = vperm.xlu0 %2301, %v275
        %v2303 = vpop.permute.xlu0 %2302
        %2305 = vset.pattern.permute.xlu0 11
        %2306 = vperm.xlu0 %2305, %v276
        %v2307 = vpop.permute.xlu0 %2306
        %v2309 = vadd.f32 %v2277, %v2295
        %v2310 = vadd.f32 %v2278, %v2295
        %v2311 = vadd.f32 %v2279, %v2295
        %v2312 = vadd.f32 %v2280, %v2295
        %v2313 = vadd.f32 %v2281, %v2299
        %v2314 = vadd.f32 %v2282, %v2299
        %v2315 = vadd.f32 %v2283, %v2299
        %v2316 = vadd.f32 %v2284, %v2299
        %v2317 = vadd.f32 %v2285, %v2303
        %v2318 = vadd.f32 %v2286, %v2303
        %v2319 = vadd.f32 %v2287, %v2303
        %v2320 = vadd.f32 %v2288, %v2303
        %v2321 = vadd.f32 %v2289, %v2307
        %v2322 = vadd.f32 %v2290, %v2307
        %v2323 = vadd.f32 %v2291, %v2307
        %v2324 = vadd.f32 %v2292, %v2307
        %v2325 = vtanh.pop %v2309
        %v2326 = vtanh.pop %v2310
        %v2327 = vtanh.pop %v2311
        %v2328 = vtanh.pop %v2312
        %v2329 = vtanh.pop %v2313
        %v2330 = vtanh.pop %v2314
        %v2331 = vtanh.pop %v2315
        %v2332 = vtanh.pop %v2316
        %v2333 = vtanh.pop %v2317
        %v2334 = vtanh.pop %v2318
        %v2335 = vtanh.pop %v2319
        %v2336 = vtanh.pop %v2320
        %v2337 = vtanh.pop %v2321
        %v2338 = vtanh.pop %v2322
        %v2339 = vtanh.pop %v2323
        %v2340 = vtanh.pop %v2324
        %2341 = vxpose.xlu0.b32.start [1/16] %v2325, 128
        %2342 = vxpose.xlu0.b32.cont [2/16] %v2329, 128
        %2343 = vxpose.xlu0.b32.cont [3/16] %v2333, 128
        %2344 = vxpose.xlu0.b32.cont [4/16] %v2337, 128
        %2345 = vxpose.xlu0.b32.cont [5/16] 0.0, 128
        %2346 = vxpose.xlu0.b32.cont [6/16] 0.0, 128
        %2347 = vxpose.xlu0.b32.cont [7/16] 0.0, 128
        %2348 = vxpose.xlu0.b32.cont [8/16] 0.0, 128
        %2349 = vxpose.xlu0.b32.cont [9/16] 0.0, 128
        %2350 = vxpose.xlu0.b32.cont [10/16] 0.0, 128
        %2351 = vxpose.xlu0.b32.cont [11/16] 0.0, 128
        %2352 = vxpose.xlu0.b32.cont [12/16] 0.0, 128
        %2353 = vxpose.xlu0.b32.cont [13/16] 0.0, 128
        %2354 = vxpose.xlu0.b32.cont [14/16] 0.0, 128
        %2355 = vxpose.xlu0.b32.cont [15/16] 0.0, 128
        %2356 = vxpose.xlu0.b32.end [16/16] 0.0, 128
        %v2357 = vpop.trf.xlu0
        %v2358 = vpop.trf.xlu0
        %v2359 = vpop.trf.xlu0
        %v2360 = vpop.trf.xlu0
        %v2361 = vpop.trf.xlu0
        %v2362 = vpop.trf.xlu0
        %v2363 = vpop.trf.xlu0
        %v2364 = vpop.trf.xlu0
        %v2365 = vpop.trf.xlu0
        %v2366 = vpop.trf.xlu0
        %v2367 = vpop.trf.xlu0
        %v2368 = vpop.trf.xlu0
        %v2369 = vpop.trf.xlu0
        %v2370 = vpop.trf.xlu0
        %v2371 = vpop.trf.xlu0
        %v2372 = vpop.trf.xlu0
        %2373 = vxpose.xlu0.b32.start [1/16] %v2326, 128
        %2374 = vxpose.xlu0.b32.cont [2/16] %v2330, 128
        %2375 = vxpose.xlu0.b32.cont [3/16] %v2334, 128
        %2376 = vxpose.xlu0.b32.cont [4/16] %v2338, 128
        %2377 = vxpose.xlu0.b32.cont [5/16] 0.0, 128
        %2378 = vxpose.xlu0.b32.cont [6/16] 0.0, 128
        %2379 = vxpose.xlu0.b32.cont [7/16] 0.0, 128
        %2380 = vxpose.xlu0.b32.cont [8/16] 0.0, 128
        %2381 = vxpose.xlu0.b32.cont [9/16] 0.0, 128
        %2382 = vxpose.xlu0.b32.cont [10/16] 0.0, 128
        %2383 = vxpose.xlu0.b32.cont [11/16] 0.0, 128
        %2384 = vxpose.xlu0.b32.cont [12/16] 0.0, 128
        %2385 = vxpose.xlu0.b32.cont [13/16] 0.0, 128
        %2386 = vxpose.xlu0.b32.cont [14/16] 0.0, 128
        %2387 = vxpose.xlu0.b32.cont [15/16] 0.0, 128
        %2388 = vxpose.xlu0.b32.end [16/16] 0.0, 128
        %v2389 = vpop.trf.xlu0
        %v2390 = vpop.trf.xlu0
        %v2391 = vpop.trf.xlu0
        %v2392 = vpop.trf.xlu0
        %v2393 = vpop.trf.xlu0
        %v2394 = vpop.trf.xlu0
        %v2395 = vpop.trf.xlu0
        %v2396 = vpop.trf.xlu0
        %v2397 = vpop.trf.xlu0
        %v2398 = vpop.trf.xlu0
        %v2399 = vpop.trf.xlu0
        %v2400 = vpop.trf.xlu0
        %v2401 = vpop.trf.xlu0
        %v2402 = vpop.trf.xlu0
        %v2403 = vpop.trf.xlu0
        %v2404 = vpop.trf.xlu0
        %2405 = vxpose.xlu0.b32.start [1/16] %v2327, 128
        %2406 = vxpose.xlu0.b32.cont [2/16] %v2331, 128
        %2407 = vxpose.xlu0.b32.cont [3/16] %v2335, 128
        %2408 = vxpose.xlu0.b32.cont [4/16] %v2339, 128
        %2409 = vxpose.xlu0.b32.cont [5/16] 0.0, 128
        %2410 = vxpose.xlu0.b32.cont [6/16] 0.0, 128
        %2411 = vxpose.xlu0.b32.cont [7/16] 0.0, 128
        %2412 = vxpose.xlu0.b32.cont [8/16] 0.0, 128
        %2413 = vxpose.xlu0.b32.cont [9/16] 0.0, 128
        %2414 = vxpose.xlu0.b32.cont [10/16] 0.0, 128
        %2415 = vxpose.xlu0.b32.cont [11/16] 0.0, 128
        %2416 = vxpose.xlu0.b32.cont [12/16] 0.0, 128
        %2417 = vxpose.xlu0.b32.cont [13/16] 0.0, 128
        %2418 = vxpose.xlu0.b32.cont [14/16] 0.0, 128
        %2419 = vxpose.xlu0.b32.cont [15/16] 0.0, 128
        %2420 = vxpose.xlu0.b32.end [16/16] 0.0, 128
        %v2421 = vpop.trf.xlu0
        %v2422 = vpop.trf.xlu0
        %v2423 = vpop.trf.xlu0
        %v2424 = vpop.trf.xlu0
        %v2425 = vpop.trf.xlu0
        %v2426 = vpop.trf.xlu0
        %v2427 = vpop.trf.xlu0
        %v2428 = vpop.trf.xlu0
        %v2429 = vpop.trf.xlu0
        %v2430 = vpop.trf.xlu0
        %v2431 = vpop.trf.xlu0
        %v2432 = vpop.trf.xlu0
        %v2433 = vpop.trf.xlu0
        %v2434 = vpop.trf.xlu0
        %v2435 = vpop.trf.xlu0
        %v2436 = vpop.trf.xlu0
        %2437 = vxpose.xlu0.b32.start [1/16] %v2328, 128
        %2438 = vxpose.xlu0.b32.cont [2/16] %v2332, 128
        %2439 = vxpose.xlu0.b32.cont [3/16] %v2336, 128
        %2440 = vxpose.xlu0.b32.cont [4/16] %v2340, 128
        %2441 = vxpose.xlu0.b32.cont [5/16] 0.0, 128
        %2442 = vxpose.xlu0.b32.cont [6/16] 0.0, 128
        %2443 = vxpose.xlu0.b32.cont [7/16] 0.0, 128
        %2444 = vxpose.xlu0.b32.cont [8/16] 0.0, 128
        %2445 = vxpose.xlu0.b32.cont [9/16] 0.0, 128
        %2446 = vxpose.xlu0.b32.cont [10/16] 0.0, 128
        %2447 = vxpose.xlu0.b32.cont [11/16] 0.0, 128
        %2448 = vxpose.xlu0.b32.cont [12/16] 0.0, 128
        %2449 = vxpose.xlu0.b32.cont [13/16] 0.0, 128
        %2450 = vxpose.xlu0.b32.cont [14/16] 0.0, 128
        %2451 = vxpose.xlu0.b32.cont [15/16] 0.0, 128
        %2452 = vxpose.xlu0.b32.end [16/16] 0.0, 128
        %v2453 = vpop.trf.xlu0
        %v2454 = vpop.trf.xlu0
        %v2455 = vpop.trf.xlu0
        %v2456 = vpop.trf.xlu0
        %v2457 = vpop.trf.xlu0
        %v2458 = vpop.trf.xlu0
        %v2459 = vpop.trf.xlu0
        %v2460 = vpop.trf.xlu0
        %v2461 = vpop.trf.xlu0
        %v2462 = vpop.trf.xlu0
        %v2463 = vpop.trf.xlu0
        %v2464 = vpop.trf.xlu0
        %v2465 = vpop.trf.xlu0
        %v2466 = vpop.trf.xlu0
        %v2467 = vpop.trf.xlu0
        %v2468 = vpop.trf.xlu0
        %2469 = vst.msk [vmem:[%s253] sm:$0xff] %vm1015, %v2357
        %2470 = vst.msk [vmem:[%s253 + $0x8] sm:$0xff] %vm1015, %v2358
        %2471 = vst.msk [vmem:[%s253 + $0x10] sm:$0xff] %vm1015, %v2359
        %2472 = vst.msk [vmem:[%s253 + $0x18] sm:$0xff] %vm1015, %v2360
        %2473 = vst.msk [vmem:[%s253 + $0x20] sm:$0xff] %vm1015, %v2361
        %2474 = vst.msk [vmem:[%s253 + $0x28] sm:$0xff] %vm1015, %v2362
        %2475 = vst.msk [vmem:[%s253 + $0x30] sm:$0xff] %vm1015, %v2363
        %2476 = vst.msk [vmem:[%s253 + $0x38] sm:$0xff] %vm1015, %v2364
        %2477 = vst.msk [vmem:[%s253 + $0x40] sm:$0xff] %vm1015, %v2365
        %2478 = vst.msk [vmem:[%s253 + $0x48] sm:$0xff] %vm1015, %v2366
        %2479 = vst.msk [vmem:[%s253 + $0x50] sm:$0xff] %vm1015, %v2367
        %2480 = vst.msk [vmem:[%s253 + $0x58] sm:$0xff] %vm1015, %v2368
        %2481 = vst.msk [vmem:[%s253 + $0x60] sm:$0xff] %vm1015, %v2369
        %2482 = vst.msk [vmem:[%s253 + $0x68] sm:$0xff] %vm1015, %v2370
        %2483 = vst.msk [vmem:[%s253 + $0x70] sm:$0xff] %vm1015, %v2371
        %2484 = vst.msk [vmem:[%s253 + $0x78] sm:$0xff] %vm1015, %v2372
        %2485 = vst.msk [vmem:[%s253 + $0x80] sm:$0xff] %vm1015, %v2389
        %2486 = vst.msk [vmem:[%s253 + $0x88] sm:$0xff] %vm1015, %v2390
        %2487 = vst.msk [vmem:[%s253 + $0x90] sm:$0xff] %vm1015, %v2391
        %2488 = vst.msk [vmem:[%s253 + $0x98] sm:$0xff] %vm1015, %v2392
        %2489 = vst.msk [vmem:[%s253 + $0xa0] sm:$0xff] %vm1015, %v2393
        %2490 = vst.msk [vmem:[%s253 + $0xa8] sm:$0xff] %vm1015, %v2394
        %2491 = vst.msk [vmem:[%s253 + $0xb0] sm:$0xff] %vm1015, %v2395
        %2492 = vst.msk [vmem:[%s253 + $0xb8] sm:$0xff] %vm1015, %v2396
        %2493 = vst.msk [vmem:[%s253 + $0xc0] sm:$0xff] %vm1015, %v2397
        %2494 = vst.msk [vmem:[%s253 + $0xc8] sm:$0xff] %vm1015, %v2398
        %2495 = vst.msk [vmem:[%s253 + $0xd0] sm:$0xff] %vm1015, %v2399
        %2496 = vst.msk [vmem:[%s253 + $0xd8] sm:$0xff] %vm1015, %v2400
        %2497 = vst.msk [vmem:[%s253 + $0xe0] sm:$0xff] %vm1015, %v2401
        %2498 = vst.msk [vmem:[%s253 + $0xe8] sm:$0xff] %vm1015, %v2402
        %2499 = vst.msk [vmem:[%s253 + $0xf0] sm:$0xff] %vm1015, %v2403
        %2500 = vst.msk [vmem:[%s253 + $0xf8] sm:$0xff] %vm1015, %v2404
        %2501 = vst.msk [vmem:[%s253 + $0x100] sm:$0xff] %vm1015, %v2421
        %2502 = vst.msk [vmem:[%s253 + $0x108] sm:$0xff] %vm1015, %v2422
        %2503 = vst.msk [vmem:[%s253 + $0x110] sm:$0xff] %vm1015, %v2423
        %2504 = vst.msk [vmem:[%s253 + $0x118] sm:$0xff] %vm1015, %v2424
        %2505 = vst.msk [vmem:[%s253 + $0x120] sm:$0xff] %vm1015, %v2425
        %2506 = vst.msk [vmem:[%s253 + $0x128] sm:$0xff] %vm1015, %v2426
        %2507 = vst.msk [vmem:[%s253 + $0x130] sm:$0xff] %vm1015, %v2427
        %2508 = vst.msk [vmem:[%s253 + $0x138] sm:$0xff] %vm1015, %v2428
        %2509 = vst.msk [vmem:[%s253 + $0x140] sm:$0xff] %vm1015, %v2429
        %2510 = vst.msk [vmem:[%s253 + $0x148] sm:$0xff] %vm1015, %v2430
        %2511 = vst.msk [vmem:[%s253 + $0x150] sm:$0xff] %vm1015, %v2431
        %2512 = vst.msk [vmem:[%s253 + $0x158] sm:$0xff] %vm1015, %v2432
        %2513 = vst.msk [vmem:[%s253 + $0x160] sm:$0xff] %vm1015, %v2433
        %2514 = vst.msk [vmem:[%s253 + $0x168] sm:$0xff] %vm1015, %v2434
        %2515 = vst.msk [vmem:[%s253 + $0x170] sm:$0xff] %vm1015, %v2435
        %2516 = vst.msk [vmem:[%s253 + $0x178] sm:$0xff] %vm1015, %v2436
        %2517 = vst.msk [vmem:[%s253 + $0x180] sm:$0xff] %vm1015, %v2453
        %2518 = vst.msk [vmem:[%s253 + $0x188] sm:$0xff] %vm1015, %v2454
        %2519 = vst.msk [vmem:[%s253 + $0x190] sm:$0xff] %vm1015, %v2455
        %2520 = vst.msk [vmem:[%s253 + $0x198] sm:$0xff] %vm1015, %v2456
        %2521 = vst.msk [vmem:[%s253 + $0x1a0] sm:$0xff] %vm1015, %v2457
        %2522 = vst.msk [vmem:[%s253 + $0x1a8] sm:$0xff] %vm1015, %v2458
        %2523 = vst.msk [vmem:[%s253 + $0x1b0] sm:$0xff] %vm1015, %v2459
        %2524 = vst.msk [vmem:[%s253 + $0x1b8] sm:$0xff] %vm1015, %v2460
        %2525 = vst.msk [vmem:[%s253 + $0x1c0] sm:$0xff] %vm1015, %v2461
        %2526 = vst.msk [vmem:[%s253 + $0x1c8] sm:$0xff] %vm1015, %v2462
        %2527 = vst.msk [vmem:[%s253 + $0x1d0] sm:$0xff] %vm1015, %v2463
        %2528 = vst.msk [vmem:[%s253 + $0x1d8] sm:$0xff] %vm1015, %v2464
        %2529 = vst.msk [vmem:[%s253 + $0x1e0] sm:$0xff] %vm1015, %v2465
        %2530 = vst.msk [vmem:[%s253 + $0x1e8] sm:$0xff] %vm1015, %v2466
        %2531 = vst.msk [vmem:[%s253 + $0x1f0] sm:$0xff] %vm1015, %v2467
        %2532 = vst.msk [vmem:[%s253 + $0x1f8] sm:$0xff] %vm1015, %v2468
        %s2533 = sand.u32 %s156, 1
        %s2534 = sand.u32 %s156, 1
        %s2535 = smul.addr %s2534, 512
        %s2536 = scalar_lea.vmem [#allocation2], %s2535
        // Predicated region
        $region45: #{tpu_custom_call.1} parent=43 // pred_check
          %p2537 = pneg %p166
        $region46: #{tpu_custom_call.1} parent=43 // pred_check_branch
          %2539 = sbr.rel (%p2537) target = $region48
        $region47: #{tpu_custom_call.1} parent=43 // pred_region
          %s2540 = smul.u32 64, %s17
          %s2541 = ssub.s32 125, %s2540
          %p2542 = scmp.lt.s32.totalorder %s2541, 64
          %s2543 = scalar_select %p2542, %s2541, 64
          %s2544 = smul.u32 128, %s2543
          %p2545 = scmp.ne.s32.totalorder 0, %s2544
          %s2546 = smul.addr %s2540, 8
          %s2547 = scalar_lea.vmem %s6, %s2546
          // Predicated region
          $region49: #{tpu_custom_call.1} parent=47 // pred_check
            %p2548 = pneg %p2545
          $region50: #{tpu_custom_call.1} parent=47 // pred_check_branch
            %2550 = sbr.rel (%p2548) target = $region52
          $region51: #{tpu_custom_call.1} parent=47 // pred_region
            // Predicated region
            $region53: #{tpu_custom_call.1} parent=51 // pred_check
              _
            $region54: #{tpu_custom_call.1} parent=51 // pred_check_branch
              %2552 = sbr.rel (0) target = $region56
            $region55: #{tpu_custom_call.1} parent=51 // pred_region
              // Predicated region
              $region75: #{tpu_custom_call.1} parent=55 // pred_check
                _
              $region76: #{tpu_custom_call.1} parent=55 // pred_check_branch
                %2727 = sbr.rel (0) target = $region78
              $region77: #{tpu_custom_call.1} parent=55 // pred_region
                %s2728 = sshrl.u32 %s2543, 6
                // While loop
                $region79: #{tpu_custom_call.1} parent=77 // loop_pre_header
                  _
                $region80: #{tpu_custom_call.1} parent=77 // loop_header
                  %s2730 = sphi 0, %s2732
                  %p2731 = scmp.ge.s32.totalorder %s2730, %s2728
                  %s2735 = sphi 0, %s2868
                  %s2736 = sphi %s2536, %s2871
                  %s2737 = sphi %s2547, %s2872
                $region81: #{tpu_custom_call.1} parent=77 // loop_header_branch
                  %2734 = sbr.rel (%p2731) target = $region85
                $region82: #{tpu_custom_call.1} parent=77 // loop_body
                  %v2738 = vld [vmem:[%s2736] sm:$0xff]
                  %2739 = vst [vmem:[%s2737] sm:$0xff] %v2738
                  %v2740 = vld [vmem:[%s2736 + $0x8] sm:$0xff]
                  %2741 = vst [vmem:[%s2737 + $0x8] sm:$0xff] %v2740
                  %v2742 = vld [vmem:[%s2736 + $0x10] sm:$0xff]
                  %2743 = vst [vmem:[%s2737 + $0x10] sm:$0xff] %v2742
                  %v2744 = vld [vmem:[%s2736 + $0x18] sm:$0xff]
                  %2745 = vst [vmem:[%s2737 + $0x18] sm:$0xff] %v2744
                  %v2746 = vld [vmem:[%s2736 + $0x20] sm:$0xff]
                  %2747 = vst [vmem:[%s2737 + $0x20] sm:$0xff] %v2746
                  %v2748 = vld [vmem:[%s2736 + $0x28] sm:$0xff]
                  %2749 = vst [vmem:[%s2737 + $0x28] sm:$0xff] %v2748
                  %v2750 = vld [vmem:[%s2736 + $0x30] sm:$0xff]
                  %2751 = vst [vmem:[%s2737 + $0x30] sm:$0xff] %v2750
                  %v2752 = vld [vmem:[%s2736 + $0x38] sm:$0xff]
                  %2753 = vst [vmem:[%s2737 + $0x38] sm:$0xff] %v2752
                  %v2754 = vld [vmem:[%s2736 + $0x40] sm:$0xff]
                  %2755 = vst [vmem:[%s2737 + $0x40] sm:$0xff] %v2754
                  %v2756 = vld [vmem:[%s2736 + $0x48] sm:$0xff]
                  %2757 = vst [vmem:[%s2737 + $0x48] sm:$0xff] %v2756
                  %v2758 = vld [vmem:[%s2736 + $0x50] sm:$0xff]
                  %2759 = vst [vmem:[%s2737 + $0x50] sm:$0xff] %v2758
                  %v2760 = vld [vmem:[%s2736 + $0x58] sm:$0xff]
                  %2761 = vst [vmem:[%s2737 + $0x58] sm:$0xff] %v2760
                  %v2762 = vld [vmem:[%s2736 + $0x60] sm:$0xff]
                  %2763 = vst [vmem:[%s2737 + $0x60] sm:$0xff] %v2762
                  %v2764 = vld [vmem:[%s2736 + $0x68] sm:$0xff]
                  %2765 = vst [vmem:[%s2737 + $0x68] sm:$0xff] %v2764
                  %v2766 = vld [vmem:[%s2736 + $0x70] sm:$0xff]
                  %2767 = vst [vmem:[%s2737 + $0x70] sm:$0xff] %v2766
                  %v2768 = vld [vmem:[%s2736 + $0x78] sm:$0xff]
                  %2769 = vst [vmem:[%s2737 + $0x78] sm:$0xff] %v2768
                  %v2770 = vld [vmem:[%s2736 + $0x80] sm:$0xff]
                  %2771 = vst [vmem:[%s2737 + $0x80] sm:$0xff] %v2770
                  %v2772 = vld [vmem:[%s2736 + $0x88] sm:$0xff]
                  %2773 = vst [vmem:[%s2737 + $0x88] sm:$0xff] %v2772
                  %v2774 = vld [vmem:[%s2736 + $0x90] sm:$0xff]
                  %2775 = vst [vmem:[%s2737 + $0x90] sm:$0xff] %v2774
                  %v2776 = vld [vmem:[%s2736 + $0x98] sm:$0xff]
                  %2777 = vst [vmem:[%s2737 + $0x98] sm:$0xff] %v2776
                  %v2778 = vld [vmem:[%s2736 + $0xa0] sm:$0xff]
                  %2779 = vst [vmem:[%s2737 + $0xa0] sm:$0xff] %v2778
                  %v2780 = vld [vmem:[%s2736 + $0xa8] sm:$0xff]
                  %2781 = vst [vmem:[%s2737 + $0xa8] sm:$0xff] %v2780
                  %v2782 = vld [vmem:[%s2736 + $0xb0] sm:$0xff]
                  %2783 = vst [vmem:[%s2737 + $0xb0] sm:$0xff] %v2782
                  %v2784 = vld [vmem:[%s2736 + $0xb8] sm:$0xff]
                  %2785 = vst [vmem:[%s2737 + $0xb8] sm:$0xff] %v2784
                  %v2786 = vld [vmem:[%s2736 + $0xc0] sm:$0xff]
                  %2787 = vst [vmem:[%s2737 + $0xc0] sm:$0xff] %v2786
                  %v2788 = vld [vmem:[%s2736 + $0xc8] sm:$0xff]
                  %2789 = vst [vmem:[%s2737 + $0xc8] sm:$0xff] %v2788
                  %v2790 = vld [vmem:[%s2736 + $0xd0] sm:$0xff]
                  %2791 = vst [vmem:[%s2737 + $0xd0] sm:$0xff] %v2790
                  %v2792 = vld [vmem:[%s2736 + $0xd8] sm:$0xff]
                  %2793 = vst [vmem:[%s2737 + $0xd8] sm:$0xff] %v2792
                  %v2794 = vld [vmem:[%s2736 + $0xe0] sm:$0xff]
                  %2795 = vst [vmem:[%s2737 + $0xe0] sm:$0xff] %v2794
                  %v2796 = vld [vmem:[%s2736 + $0xe8] sm:$0xff]
                  %2797 = vst [vmem:[%s2737 + $0xe8] sm:$0xff] %v2796
                  %v2798 = vld [vmem:[%s2736 + $0xf0] sm:$0xff]
                  %2799 = vst [vmem:[%s2737 + $0xf0] sm:$0xff] %v2798
                  %v2800 = vld [vmem:[%s2736 + $0xf8] sm:$0xff]
                  %2801 = vst [vmem:[%s2737 + $0xf8] sm:$0xff] %v2800
                  %v2802 = vld [vmem:[%s2736 + $0x100] sm:$0xff]
                  %2803 = vst [vmem:[%s2737 + $0x100] sm:$0xff] %v2802
                  %v2804 = vld [vmem:[%s2736 + $0x108] sm:$0xff]
                  %2805 = vst [vmem:[%s2737 + $0x108] sm:$0xff] %v2804
                  %v2806 = vld [vmem:[%s2736 + $0x110] sm:$0xff]
                  %2807 = vst [vmem:[%s2737 + $0x110] sm:$0xff] %v2806
                  %v2808 = vld [vmem:[%s2736 + $0x118] sm:$0xff]
                  %2809 = vst [vmem:[%s2737 + $0x118] sm:$0xff] %v2808
                  %v2810 = vld [vmem:[%s2736 + $0x120] sm:$0xff]
                  %2811 = vst [vmem:[%s2737 + $0x120] sm:$0xff] %v2810
                  %v2812 = vld [vmem:[%s2736 + $0x128] sm:$0xff]
                  %2813 = vst [vmem:[%s2737 + $0x128] sm:$0xff] %v2812
                  %v2814 = vld [vmem:[%s2736 + $0x130] sm:$0xff]
                  %2815 = vst [vmem:[%s2737 + $0x130] sm:$0xff] %v2814
                  %v2816 = vld [vmem:[%s2736 + $0x138] sm:$0xff]
                  %2817 = vst [vmem:[%s2737 + $0x138] sm:$0xff] %v2816
                  %v2818 = vld [vmem:[%s2736 + $0x140] sm:$0xff]
                  %2819 = vst [vmem:[%s2737 + $0x140] sm:$0xff] %v2818
                  %v2820 = vld [vmem:[%s2736 + $0x148] sm:$0xff]
                  %2821 = vst [vmem:[%s2737 + $0x148] sm:$0xff] %v2820
                  %v2822 = vld [vmem:[%s2736 + $0x150] sm:$0xff]
                  %2823 = vst [vmem:[%s2737 + $0x150] sm:$0xff] %v2822
                  %v2824 = vld [vmem:[%s2736 + $0x158] sm:$0xff]
                  %2825 = vst [vmem:[%s2737 + $0x158] sm:$0xff] %v2824
                  %v2826 = vld [vmem:[%s2736 + $0x160] sm:$0xff]
                  %2827 = vst [vmem:[%s2737 + $0x160] sm:$0xff] %v2826
                  %v2828 = vld [vmem:[%s2736 + $0x168] sm:$0xff]
                  %2829 = vst [vmem:[%s2737 + $0x168] sm:$0xff] %v2828
                  %v2830 = vld [vmem:[%s2736 + $0x170] sm:$0xff]
                  %2831 = vst [vmem:[%s2737 + $0x170] sm:$0xff] %v2830
                  %v2832 = vld [vmem:[%s2736 + $0x178] sm:$0xff]
                  %2833 = vst [vmem:[%s2737 + $0x178] sm:$0xff] %v2832
                  %v2834 = vld [vmem:[%s2736 + $0x180] sm:$0xff]
                  %2835 = vst [vmem:[%s2737 + $0x180] sm:$0xff] %v2834
                  %v2836 = vld [vmem:[%s2736 + $0x188] sm:$0xff]
                  %2837 = vst [vmem:[%s2737 + $0x188] sm:$0xff] %v2836
                  %v2838 = vld [vmem:[%s2736 + $0x190] sm:$0xff]
                  %2839 = vst [vmem:[%s2737 + $0x190] sm:$0xff] %v2838
                  %v2840 = vld [vmem:[%s2736 + $0x198] sm:$0xff]
                  %2841 = vst [vmem:[%s2737 + $0x198] sm:$0xff] %v2840
                  %v2842 = vld [vmem:[%s2736 + $0x1a0] sm:$0xff]
                  %2843 = vst [vmem:[%s2737 + $0x1a0] sm:$0xff] %v2842
                  %v2844 = vld [vmem:[%s2736 + $0x1a8] sm:$0xff]
                  %2845 = vst [vmem:[%s2737 + $0x1a8] sm:$0xff] %v2844
                  %v2846 = vld [vmem:[%s2736 + $0x1b0] sm:$0xff]
                  %2847 = vst [vmem:[%s2737 + $0x1b0] sm:$0xff] %v2846
                  %v2848 = vld [vmem:[%s2736 + $0x1b8] sm:$0xff]
                  %2849 = vst [vmem:[%s2737 + $0x1b8] sm:$0xff] %v2848
                  %v2850 = vld [vmem:[%s2736 + $0x1c0] sm:$0xff]
                  %2851 = vst [vmem:[%s2737 + $0x1c0] sm:$0xff] %v2850
                  %v2852 = vld [vmem:[%s2736 + $0x1c8] sm:$0xff]
                  %2853 = vst [vmem:[%s2737 + $0x1c8] sm:$0xff] %v2852
                  %v2854 = vld [vmem:[%s2736 + $0x1d0] sm:$0xff]
                  %2855 = vst [vmem:[%s2737 + $0x1d0] sm:$0xff] %v2854
                  %v2856 = vld [vmem:[%s2736 + $0x1d8] sm:$0xff]
                  %2857 = vst [vmem:[%s2737 + $0x1d8] sm:$0xff] %v2856
                  %v2858 = vld [vmem:[%s2736 + $0x1e0] sm:$0xff]
                  %2859 = vst [vmem:[%s2737 + $0x1e0] sm:$0xff] %v2858
                  %v2860 = vld [vmem:[%s2736 + $0x1e8] sm:$0xff]
                  %2861 = vst [vmem:[%s2737 + $0x1e8] sm:$0xff] %v2860
                  %v2862 = vld [vmem:[%s2736 + $0x1f0] sm:$0xff]
                  %2863 = vst [vmem:[%s2737 + $0x1f0] sm:$0xff] %v2862
                  %v2864 = vld [vmem:[%s2736 + $0x1f8] sm:$0xff]
                  %2865 = vst [vmem:[%s2737 + $0x1f8] sm:$0xff] %v2864
                  %s2866 = sadd.s32 1, %s2735
                  %p2867 = scmp.ge.s32.totalorder %s2866, %s2728
                  %s2868 = scalar_select %p2867, 0, %s2866
                  %s2869 = smul.u32 %s2868, 512
                  %s2870 = smul.u32 %s2868, 512
                  %s2871 = scalar_lea.vmem %s2536, %s2869 [#allocation2]
                  %s2872 = scalar_lea.vmem %s2547, %s2870
                $region83: #{tpu_custom_call.1} parent=77 // loop_footer
                  %s2732 = sadd.s32 %s2730, 1
                $region84: #{tpu_custom_call.1} parent=77 // loop_footer_branch
                  %2729 = sbr.rel target = $region80
                $region85: #{tpu_custom_call.1} parent=77 // loop_exit
                  _
                %s2873 = sshrl.u32 %s2543, 6
                %s2874 = sand.u32 %s2543, 63
                %s2875 = smul.u32 %s2873, 64
                %s2876 = smul.u32 8, %s2875
                %s2877 = scalar_lea.vmem %s2536, %s2876 [#allocation2]
                %s2878 = smul.u32 8, %s2875
                %s2879 = scalar_lea.vmem %s2547, %s2878
                // While loop
                $region86: #{tpu_custom_call.1} parent=77 // loop_pre_header
                  _
                $region87: #{tpu_custom_call.1} parent=77 // loop_header
                  %s2881 = sphi 0, %s2883
                  %p2882 = scmp.ge.s32.totalorder %s2881, %s2874
                  %s2886 = sphi 0, %s2893
                  %s2887 = sphi %s2877, %s2896
                  %s2888 = sphi %s2879, %s2897
                $region88: #{tpu_custom_call.1} parent=77 // loop_header_branch
                  %2885 = sbr.rel (%p2882) target = $region92
                $region89: #{tpu_custom_call.1} parent=77 // loop_body
                  %v2889 = vld [vmem:[%s2887] sm:$0xff]
                  %2890 = vst [vmem:[%s2888] sm:$0xff] %v2889
                  %s2891 = sadd.s32 1, %s2886
                  %p2892 = scmp.ge.s32.totalorder %s2891, %s2874
                  %s2893 = scalar_select %p2892, 0, %s2891
                  %s2894 = smul.u32 %s2893, 8
                  %s2895 = smul.u32 %s2893, 8
                  %s2896 = scalar_lea.vmem %s2877, %s2894 [#allocation2]
                  %s2897 = scalar_lea.vmem %s2879, %s2895
                $region90: #{tpu_custom_call.1} parent=77 // loop_footer
                  %s2883 = sadd.s32 %s2881, 1
                $region91: #{tpu_custom_call.1} parent=77 // loop_footer_branch
                  %2880 = sbr.rel target = $region87
                $region92: #{tpu_custom_call.1} parent=77 // loop_exit
                  _
              $region78: #{tpu_custom_call.1} parent=55 // pred_fallthru
                _
              // Predicated region
              $region93: #{tpu_custom_call.1} parent=55 // pred_check
                _
              $region94: #{tpu_custom_call.1} parent=55 // pred_check_branch
                %2899 = sbr.rel target = $region96
              $region95: #{tpu_custom_call.1} parent=55 // pred_region
                _
              $region96: #{tpu_custom_call.1} parent=55 // pred_fallthru
                _
            $region56: #{tpu_custom_call.1} parent=51 // pred_fallthru
              _
            // Predicated region
            $region57: #{tpu_custom_call.1} parent=51 // pred_check
              _
            $region58: #{tpu_custom_call.1} parent=51 // pred_check_branch
              %2554 = sbr.rel target = $region60
            $region59: #{tpu_custom_call.1} parent=51 // pred_region
              %s2556 = sshrl.u32 %s2543, 6
              // While loop
              $region61: #{tpu_custom_call.1} parent=59 // loop_pre_header
                _
              $region62: #{tpu_custom_call.1} parent=59 // loop_header
                %s2558 = sphi 0, %s2560
                %p2559 = scmp.ge.s32.totalorder %s2558, %s2556
                %s2563 = sphi 0, %s2696
                %s2564 = sphi %s2536, %s2699
                %s2565 = sphi %s2547, %s2700
              $region63: #{tpu_custom_call.1} parent=59 // loop_header_branch
                %2562 = sbr.rel (%p2559) target = $region67
              $region64: #{tpu_custom_call.1} parent=59 // loop_body
                %v2566 = vld [vmem:[%s2564] sm:$0xff]
                %2567 = vst [vmem:[%s2565] sm:$0xff] %v2566
                %v2568 = vld [vmem:[%s2564 + $0x8] sm:$0xff]
                %2569 = vst [vmem:[%s2565 + $0x8] sm:$0xff] %v2568
                %v2570 = vld [vmem:[%s2564 + $0x10] sm:$0xff]
                %2571 = vst [vmem:[%s2565 + $0x10] sm:$0xff] %v2570
                %v2572 = vld [vmem:[%s2564 + $0x18] sm:$0xff]
                %2573 = vst [vmem:[%s2565 + $0x18] sm:$0xff] %v2572
                %v2574 = vld [vmem:[%s2564 + $0x20] sm:$0xff]
                %2575 = vst [vmem:[%s2565 + $0x20] sm:$0xff] %v2574
                %v2576 = vld [vmem:[%s2564 + $0x28] sm:$0xff]
                %2577 = vst [vmem:[%s2565 + $0x28] sm:$0xff] %v2576
                %v2578 = vld [vmem:[%s2564 + $0x30] sm:$0xff]
                %2579 = vst [vmem:[%s2565 + $0x30] sm:$0xff] %v2578
                %v2580 = vld [vmem:[%s2564 + $0x38] sm:$0xff]
                %2581 = vst [vmem:[%s2565 + $0x38] sm:$0xff] %v2580
                %v2582 = vld [vmem:[%s2564 + $0x40] sm:$0xff]
                %2583 = vst [vmem:[%s2565 + $0x40] sm:$0xff] %v2582
                %v2584 = vld [vmem:[%s2564 + $0x48] sm:$0xff]
                %2585 = vst [vmem:[%s2565 + $0x48] sm:$0xff] %v2584
                %v2586 = vld [vmem:[%s2564 + $0x50] sm:$0xff]
                %2587 = vst [vmem:[%s2565 + $0x50] sm:$0xff] %v2586
                %v2588 = vld [vmem:[%s2564 + $0x58] sm:$0xff]
                %2589 = vst [vmem:[%s2565 + $0x58] sm:$0xff] %v2588
                %v2590 = vld [vmem:[%s2564 + $0x60] sm:$0xff]
                %2591 = vst [vmem:[%s2565 + $0x60] sm:$0xff] %v2590
                %v2592 = vld [vmem:[%s2564 + $0x68] sm:$0xff]
                %2593 = vst [vmem:[%s2565 + $0x68] sm:$0xff] %v2592
                %v2594 = vld [vmem:[%s2564 + $0x70] sm:$0xff]
                %2595 = vst [vmem:[%s2565 + $0x70] sm:$0xff] %v2594
                %v2596 = vld [vmem:[%s2564 + $0x78] sm:$0xff]
                %2597 = vst [vmem:[%s2565 + $0x78] sm:$0xff] %v2596
                %v2598 = vld [vmem:[%s2564 + $0x80] sm:$0xff]
                %2599 = vst [vmem:[%s2565 + $0x80] sm:$0xff] %v2598
                %v2600 = vld [vmem:[%s2564 + $0x88] sm:$0xff]
                %2601 = vst [vmem:[%s2565 + $0x88] sm:$0xff] %v2600
                %v2602 = vld [vmem:[%s2564 + $0x90] sm:$0xff]
                %2603 = vst [vmem:[%s2565 + $0x90] sm:$0xff] %v2602
                %v2604 = vld [vmem:[%s2564 + $0x98] sm:$0xff]
                %2605 = vst [vmem:[%s2565 + $0x98] sm:$0xff] %v2604
                %v2606 = vld [vmem:[%s2564 + $0xa0] sm:$0xff]
                %2607 = vst [vmem:[%s2565 + $0xa0] sm:$0xff] %v2606
                %v2608 = vld [vmem:[%s2564 + $0xa8] sm:$0xff]
                %2609 = vst [vmem:[%s2565 + $0xa8] sm:$0xff] %v2608
                %v2610 = vld [vmem:[%s2564 + $0xb0] sm:$0xff]
                %2611 = vst [vmem:[%s2565 + $0xb0] sm:$0xff] %v2610
                %v2612 = vld [vmem:[%s2564 + $0xb8] sm:$0xff]
                %2613 = vst [vmem:[%s2565 + $0xb8] sm:$0xff] %v2612
                %v2614 = vld [vmem:[%s2564 + $0xc0] sm:$0xff]
                %2615 = vst [vmem:[%s2565 + $0xc0] sm:$0xff] %v2614
                %v2616 = vld [vmem:[%s2564 + $0xc8] sm:$0xff]
                %2617 = vst [vmem:[%s2565 + $0xc8] sm:$0xff] %v2616
                %v2618 = vld [vmem:[%s2564 + $0xd0] sm:$0xff]
                %2619 = vst [vmem:[%s2565 + $0xd0] sm:$0xff] %v2618
                %v2620 = vld [vmem:[%s2564 + $0xd8] sm:$0xff]
                %2621 = vst [vmem:[%s2565 + $0xd8] sm:$0xff] %v2620
                %v2622 = vld [vmem:[%s2564 + $0xe0] sm:$0xff]
                %2623 = vst [vmem:[%s2565 + $0xe0] sm:$0xff] %v2622
                %v2624 = vld [vmem:[%s2564 + $0xe8] sm:$0xff]
                %2625 = vst [vmem:[%s2565 + $0xe8] sm:$0xff] %v2624
                %v2626 = vld [vmem:[%s2564 + $0xf0] sm:$0xff]
                %2627 = vst [vmem:[%s2565 + $0xf0] sm:$0xff] %v2626
                %v2628 = vld [vmem:[%s2564 + $0xf8] sm:$0xff]
                %2629 = vst [vmem:[%s2565 + $0xf8] sm:$0xff] %v2628
                %v2630 = vld [vmem:[%s2564 + $0x100] sm:$0xff]
                %2631 = vst [vmem:[%s2565 + $0x100] sm:$0xff] %v2630
                %v2632 = vld [vmem:[%s2564 + $0x108] sm:$0xff]
                %2633 = vst [vmem:[%s2565 + $0x108] sm:$0xff] %v2632
                %v2634 = vld [vmem:[%s2564 + $0x110] sm:$0xff]
                %2635 = vst [vmem:[%s2565 + $0x110] sm:$0xff] %v2634
                %v2636 = vld [vmem:[%s2564 + $0x118] sm:$0xff]
                %2637 = vst [vmem:[%s2565 + $0x118] sm:$0xff] %v2636
                %v2638 = vld [vmem:[%s2564 + $0x120] sm:$0xff]
                %2639 = vst [vmem:[%s2565 + $0x120] sm:$0xff] %v2638
                %v2640 = vld [vmem:[%s2564 + $0x128] sm:$0xff]
                %2641 = vst [vmem:[%s2565 + $0x128] sm:$0xff] %v2640
                %v2642 = vld [vmem:[%s2564 + $0x130] sm:$0xff]
                %2643 = vst [vmem:[%s2565 + $0x130] sm:$0xff] %v2642
                %v2644 = vld [vmem:[%s2564 + $0x138] sm:$0xff]
                %2645 = vst [vmem:[%s2565 + $0x138] sm:$0xff] %v2644
                %v2646 = vld [vmem:[%s2564 + $0x140] sm:$0xff]
                %2647 = vst [vmem:[%s2565 + $0x140] sm:$0xff] %v2646
                %v2648 = vld [vmem:[%s2564 + $0x148] sm:$0xff]
                %2649 = vst [vmem:[%s2565 + $0x148] sm:$0xff] %v2648
                %v2650 = vld [vmem:[%s2564 + $0x150] sm:$0xff]
                %2651 = vst [vmem:[%s2565 + $0x150] sm:$0xff] %v2650
                %v2652 = vld [vmem:[%s2564 + $0x158] sm:$0xff]
                %2653 = vst [vmem:[%s2565 + $0x158] sm:$0xff] %v2652
                %v2654 = vld [vmem:[%s2564 + $0x160] sm:$0xff]
                %2655 = vst [vmem:[%s2565 + $0x160] sm:$0xff] %v2654
                %v2656 = vld [vmem:[%s2564 + $0x168] sm:$0xff]
                %2657 = vst [vmem:[%s2565 + $0x168] sm:$0xff] %v2656
                %v2658 = vld [vmem:[%s2564 + $0x170] sm:$0xff]
                %2659 = vst [vmem:[%s2565 + $0x170] sm:$0xff] %v2658
                %v2660 = vld [vmem:[%s2564 + $0x178] sm:$0xff]
                %2661 = vst [vmem:[%s2565 + $0x178] sm:$0xff] %v2660
                %v2662 = vld [vmem:[%s2564 + $0x180] sm:$0xff]
                %2663 = vst [vmem:[%s2565 + $0x180] sm:$0xff] %v2662
                %v2664 = vld [vmem:[%s2564 + $0x188] sm:$0xff]
                %2665 = vst [vmem:[%s2565 + $0x188] sm:$0xff] %v2664
                %v2666 = vld [vmem:[%s2564 + $0x190] sm:$0xff]
                %2667 = vst [vmem:[%s2565 + $0x190] sm:$0xff] %v2666
                %v2668 = vld [vmem:[%s2564 + $0x198] sm:$0xff]
                %2669 = vst [vmem:[%s2565 + $0x198] sm:$0xff] %v2668
                %v2670 = vld [vmem:[%s2564 + $0x1a0] sm:$0xff]
                %2671 = vst [vmem:[%s2565 + $0x1a0] sm:$0xff] %v2670
                %v2672 = vld [vmem:[%s2564 + $0x1a8] sm:$0xff]
                %2673 = vst [vmem:[%s2565 + $0x1a8] sm:$0xff] %v2672
                %v2674 = vld [vmem:[%s2564 + $0x1b0] sm:$0xff]
                %2675 = vst [vmem:[%s2565 + $0x1b0] sm:$0xff] %v2674
                %v2676 = vld [vmem:[%s2564 + $0x1b8] sm:$0xff]
                %2677 = vst [vmem:[%s2565 + $0x1b8] sm:$0xff] %v2676
                %v2678 = vld [vmem:[%s2564 + $0x1c0] sm:$0xff]
                %2679 = vst [vmem:[%s2565 + $0x1c0] sm:$0xff] %v2678
                %v2680 = vld [vmem:[%s2564 + $0x1c8] sm:$0xff]
                %2681 = vst [vmem:[%s2565 + $0x1c8] sm:$0xff] %v2680
                %v2682 = vld [vmem:[%s2564 + $0x1d0] sm:$0xff]
                %2683 = vst [vmem:[%s2565 + $0x1d0] sm:$0xff] %v2682
                %v2684 = vld [vmem:[%s2564 + $0x1d8] sm:$0xff]
                %2685 = vst [vmem:[%s2565 + $0x1d8] sm:$0xff] %v2684
                %v2686 = vld [vmem:[%s2564 + $0x1e0] sm:$0xff]
                %2687 = vst [vmem:[%s2565 + $0x1e0] sm:$0xff] %v2686
                %v2688 = vld [vmem:[%s2564 + $0x1e8] sm:$0xff]
                %2689 = vst [vmem:[%s2565 + $0x1e8] sm:$0xff] %v2688
                %v2690 = vld [vmem:[%s2564 + $0x1f0] sm:$0xff]
                %2691 = vst [vmem:[%s2565 + $0x1f0] sm:$0xff] %v2690
                %v2692 = vld [vmem:[%s2564 + $0x1f8] sm:$0xff]
                %2693 = vst [vmem:[%s2565 + $0x1f8] sm:$0xff] %v2692
                %s2694 = sadd.s32 1, %s2563
                %p2695 = scmp.ge.s32.totalorder %s2694, %s2556
                %s2696 = scalar_select %p2695, 0, %s2694
                %s2697 = smul.u32 %s2696, 512
                %s2698 = smul.u32 %s2696, 512
                %s2699 = scalar_lea.vmem %s2536, %s2697 [#allocation2]
                %s2700 = scalar_lea.vmem %s2547, %s2698
              $region65: #{tpu_custom_call.1} parent=59 // loop_footer
                %s2560 = sadd.s32 %s2558, 1
              $region66: #{tpu_custom_call.1} parent=59 // loop_footer_branch
                %2557 = sbr.rel target = $region62
              $region67: #{tpu_custom_call.1} parent=59 // loop_exit
                _
              %s2701 = sshrl.u32 %s2543, 6
              %s2702 = sand.u32 %s2543, 63
              %s2703 = smul.u32 %s2701, 64
              %s2704 = smul.u32 8, %s2703
              %s2705 = scalar_lea.vmem %s2536, %s2704 [#allocation2]
              %s2706 = smul.u32 8, %s2703
              %s2707 = scalar_lea.vmem %s2547, %s2706
              // While loop
              $region68: #{tpu_custom_call.1} parent=59 // loop_pre_header
                _
              $region69: #{tpu_custom_call.1} parent=59 // loop_header
                %s2709 = sphi 0, %s2711
                %p2710 = scmp.ge.s32.totalorder %s2709, %s2702
                %s2714 = sphi 0, %s2721
                %s2715 = sphi %s2705, %s2724
                %s2716 = sphi %s2707, %s2725
              $region70: #{tpu_custom_call.1} parent=59 // loop_header_branch
                %2713 = sbr.rel (%p2710) target = $region74
              $region71: #{tpu_custom_call.1} parent=59 // loop_body
                %v2717 = vld [vmem:[%s2715] sm:$0xff]
                %2718 = vst [vmem:[%s2716] sm:$0xff] %v2717
                %s2719 = sadd.s32 1, %s2714
                %p2720 = scmp.ge.s32.totalorder %s2719, %s2702
                %s2721 = scalar_select %p2720, 0, %s2719
                %s2722 = smul.u32 %s2721, 8
                %s2723 = smul.u32 %s2721, 8
                %s2724 = scalar_lea.vmem %s2705, %s2722 [#allocation2]
                %s2725 = scalar_lea.vmem %s2707, %s2723
              $region72: #{tpu_custom_call.1} parent=59 // loop_footer
                %s2711 = sadd.s32 %s2709, 1
              $region73: #{tpu_custom_call.1} parent=59 // loop_footer_branch
                %2708 = sbr.rel target = $region69
              $region74: #{tpu_custom_call.1} parent=59 // loop_exit
                _
            $region60: #{tpu_custom_call.1} parent=51 // pred_fallthru
              _
          $region52: #{tpu_custom_call.1} parent=47 // pred_fallthru
            _
          %2900 = vnop
        $region48: #{tpu_custom_call.1} parent=43 // pred_fallthru
          _
      $region44: #{tpu_custom_call.1} parent=5 // pred_fallthru
        _
      %p2901 = scmp.le.s32.totalorder 2, %s12
      // Predicated region
      $region97: #{tpu_custom_call.1} parent=5 // pred_check
        %p2902 = pneg %p2901
      $region98: #{tpu_custom_call.1} parent=5 // pred_check_branch
        %2904 = sbr.rel (%p2902) target = $region100
      $region99: #{tpu_custom_call.1} parent=5 // pred_region
        %s2905 = ssub.s32 %s12, 2
        // Predicated region
        $region101: #{tpu_custom_call.1} parent=99 // pred_check
          %p2906 = pneg %p172
        $region102: #{tpu_custom_call.1} parent=99 // pred_check_branch
          %2908 = sbr.rel (%p2906) target = $region104
        $region103: #{tpu_custom_call.1} parent=99 // pred_region
          %s2909 = sand.u32 %s157, 1
          %s2910 = sand.u32 %s157, 1
          %s2911 = smul.addr %s2910, 512
          %s2912 = scalar_lea.vmem [#allocation2], %s2911
        $region104: #{tpu_custom_call.1} parent=99 // pred_fallthru
          _
      $region100: #{tpu_custom_call.1} parent=5 // pred_fallthru
        _
    $region6: #{tpu_custom_call.1} parent=1 // loop_footer
      %s16 = sadd.s32 1, %s12
    $region7: #{tpu_custom_call.1} parent=1 // loop_footer_branch
      %11 = sbr.rel target = $region3
    $region8: #{tpu_custom_call.1} parent=1 // loop_exit
      _

// kernel: tpu_custom_call.1
$region0: #{tpu_custom_call.1}
  #allocation0 [shape = 'u32[]', space=smem, size = 0x4, offset = 0x4, fixed_abs, tag = 'smem constant byte address 0x4 - core index']
  #allocation1 [shape = 'u32[144,128]{1,0:T(1,128)}', space=vmem, size = 0x12000, scoped, tag = 'internal scratch']
  %s0 = inlined_call_operand.vmem [shape: f32[1000,16], index: 0, kind: input, shape index: {}]
  %s1 = inlined_call_operand.vmem [shape: f32[40,16], index: 1, kind: input, shape index: {}]
  %s2 = inlined_call_operand.vmem [shape: f32[40,32], index: 2, kind: input, shape index: {}]
  %s3 = inlined_call_operand.vmem [shape: f32[40,32], index: 3, kind: input, shape index: {}]
  %s4 = inlined_call_operand.vmem [shape: f32[40,32], index: 4, kind: input, shape index: {}]
  %s5 = inlined_call_operand.vmem [shape: f32[40,12], index: 5, kind: input, shape index: {}]
  %s6 = inlined_call_operand.hbm [shape: f32[32,1000], index: 6, kind: output, shape index: {}]
  %s7 = sld [smem:[#allocation0]]
  $region57: #{tpu_custom_call.1} parent=0
    _
  %s9 = ssub.s32 1, %s7
  %s10 = scalar_select 0, %s9, %s7
  $region1: #{tpu_custom_call.1} parent=0
    #allocation2 [shape = 'u8[131072]{0}', space=vmem, size = 0x20000, scoped, tag = 'output window, operand 0']
    #allocation3 [shape = 's32[2]{0}', space=sflag, size = 0x8, scoped, tag = 'scoped memory for tpu_custom_call.1']
    %11 = vsyncpa [#allocation3], 0
    %s12 = scalar_lea.sflag [#allocation3], 1
    %13 = vsyncpa %s12, 0
    loop: start=0, step=1, limit=4
    $region2: #{tpu_custom_call.1} parent=1 // loop_pre_header
      _
    $region3: #{tpu_custom_call.1} parent=1 // loop_header
      %s15 = sphi 0, %s19
      %p16 = scmp.ge.s32.totalorder %s15, 4
      %s25 = sphi 0, %s27
      %s28 = sphi 0, %s25
      %s29 = sphi 0, %s28
      %s45 = sphi 0, %s29
      %s49 = sphi 0, %s49
      %s51 = sphi 0, %s49
      %s52 = sphi 0, %s51
      %s66 = sphi 0, %s52
      %s70 = sphi 0, %s70
      %s72 = sphi 0, %s70
      %s73 = sphi 0, %s72
      %s87 = sphi 0, %s73
      %s91 = sphi 0, %s91
      %s93 = sphi 0, %s91
      %s94 = sphi 0, %s93
      %s108 = sphi 0, %s94
      %s112 = sphi 0, %s112
      %s114 = sphi 0, %s112
      %s115 = sphi 0, %s114
      %s129 = sphi 0, %s115
      %s133 = sphi 0, %s133
      %s135 = sphi 0, %s133
      %s136 = sphi 0, %s135
      %s150 = sphi 0, %s136
      %s156 = sphi 0, %s158
      %s159 = sphi 0, %s156
      %s160 = sphi 0, %s159
      %s176 = sphi 0, %s160
    $region4: #{tpu_custom_call.1} parent=1 // loop_header_branch
      %18 = sbr.rel (%p16) target = $region8
    $region5: #{tpu_custom_call.1} parent=1 // loop_body
      %s20 = ssub.s32 %s15, 1
      %s21 = ssub.s32 %s15, 2
      %s22 = sadd.s32 %s15, 1
      %s23 = ssub.s32 %s15, %s22
      %p24 = scmp.eq.s32.totalorder %s23, 0
      %s26 = sadd.s32 %s25, 1
      %s27 = scalar_select %p24, %s25, %s26
      %p30 = pneg %p24
      %p31 = scmp.eq.s32.totalorder %s15, 1
      %p32 = por %p30, %p31
      %p33 = scmp.ne.s32.totalorder %s25, %s28
      %p34 = scmp.eq.s32.totalorder %s15, 0
      %p35 = por %p33, %p34
      %p36 = scmp.ne.s32.totalorder %s25, %s28
      %p37 = scmp.eq.s32.totalorder %s20, 1
      %p38 = por %p36, %p37
      %p39 = scmp.ne.s32.totalorder %s28, %s29
      %p40 = scmp.eq.s32.totalorder %s20, 0
      %p41 = por %p39, %p40
      %p42 = scmp.ne.s32.totalorder %s28, %s29
      %p43 = scmp.eq.s32.totalorder %s21, 1
      %p44 = por %p42, %p43
      %p46 = scmp.ne.s32.totalorder %s29, %s45
      %p47 = scmp.eq.s32.totalorder %s21, 0
      %p48 = por %p46, %p47
      %s50 = sadd.s32 %s49, 1
      %p53 = scmp.eq.s32.totalorder %s15, 1
      %p54 = scmp.ne.s32.totalorder %s49, %s51
      %p55 = scmp.eq.s32.totalorder %s15, 0
      %p56 = por %p54, %p55
      %p57 = scmp.ne.s32.totalorder %s49, %s51
      %p58 = scmp.eq.s32.totalorder %s20, 1
      %p59 = por %p57, %p58
      %p60 = scmp.ne.s32.totalorder %s51, %s52
      %p61 = scmp.eq.s32.totalorder %s20, 0
      %p62 = por %p60, %p61
      %p63 = scmp.ne.s32.totalorder %s51, %s52
      %p64 = scmp.eq.s32.totalorder %s21, 1
      %p65 = por %p63, %p64
      %p67 = scmp.ne.s32.totalorder %s52, %s66
      %p68 = scmp.eq.s32.totalorder %s21, 0
      %p69 = por %p67, %p68
      %s71 = sadd.s32 %s70, 1
      %p74 = scmp.eq.s32.totalorder %s15, 1
      %p75 = scmp.ne.s32.totalorder %s70, %s72
      %p76 = scmp.eq.s32.totalorder %s15, 0
      %p77 = por %p75, %p76
      %p78 = scmp.ne.s32.totalorder %s70, %s72
      %p79 = scmp.eq.s32.totalorder %s20, 1
      %p80 = por %p78, %p79
      %p81 = scmp.ne.s32.totalorder %s72, %s73
      %p82 = scmp.eq.s32.totalorder %s20, 0
      %p83 = por %p81, %p82
      %p84 = scmp.ne.s32.totalorder %s72, %s73
      %p85 = scmp.eq.s32.totalorder %s21, 1
      %p86 = por %p84, %p85
      %p88 = scmp.ne.s32.totalorder %s73, %s87
      %p89 = scmp.eq.s32.totalorder %s21, 0
      %p90 = por %p88, %p89
      %s92 = sadd.s32 %s91, 1
      %p95 = scmp.eq.s32.totalorder %s15, 1
      %p96 = scmp.ne.s32.totalorder %s91, %s93
      %p97 = scmp.eq.s32.totalorder %s15, 0
      %p98 = por %p96, %p97
      %p99 = scmp.ne.s32.totalorder %s91, %s93
      %p100 = scmp.eq.s32.totalorder %s20, 1
      %p101 = por %p99, %p100
      %p102 = scmp.ne.s32.totalorder %s93, %s94
      %p103 = scmp.eq.s32.totalorder %s20, 0
      %p104 = por %p102, %p103
      %p105 = scmp.ne.s32.totalorder %s93, %s94
      %p106 = scmp.eq.s32.totalorder %s21, 1
      %p107 = por %p105, %p106
      %p109 = scmp.ne.s32.totalorder %s94, %s108
      %p110 = scmp.eq.s32.totalorder %s21, 0
      %p111 = por %p109, %p110
      %s113 = sadd.s32 %s112, 1
      %p116 = scmp.eq.s32.totalorder %s15, 1
      %p117 = scmp.ne.s32.totalorder %s112, %s114
      %p118 = scmp.eq.s32.totalorder %s15, 0
      %p119 = por %p117, %p118
      %p120 = scmp.ne.s32.totalorder %s112, %s114
      %p121 = scmp.eq.s32.totalorder %s20, 1
      %p122 = por %p120, %p121
      %p123 = scmp.ne.s32.totalorder %s114, %s115
      %p124 = scmp.eq.s32.totalorder %s20, 0
      %p125 = por %p123, %p124
      %p126 = scmp.ne.s32.totalorder %s114, %s115
      %p127 = scmp.eq.s32.totalorder %s21, 1
      %p128 = por %p126, %p127
      %p130 = scmp.ne.s32.totalorder %s115, %s129
      %p131 = scmp.eq.s32.totalorder %s21, 0
      %p132 = por %p130, %p131
      %s134 = sadd.s32 %s133, 1
      %p137 = scmp.eq.s32.totalorder %s15, 1
      %p138 = scmp.ne.s32.totalorder %s133, %s135
      %p139 = scmp.eq.s32.totalorder %s15, 0
      %p140 = por %p138, %p139
      %p141 = scmp.ne.s32.totalorder %s133, %s135
      %p142 = scmp.eq.s32.totalorder %s20, 1
      %p143 = por %p141, %p142
      %p144 = scmp.ne.s32.totalorder %s135, %s136
      %p145 = scmp.eq.s32.totalorder %s20, 0
      %p146 = por %p144, %p145
      %p147 = scmp.ne.s32.totalorder %s135, %s136
      %p148 = scmp.eq.s32.totalorder %s21, 1
      %p149 = por %p147, %p148
      %p151 = scmp.ne.s32.totalorder %s136, %s150
      %p152 = scmp.eq.s32.totalorder %s21, 0
      %p153 = por %p151, %p152
      %s154 = ssub.s32 %s15, %s22
      %p155 = scmp.eq.s32.totalorder %s154, 0
      %s157 = sadd.s32 %s156, 1
      %s158 = scalar_select %p155, %s156, %s157
      %p161 = pneg %p155
      %p162 = scmp.eq.s32.totalorder %s15, 1
      %p163 = por %p161, %p162
      %p164 = scmp.ne.s32.totalorder %s156, %s159
      %p165 = scmp.eq.s32.totalorder %s15, 0
      %p166 = por %p164, %p165
      %p167 = scmp.ne.s32.totalorder %s156, %s159
      %p168 = scmp.eq.s32.totalorder %s20, 1
      %p169 = por %p167, %p168
      %p170 = scmp.ne.s32.totalorder %s159, %s160
      %p171 = scmp.eq.s32.totalorder %s20, 0
      %p172 = por %p170, %p171
      %p173 = scmp.ne.s32.totalorder %s159, %s160
      %p174 = scmp.eq.s32.totalorder %s21, 1
      %p175 = por %p173, %p174
      %p177 = scmp.ne.s32.totalorder %s160, %s176
      %p178 = scmp.eq.s32.totalorder %s21, 0
      %p179 = por %p177, %p178
      %p180 = scmp.le.s32.totalorder 1, %s15
      %p181 = scmp.lt.s32.totalorder %s15, 3
      %p182 = pnand %p180, %p181
      %p183 = pneg %p182
      // Predicated region
      $region9: #{tpu_custom_call.1} parent=5 // pred_check
        _
      $region10: #{tpu_custom_call.1} parent=5 // pred_check_branch
        %185 = sbr.rel (%p182) target = $region12
      $region11: #{tpu_custom_call.1} parent=5 // pred_region
        %s186 = ssub.s32 %s15, 1
        // Predicated region
        $region13: #{tpu_custom_call.1} parent=11 // pred_check
          %p187 = pneg %p62
        $region14: #{tpu_custom_call.1} parent=11 // pred_check_branch
          %189 = sbr.rel (%p187) target = $region16
        $region15: #{tpu_custom_call.1} parent=11 // pred_region
          _
        $region16: #{tpu_custom_call.1} parent=11 // pred_fallthru
          _
        // Predicated region
        $region17: #{tpu_custom_call.1} parent=11 // pred_check
          %p190 = pneg %p83
        $region18: #{tpu_custom_call.1} parent=11 // pred_check_branch
          %192 = sbr.rel (%p190) target = $region20
        $region19: #{tpu_custom_call.1} parent=11 // pred_region
          _
        $region20: #{tpu_custom_call.1} parent=11 // pred_fallthru
          _
        // Predicated region
        $region21: #{tpu_custom_call.1} parent=11 // pred_check
          %p193 = pneg %p104
        $region22: #{tpu_custom_call.1} parent=11 // pred_check_branch
          %195 = sbr.rel (%p193) target = $region24
        $region23: #{tpu_custom_call.1} parent=11 // pred_region
          _
        $region24: #{tpu_custom_call.1} parent=11 // pred_fallthru
          _
        // Predicated region
        $region25: #{tpu_custom_call.1} parent=11 // pred_check
          %p196 = pneg %p125
        $region26: #{tpu_custom_call.1} parent=11 // pred_check_branch
          %198 = sbr.rel (%p196) target = $region28
        $region27: #{tpu_custom_call.1} parent=11 // pred_region
          _
        $region28: #{tpu_custom_call.1} parent=11 // pred_fallthru
          _
        // Predicated region
        $region29: #{tpu_custom_call.1} parent=11 // pred_check
          %p199 = pneg %p146
        $region30: #{tpu_custom_call.1} parent=11 // pred_check_branch
          %201 = sbr.rel (%p199) target = $region32
        $region31: #{tpu_custom_call.1} parent=11 // pred_region
          _
        $region32: #{tpu_custom_call.1} parent=11 // pred_fallthru
          _
      $region12: #{tpu_custom_call.1} parent=5 // pred_fallthru
        _
      %p202 = scmp.lt.s32.totalorder %s15, 2
      // Predicated region
      $region33: #{tpu_custom_call.1} parent=5 // pred_check
        %p203 = pneg %p202
      $region34: #{tpu_custom_call.1} parent=5 // pred_check_branch
        %205 = sbr.rel (%p203) target = $region36
      $region35: #{tpu_custom_call.1} parent=5 // pred_region
        // Predicated region
        $region37: #{tpu_custom_call.1} parent=35 // pred_check
          %p206 = pneg %p35
        $region38: #{tpu_custom_call.1} parent=35 // pred_check_branch
          %208 = sbr.rel (%p206) target = $region40
        $region39: #{tpu_custom_call.1} parent=35 // pred_region
          %s209 = smul.u32 64, %s15
          %s210 = ssub.s32 125, %s209
          %p211 = scmp.lt.s32.totalorder %s210, 64
          %s212 = scalar_select %p211, %s210, 64
          %s213 = smul.u32 128, %s212
          %p214 = scmp.lt.s32.totalorder %s209, 124
          %s215 = scalar_select %p214, %s209, 124
          %s216 = smul.addr %s215, 8
          %s217 = scalar_lea.vmem %s0, %s216
          %s218 = smul.u32 64, %s15
          %s219 = ssub.s32 125, %s218
          %p220 = scmp.lt.s32.totalorder %s219, 64
          %s221 = scalar_select %p220, %s219, 64
          %s222 = smul.u32 128, %s221
        $region40: #{tpu_custom_call.1} parent=35 // pred_fallthru
          _
      $region36: #{tpu_custom_call.1} parent=5 // pred_fallthru
        _
      %p223 = scmp.le.s32.totalorder 1, %s15
      %p224 = scmp.lt.s32.totalorder %s15, 3
      %p225 = pnand %p223, %p224
      %p226 = pneg %p225
      // Predicated region
      $region41: #{tpu_custom_call.1} parent=5 // pred_check
        _
      $region42: #{tpu_custom_call.1} parent=5 // pred_check_branch
        %228 = sbr.rel (%p225) target = $region44
      $region43: #{tpu_custom_call.1} parent=5 // pred_region
        %s229 = ssub.s32 %s15, 1
        %s230 = smul.u32 64, %s20
        %s231 = ssub.s32 125, %s230
        %p232 = scmp.lt.s32.totalorder %s231, 64
        %s233 = scalar_select %p232, %s231, 64
        %s234 = smul.u32 128, %s233
        %p235 = scmp.lt.s32.totalorder %s230, 124
        %s236 = scalar_select %p235, %s230, 124
        %s237 = smul.addr %s236, 8
        %s238 = scalar_lea.vmem %s0, %s237
        %p239 = pneg %p41
        %p240 = pneg %p38
        %p241 = pneg %p62
        %p242 = pneg %p59
        %p243 = pneg %p83
        %p244 = pneg %p80
        %p245 = pneg %p104
        %p246 = pneg %p101
        %p247 = pneg %p125
        %p248 = pneg %p122
        %p249 = pneg %p146
        %p250 = pneg %p143
        %p251 = pneg %p172
        %p252 = pneg %p169
        %s253 = sand.u32 %s159, 1
        %s254 = scalar_lea.sflag [#allocation3], %s253
        %s255 = sand.u32 %s159, 1
        %s256 = smul.addr %s255, 128
        %s257 = scalar_lea.vmem [#allocation2], %s256
        %s258 = smul.u32 64, %s20
        %s259 = ssub.s32 125, %s258
        %p260 = scmp.lt.s32.totalorder %s259, 64
        %s261 = scalar_select %p260, %s259, 64
        %s262 = smul.u32 128, %s261
        %p263 = scmp.lt.s32.totalorder %s258, 124
        %s264 = scalar_select %p263, %s258, 124
        %s265 = smul.addr %s264, 8
        %s266 = scalar_lea.vmem %s0, %s265
        %s267 = smul.u32 64, %s20
        %s268 = ssub.s32 125, %s267
        %p269 = scmp.lt.s32.totalorder %s268, 64
        %s270 = scalar_select %p269, %s268, 64
        %s271 = smul.u32 128, %s270
        %s272 = smul.u32 4, %s20
        %v273 = vld [vmem:[%s5] sm:$0xff]
        %v274 = vld [vmem:[%s5 + $0x8] sm:$0xff]
        %v275 = vld [vmem:[%s5 + $0x10] sm:$0xff]
        %v276 = vld [vmem:[%s5 + $0x18] sm:$0xff]
        %v277 = vld [vmem:[%s5 + $0x20] sm:$0xff]
        %v278 = vld [vmem:[%s266] sm:$0xff]
        %v279 = vld [vmem:[%s266 + $0x8] sm:$0xff]
        %v280 = vld [vmem:[%s266 + $0x10] sm:$0xff]
        %v281 = vld [vmem:[%s266 + $0x18] sm:$0xff]
        %v282 = vld [vmem:[%s266 + $0x20] sm:$0xff]
        %v283 = vld [vmem:[%s266 + $0x28] sm:$0xff]
        %v284 = vld [vmem:[%s266 + $0x30] sm:$0xff]
        %v285 = vld [vmem:[%s266 + $0x38] sm:$0xff]
        %v286 = vld [vmem:[%s266 + $0x40] sm:$0xff]
        %v287 = vld [vmem:[%s266 + $0x48] sm:$0xff]
        %v288 = vld [vmem:[%s266 + $0x50] sm:$0xff]
        %v289 = vld [vmem:[%s266 + $0x58] sm:$0xff]
        %v290 = vld [vmem:[%s266 + $0x60] sm:$0xff]
        %v291 = vld [vmem:[%s266 + $0x68] sm:$0xff]
        %v292 = vld [vmem:[%s266 + $0x70] sm:$0xff]
        %v293 = vld [vmem:[%s266 + $0x78] sm:$0xff]
        %v294 = vld [vmem:[%s266 + $0x80] sm:$0xff]
        %v295 = vld [vmem:[%s266 + $0x88] sm:$0xff]
        %v296 = vld [vmem:[%s266 + $0x90] sm:$0xff]
        %v297 = vld [vmem:[%s266 + $0x98] sm:$0xff]
        %v298 = vld [vmem:[%s266 + $0xa0] sm:$0xff]
        %v299 = vld [vmem:[%s266 + $0xa8] sm:$0xff]
        %v300 = vld [vmem:[%s266 + $0xb0] sm:$0xff]
        %v301 = vld [vmem:[%s266 + $0xb8] sm:$0xff]
        %v302 = vld [vmem:[%s266 + $0xc0] sm:$0xff]
        %v303 = vld [vmem:[%s266 + $0xc8] sm:$0xff]
        %v304 = vld [vmem:[%s266 + $0xd0] sm:$0xff]
        %v305 = vld [vmem:[%s266 + $0xd8] sm:$0xff]
        %v306 = vld [vmem:[%s266 + $0xe0] sm:$0xff]
        %v307 = vld [vmem:[%s266 + $0xe8] sm:$0xff]
        %v308 = vld [vmem:[%s266 + $0xf0] sm:$0xff]
        %v309 = vld [vmem:[%s266 + $0xf8] sm:$0xff]
        %v310 = vld [vmem:[%s266 + $0x100] sm:$0xff]
        %v311 = vld [vmem:[%s266 + $0x108] sm:$0xff]
        %v312 = vld [vmem:[%s266 + $0x110] sm:$0xff]
        %v313 = vld [vmem:[%s266 + $0x118] sm:$0xff]
        %v314 = vld [vmem:[%s266 + $0x120] sm:$0xff]
        %v315 = vld [vmem:[%s266 + $0x128] sm:$0xff]
        %v316 = vld [vmem:[%s266 + $0x130] sm:$0xff]
        %v317 = vld [vmem:[%s266 + $0x138] sm:$0xff]
        %v318 = vld [vmem:[%s266 + $0x140] sm:$0xff]
        %v319 = vld [vmem:[%s266 + $0x148] sm:$0xff]
        %v320 = vld [vmem:[%s266 + $0x150] sm:$0xff]
        %v321 = vld [vmem:[%s266 + $0x158] sm:$0xff]
        %v322 = vld [vmem:[%s266 + $0x160] sm:$0xff]
        %v323 = vld [vmem:[%s266 + $0x168] sm:$0xff]
        %v324 = vld [vmem:[%s266 + $0x170] sm:$0xff]
        %v325 = vld [vmem:[%s266 + $0x178] sm:$0xff]
        %v326 = vld [vmem:[%s266 + $0x180] sm:$0xff]
        %v327 = vld [vmem:[%s266 + $0x188] sm:$0xff]
        %v328 = vld [vmem:[%s266 + $0x190] sm:$0xff]
        %v329 = vld [vmem:[%s266 + $0x198] sm:$0xff]
        %v330 = vld [vmem:[%s266 + $0x1a0] sm:$0xff]
        %v331 = vld [vmem:[%s266 + $0x1a8] sm:$0xff]
        %v332 = vld [vmem:[%s266 + $0x1b0] sm:$0xff]
        %v333 = vld [vmem:[%s266 + $0x1b8] sm:$0xff]
        %v334 = vld [vmem:[%s266 + $0x1c0] sm:$0xff]
        %v335 = vld [vmem:[%s266 + $0x1c8] sm:$0xff]
        %v336 = vld [vmem:[%s266 + $0x1d0] sm:$0xff]
        %v337 = vld [vmem:[%s266 + $0x1d8] sm:$0xff]
        %v338 = vld [vmem:[%s266 + $0x1e0] sm:$0xff]
        %v339 = vld [vmem:[%s266 + $0x1e8] sm:$0xff]
        %v340 = vld [vmem:[%s266 + $0x1f0] sm:$0xff]
        %v341 = vld [vmem:[%s266 + $0x1f8] sm:$0xff]
        %v342 = vld [vmem:[%s1] sm:$0xff]
        %v343 = vld [vmem:[%s1 + $0x8] sm:$0xff]
        %v344 = vld [vmem:[%s1 + $0x10] sm:$0xff]
        %v345 = vld [vmem:[%s1 + $0x18] sm:$0xff]
        %v346 = vld [vmem:[%s1 + $0x20] sm:$0xff]
        %348 = vset.pattern.permute.xlu0 0
        %349 = vperm.xlu0 %348, %v273
        %v350 = vpop.permute.xlu0 %349
        %353 = vset.pattern.permute.xlu0 0
        %354 = vperm.xlu0 %353, %v274
        %v355 = vpop.permute.xlu0 %354
        %358 = vset.pattern.permute.xlu0 0
        %359 = vperm.xlu0 %358, %v275
        %v360 = vpop.permute.xlu0 %359
        %363 = vset.pattern.permute.xlu0 0
        %364 = vperm.xlu0 %363, %v276
        %v365 = vpop.permute.xlu0 %364
        %368 = vset.pattern.permute.xlu0 0
        %369 = vperm.xlu0 %368, %v277
        %v370 = vpop.permute.xlu0 %369
        %vm372 = vcmask 130048
        %v374 = vsel %vm372, %v342, 0
        %v377 = vsel %vm372, %v343, 0
        %v380 = vsel %vm372, %v344, 0
        %v383 = vsel %vm372, %v345, 0
        %v386 = vsel %vm372, %v346, 0
        %v389 = vsel %vm372, %v278, 0
        %v392 = vsel %vm372, %v279, 0
        %v395 = vsel %vm372, %v280, 0
        %v398 = vsel %vm372, %v281, 0
        %v401 = vsel %vm372, %v282, 0
        %v404 = vsel %vm372, %v283, 0
        %v407 = vsel %vm372, %v284, 0
        %v410 = vsel %vm372, %v285, 0
        %v413 = vsel %vm372, %v286, 0
        %v416 = vsel %vm372, %v287, 0
        %v419 = vsel %vm372, %v288, 0
        %v422 = vsel %vm372, %v289, 0
        %v425 = vsel %vm372, %v290, 0
        %v428 = vsel %vm372, %v291, 0
        %v431 = vsel %vm372, %v292, 0
        %v434 = vsel %vm372, %v293, 0
        %v437 = vsel %vm372, %v294, 0
        %v440 = vsel %vm372, %v295, 0
        %v443 = vsel %vm372, %v296, 0
        %v446 = vsel %vm372, %v297, 0
        %v449 = vsel %vm372, %v298, 0
        %v452 = vsel %vm372, %v299, 0
        %v455 = vsel %vm372, %v300, 0
        %v458 = vsel %vm372, %v301, 0
        %v461 = vsel %vm372, %v302, 0
        %v464 = vsel %vm372, %v303, 0
        %v467 = vsel %vm372, %v304, 0
        %v470 = vsel %vm372, %v305, 0
        %v473 = vsel %vm372, %v306, 0
        %v476 = vsel %vm372, %v307, 0
        %v479 = vsel %vm372, %v308, 0
        %v482 = vsel %vm372, %v309, 0
        %v485 = vsel %vm372, %v310, 0
        %v488 = vsel %vm372, %v311, 0
        %v491 = vsel %vm372, %v312, 0
        %v494 = vsel %vm372, %v313, 0
        %v497 = vsel %vm372, %v314, 0
        %v500 = vsel %vm372, %v315, 0
        %v503 = vsel %vm372, %v316, 0
        %v506 = vsel %vm372, %v317, 0
        %v509 = vsel %vm372, %v318, 0
        %v512 = vsel %vm372, %v319, 0
        %v515 = vsel %vm372, %v320, 0
        %v518 = vsel %vm372, %v321, 0
        %v521 = vsel %vm372, %v322, 0
        %v524 = vsel %vm372, %v323, 0
        %v527 = vsel %vm372, %v324, 0
        %v530 = vsel %vm372, %v325, 0
        %v533 = vsel %vm372, %v326, 0
        %v536 = vsel %vm372, %v327, 0
        %v539 = vsel %vm372, %v328, 0
        %v542 = vsel %vm372, %v329, 0
        %v545 = vsel %vm372, %v330, 0
        %v548 = vsel %vm372, %v331, 0
        %v551 = vsel %vm372, %v332, 0
        %v554 = vsel %vm372, %v333, 0
        %v557 = vsel %vm372, %v334, 0
        %v560 = vsel %vm372, %v335, 0
        %v563 = vsel %vm372, %v336, 0
        %v566 = vsel %vm372, %v337, 0
        %v569 = vsel %vm372, %v338, 0
        %v572 = vsel %vm372, %v339, 0
        %v575 = vsel %vm372, %v340, 0
        %v578 = vsel %vm372, %v341, 0
        %580 = vmatprep.subr.mxu0 0.0
        %581 = vmatpush1.xpose.msra.mxu0 %v389
        %582 = vmatprep.subr.mxu0 0.0
        %583 = vmatpush1.xpose.msra.mxu0 %v392
        %584 = vmatprep.subr.mxu0 0.0
        %585 = vmatpush1.xpose.msra.mxu0 %v395
        %586 = vmatprep.subr.mxu0 0.0
        %587 = vmatpush1.xpose.msra.mxu0 %v398
        %588 = vmatprep.subr.mxu0 0.0
        %589 = vmatpush1.xpose.msra.mxu0 %v401
        %590 = vmatprep.subr.mxu0 0.0
        %591 = vmatpush1.xpose.msra.mxu0 %v404
        %592 = vmatprep.subr.mxu0 0.0
        %593 = vmatpush1.xpose.msra.mxu0 %v407
        %594 = vmatprep.subr.mxu0 0.0
        %595 = vmatpush1.xpose.msra.mxu0 %v410
        %596 = vmatprep.subr.mxu0 0.0
        %597 = vmatpush1.xpose.msra.mxu0 %v413
        %598 = vmatprep.subr.mxu0 0.0
        %599 = vmatpush1.xpose.msra.mxu0 %v416
        %600 = vmatprep.subr.mxu0 0.0
        %601 = vmatpush1.xpose.msra.mxu0 %v419
        %602 = vmatprep.subr.mxu0 0.0
        %603 = vmatpush1.xpose.msra.mxu0 %v422
        %604 = vmatprep.subr.mxu0 0.0
        %605 = vmatpush1.xpose.msra.mxu0 %v425
        %606 = vmatprep.subr.mxu0 0.0
        %607 = vmatpush1.xpose.msra.mxu0 %v428
        %608 = vmatprep.subr.mxu0 0.0
        %609 = vmatpush1.xpose.msra.mxu0 %v431
        %610 = vmatprep.subr.mxu0 0.0
        %611 = vmatpush1.xpose.msra.mxu0 %v434
        %612 = vmatprep.subr.mxu0 0.0
        %613 = vmatpush1.xpose.msra.mxu0 %v437
        %614 = vmatprep.subr.mxu0 0.0
        %615 = vmatpush1.xpose.msra.mxu0 %v440
        %616 = vmatprep.subr.mxu0 0.0
        %617 = vmatpush1.xpose.msra.mxu0 %v443
        %618 = vmatprep.subr.mxu0 0.0
        %619 = vmatpush1.xpose.msra.mxu0 %v446
        %620 = vmatprep.subr.mxu0 0.0
        %621 = vmatpush1.xpose.msra.mxu0 %v449
        %622 = vmatprep.subr.mxu0 0.0
        %623 = vmatpush1.xpose.msra.mxu0 %v452
        %624 = vmatprep.subr.mxu0 0.0
        %625 = vmatpush1.xpose.msra.mxu0 %v455
        %626 = vmatprep.subr.mxu0 0.0
        %627 = vmatpush1.xpose.msra.mxu0 %v458
        %628 = vmatprep.subr.mxu0 0.0
        %629 = vmatpush1.xpose.msra.mxu0 %v461
        %630 = vmatprep.subr.mxu0 0.0
        %631 = vmatpush1.xpose.msra.mxu0 %v464
        %632 = vmatprep.subr.mxu0 0.0
        %633 = vmatpush1.xpose.msra.mxu0 %v467
        %634 = vmatprep.subr.mxu0 0.0
        %635 = vmatpush1.xpose.msra.mxu0 %v470
        %636 = vmatprep.subr.mxu0 0.0
        %637 = vmatpush1.xpose.msra.mxu0 %v473
        %638 = vmatprep.subr.mxu0 0.0
        %639 = vmatpush1.xpose.msra.mxu0 %v476
        %640 = vmatprep.subr.mxu0 0.0
        %641 = vmatpush1.xpose.msra.mxu0 %v479
        %642 = vmatprep.subr.mxu0 0.0
        %643 = vmatpush1.xpose.msra.mxu0 %v482
        %644 = vmatprep.mubr.f32.mxu0 0.0
        %645 = vmatmul.mubr.f32.gmra.mrb[0].mxu0 %v374
        %v646 = vpop.f32.mrb[0].mxu0
        %v647 = vadd.f32 %v350, %v646
        %v648 = vpop.f32.mrb[0].mxu0
        %v649 = vadd.f32 %v350, %v648
        %650 = vmatprep.mubr.f32.mxu0 0.0
        %651 = vmatmul.mubr.f32.gmra.mrb[0].mxu0 %v377
        %v652 = vpop.f32.mrb[0].mxu0
        %v653 = vadd.f32 %v355, %v652
        %v654 = vpop.f32.mrb[0].mxu0
        %v655 = vadd.f32 %v355, %v654
        %656 = vmatprep.mubr.f32.mxu0 0.0
        %657 = vmatmul.mubr.f32.gmra.mrb[0].mxu0 %v380
        %v658 = vpop.f32.mrb[0].mxu0
        %v659 = vadd.f32 %v360, %v658
        %v660 = vpop.f32.mrb[0].mxu0
        %v661 = vadd.f32 %v360, %v660
        %662 = vmatprep.mubr.f32.mxu0 0.0
        %663 = vmatmul.mubr.f32.gmra.mrb[0].mxu0 %v383
        %v664 = vpop.f32.mrb[0].mxu0
        %v665 = vadd.f32 %v365, %v664
        %v666 = vpop.f32.mrb[0].mxu0
        %v667 = vadd.f32 %v365, %v666
        %668 = vmatprep.mubr.f32.mxu0 0.0
        %669 = vmatmul.mubr.f32.gmra.mrb[0].mxu0 %v386
        %v670 = vpop.f32.mrb[0].mxu0
        %v671 = vadd.f32 %v370, %v670
        %v672 = vpop.f32.mrb[0].mxu0
        %v673 = vadd.f32 %v370, %v672
        %674 = vdwg.mxu0
        %675 = vmatprep.subr.mxu0 0.0
        %676 = vmatpush1.xpose.msra.mxu0 %v485
        %677 = vmatprep.subr.mxu0 0.0
        %678 = vmatpush1.xpose.msra.mxu0 %v488
        %679 = vmatprep.subr.mxu0 0.0
        %680 = vmatpush1.xpose.msra.mxu0 %v491
        %681 = vmatprep.subr.mxu0 0.0
        %682 = vmatpush1.xpose.msra.mxu0 %v494
        %683 = vmatprep.subr.mxu0 0.0
        %684 = vmatpush1.xpose.msra.mxu0 %v497
        %685 = vmatprep.subr.mxu0 0.0
        %686 = vmatpush1.xpose.msra.mxu0 %v500
        %687 = vmatprep.subr.mxu0 0.0
        %688 = vmatpush1.xpose.msra.mxu0 %v503
        %689 = vmatprep.subr.mxu0 0.0
        %690 = vmatpush1.xpose.msra.mxu0 %v506
        %691 = vmatprep.subr.mxu0 0.0
        %692 = vmatpush1.xpose.msra.mxu0 %v509
        %693 = vmatprep.subr.mxu0 0.0
        %694 = vmatpush1.xpose.msra.mxu0 %v512
        %695 = vmatprep.subr.mxu0 0.0
        %696 = vmatpush1.xpose.msra.mxu0 %v515
        %697 = vmatprep.subr.mxu0 0.0
        %698 = vmatpush1.xpose.msra.mxu0 %v518
        %699 = vmatprep.subr.mxu0 0.0
        %700 = vmatpush1.xpose.msra.mxu0 %v521
        %701 = vmatprep.subr.mxu0 0.0
        %702 = vmatpush1.xpose.msra.mxu0 %v524
        %703 = vmatprep.subr.mxu0 0.0
        %704 = vmatpush1.xpose.msra.mxu0 %v527
        %705 = vmatprep.subr.mxu0 0.0
        %706 = vmatpush1.xpose.msra.mxu0 %v530
        %707 = vmatprep.subr.mxu0 0.0
        %708 = vmatpush1.xpose.msra.mxu0 %v533
        %709 = vmatprep.subr.mxu0 0.0
        %710 = vmatpush1.xpose.msra.mxu0 %v536
        %711 = vmatprep.subr.mxu0 0.0
        %712 = vmatpush1.xpose.msra.mxu0 %v539
        %713 = vmatprep.subr.mxu0 0.0
        %714 = vmatpush1.xpose.msra.mxu0 %v542
        %715 = vmatprep.subr.mxu0 0.0
        %716 = vmatpush1.xpose.msra.mxu0 %v545
        %717 = vmatprep.subr.mxu0 0.0
        %718 = vmatpush1.xpose.msra.mxu0 %v548
        %719 = vmatprep.subr.mxu0 0.0
        %720 = vmatpush1.xpose.msra.mxu0 %v551
        %721 = vmatprep.subr.mxu0 0.0
        %722 = vmatpush1.xpose.msra.mxu0 %v554
        %723 = vmatprep.subr.mxu0 0.0
        %724 = vmatpush1.xpose.msra.mxu0 %v557
        %725 = vmatprep.subr.mxu0 0.0
        %726 = vmatpush1.xpose.msra.mxu0 %v560
        %727 = vmatprep.subr.mxu0 0.0
        %728 = vmatpush1.xpose.msra.mxu0 %v563
        %729 = vmatprep.subr.mxu0 0.0
        %730 = vmatpush1.xpose.msra.mxu0 %v566
        %731 = vmatprep.subr.mxu0 0.0
        %732 = vmatpush1.xpose.msra.mxu0 %v569
        %733 = vmatprep.subr.mxu0 0.0
        %734 = vmatpush1.xpose.msra.mxu0 %v572
        %735 = vmatprep.subr.mxu0 0.0
        %736 = vmatpush1.xpose.msra.mxu0 %v575
        %737 = vmatprep.subr.mxu0 0.0
        %738 = vmatpush1.xpose.msra.mxu0 %v578
        %739 = vmatprep.mubr.f32.mxu0 0.0
        %740 = vmatmul.mubr.f32.gmra.mrb[0].mxu0 %v374
        %v741 = vpop.f32.mrb[0].mxu0
        %v742 = vadd.f32 %v350, %v741
        %v743 = vpop.f32.mrb[0].mxu0
        %v744 = vadd.f32 %v350, %v743
        %745 = vmatprep.mubr.f32.mxu0 0.0
        %746 = vmatmul.mubr.f32.gmra.mrb[0].mxu0 %v377
        %v747 = vpop.f32.mrb[0].mxu0
        %v748 = vadd.f32 %v355, %v747
        %v749 = vpop.f32.mrb[0].mxu0
        %v750 = vadd.f32 %v355, %v749
        %751 = vmatprep.mubr.f32.mxu0 0.0
        %752 = vmatmul.mubr.f32.gmra.mrb[0].mxu0 %v380
        %v753 = vpop.f32.mrb[0].mxu0
        %v754 = vadd.f32 %v360, %v753
        %v755 = vpop.f32.mrb[0].mxu0
        %v756 = vadd.f32 %v360, %v755
        %757 = vmatprep.mubr.f32.mxu0 0.0
        %758 = vmatmul.mubr.f32.gmra.mrb[0].mxu0 %v383
        %v759 = vpop.f32.mrb[0].mxu0
        %v760 = vadd.f32 %v365, %v759
        %v761 = vpop.f32.mrb[0].mxu0
        %v762 = vadd.f32 %v365, %v761
        %763 = vmatprep.mubr.f32.mxu0 0.0
        %764 = vmatmul.mubr.f32.gmra.mrb[0].mxu0 %v386
        %v765 = vpop.f32.mrb[0].mxu0
        %v766 = vadd.f32 %v370, %v765
        %v767 = vpop.f32.mrb[0].mxu0
        %v768 = vadd.f32 %v370, %v767
        %769 = vdwg.mxu0
        %v770 = vmul.f32 %v647, %v647
        %v771 = vmul.f32 %v649, %v649
        %v772 = vmul.f32 %v742, %v742
        %v773 = vmul.f32 %v744, %v744
        %v774 = vmul.f32 %v653, %v653
        %v775 = vmul.f32 %v655, %v655
        %v776 = vmul.f32 %v748, %v748
        %v777 = vmul.f32 %v750, %v750
        %v778 = vmul.f32 %v659, %v659
        %v779 = vmul.f32 %v661, %v661
        %v780 = vmul.f32 %v754, %v754
        %v781 = vmul.f32 %v756, %v756
        %v782 = vmul.f32 %v665, %v665
        %v783 = vmul.f32 %v667, %v667
        %v784 = vmul.f32 %v760, %v760
        %v785 = vmul.f32 %v762, %v762
        %v786 = vadd.f32 %v770, %v774
        %v787 = vadd.f32 %v786, %v778
        %v788 = vadd.f32 %v787, %v782
        %v789 = vrot.slane %v788, 4
        %v790 = vadd.f32 %v788, %v789
        %v791 = vrot.slane %v790, 2
        %v792 = vadd.f32 %v790, %v791
        %v793 = vrot.slane %v792, 1
        %v794 = vadd.f32 %v792, %v793
        %v795 = vadd.f32 %v771, %v775
        %v796 = vadd.f32 %v795, %v779
        %v797 = vadd.f32 %v796, %v783
        %v798 = vrot.slane %v797, 4
        %v799 = vadd.f32 %v797, %v798
        %v800 = vrot.slane %v799, 2
        %v801 = vadd.f32 %v799, %v800
        %v802 = vrot.slane %v801, 1
        %v803 = vadd.f32 %v801, %v802
        %v804 = vadd.f32 %v772, %v776
        %v805 = vadd.f32 %v804, %v780
        %v806 = vadd.f32 %v805, %v784
        %v807 = vrot.slane %v806, 4
        %v808 = vadd.f32 %v806, %v807
        %v809 = vrot.slane %v808, 2
        %v810 = vadd.f32 %v808, %v809
        %v811 = vrot.slane %v810, 1
        %v812 = vadd.f32 %v810, %v811
        %v813 = vadd.f32 %v773, %v777
        %v814 = vadd.f32 %v813, %v781
        %v815 = vadd.f32 %v814, %v785
        %v816 = vrot.slane %v815, 4
        %v817 = vadd.f32 %v815, %v816
        %v818 = vrot.slane %v817, 2
        %v819 = vadd.f32 %v817, %v818
        %v820 = vrot.slane %v819, 1
        %v821 = vadd.f32 %v819, %v820
        %v822 = vmul.f32 %v794, 0.03125
        %v823 = vmul.f32 %v803, 0.03125
        %v824 = vmul.f32 %v812, 0.03125
        %v825 = vmul.f32 %v821, 0.03125
        %v826 = vmul.f32 %v671, %v671
        %v827 = vmul.f32 %v673, %v673
        %v828 = vmul.f32 %v766, %v766
        %v829 = vmul.f32 %v768, %v768
        %v830 = vsub.f32 %v822, %v826
        %v831 = vsub.f32 %v823, %v827
        %v832 = vsub.f32 %v824, %v828
        %v833 = vsub.f32 %v825, %v829
        %v834 = vmax.f32 %v830, 0.0
        %v835 = vmax.f32 %v831, 0.0
        %v836 = vmax.f32 %v832, 0.0
        %v837 = vmax.f32 %v833, 0.0
        %v838 = vlaneseq
        %v839 = vshrl.u32 %v838, 7
        %v840 = vsub.s32 0, %v839
        %v841 = vrot.slane %v671, %v840
        %v842 = vlaneseq
        %v843 = vshrl.u32 %v842, 7
        %v844 = vsub.s32 0, %v843
        %v845 = vrot.slane %v673, %v844
        %v846 = vlaneseq
        %v847 = vshrl.u32 %v846, 7
        %v848 = vsub.s32 0, %v847
        %v849 = vrot.slane %v766, %v848
        %v850 = vlaneseq
        %v851 = vshrl.u32 %v850, 7
        %v852 = vsub.s32 0, %v851
        %v853 = vrot.slane %v768, %v852
        %v854 = vsub.f32 %v647, %v841
        %v855 = vsub.f32 %v649, %v845
        %v856 = vsub.f32 %v742, %v849
        %v857 = vsub.f32 %v744, %v853
        %v858 = vsub.f32 %v653, %v841
        %v859 = vsub.f32 %v655, %v845
        %v860 = vsub.f32 %v748, %v849
        %v861 = vsub.f32 %v750, %v853
        %v862 = vsub.f32 %v659, %v841
        %v863 = vsub.f32 %v661, %v845
        %v864 = vsub.f32 %v754, %v849
        %v865 = vsub.f32 %v756, %v853
        %v866 = vsub.f32 %v665, %v841
        %v867 = vsub.f32 %v667, %v845
        %v868 = vsub.f32 %v760, %v849
        %v869 = vsub.f32 %v762, %v853
        %v870 = vadd.f32 %v834, 1e-05
        %v871 = vadd.f32 %v835, 1e-05
        %v872 = vadd.f32 %v836, 1e-05
        %v873 = vadd.f32 %v837, 1e-05
        %v874 = vrsqrt.pop %v870
        %v875 = vrsqrt.pop %v871
        %v876 = vrsqrt.pop %v872
        %v877 = vrsqrt.pop %v873
        %v878 = vlaneseq
        %v879 = vshrl.u32 %v878, 7
        %v880 = vsub.s32 0, %v879
        %v881 = vrot.slane %v874, %v880
        %v882 = vlaneseq
        %v883 = vshrl.u32 %v882, 7
        %v884 = vsub.s32 0, %v883
        %v885 = vrot.slane %v875, %v884
        %v886 = vlaneseq
        %v887 = vshrl.u32 %v886, 7
        %v888 = vsub.s32 0, %v887
        %v889 = vrot.slane %v876, %v888
        %v890 = vlaneseq
        %v891 = vshrl.u32 %v890, 7
        %v892 = vsub.s32 0, %v891
        %v893 = vrot.slane %v877, %v892
        %v894 = vmul.f32 %v854, %v881
        %v895 = vmul.f32 %v855, %v885
        %v896 = vmul.f32 %v856, %v889
        %v897 = vmul.f32 %v857, %v893
        %v898 = vmul.f32 %v858, %v881
        %v899 = vmul.f32 %v859, %v885
        %v900 = vmul.f32 %v860, %v889
        %v901 = vmul.f32 %v861, %v893
        %v902 = vmul.f32 %v862, %v881
        %v903 = vmul.f32 %v863, %v885
        %v904 = vmul.f32 %v864, %v889
        %v905 = vmul.f32 %v865, %v893
        %v906 = vmul.f32 %v866, %v881
        %v907 = vmul.f32 %v867, %v885
        %v908 = vmul.f32 %v868, %v889
        %v909 = vmul.f32 %v869, %v893
        %910 = vset.pattern.permute.xlu0 1
        %911 = vperm.xlu0 %910, %v273
        %v912 = vpop.permute.xlu0 %911
        %914 = vset.pattern.permute.xlu0 1
        %915 = vperm.xlu0 %914, %v274
        %v916 = vpop.permute.xlu0 %915
        %918 = vset.pattern.permute.xlu0 1
        %919 = vperm.xlu0 %918, %v275
        %v920 = vpop.permute.xlu0 %919
        %922 = vset.pattern.permute.xlu0 1
        %923 = vperm.xlu0 %922, %v276
        %v924 = vpop.permute.xlu0 %923
        %v926 = vmul.f32 %v894, %v912
        %v927 = vmul.f32 %v895, %v912
        %v928 = vmul.f32 %v896, %v912
        %v929 = vmul.f32 %v897, %v912
        %v930 = vmul.f32 %v898, %v916
        %v931 = vmul.f32 %v899, %v916
        %v932 = vmul.f32 %v900, %v916
        %v933 = vmul.f32 %v901, %v916
        %v934 = vmul.f32 %v902, %v920
        %v935 = vmul.f32 %v903, %v920
        %v936 = vmul.f32 %v904, %v920
        %v937 = vmul.f32 %v905, %v920
        %v938 = vmul.f32 %v906, %v924
        %v939 = vmul.f32 %v907, %v924
        %v940 = vmul.f32 %v908, %v924
        %v941 = vmul.f32 %v909, %v924
        %942 = vset.pattern.permute.xlu0 2
        %943 = vperm.xlu0 %942, %v273
        %v944 = vpop.permute.xlu0 %943
        %946 = vset.pattern.permute.xlu0 2
        %947 = vperm.xlu0 %946, %v274
        %v948 = vpop.permute.xlu0 %947
        %950 = vset.pattern.permute.xlu0 2
        %951 = vperm.xlu0 %950, %v275
        %v952 = vpop.permute.xlu0 %951
        %954 = vset.pattern.permute.xlu0 2
        %955 = vperm.xlu0 %954, %v276
        %v956 = vpop.permute.xlu0 %955
        %v958 = vadd.f32 %v926, %v944
        %v959 = vadd.f32 %v927, %v944
        %v960 = vadd.f32 %v928, %v944
        %v961 = vadd.f32 %v929, %v944
        %v962 = vadd.f32 %v930, %v948
        %v963 = vadd.f32 %v931, %v948
        %v964 = vadd.f32 %v932, %v948
        %v965 = vadd.f32 %v933, %v948
        %v966 = vadd.f32 %v934, %v952
        %v967 = vadd.f32 %v935, %v952
        %v968 = vadd.f32 %v936, %v952
        %v969 = vadd.f32 %v937, %v952
        %v970 = vadd.f32 %v938, %v956
        %v971 = vadd.f32 %v939, %v956
        %v972 = vadd.f32 %v940, %v956
        %v973 = vadd.f32 %v941, %v956
        %v974 = vtanh.pop %v958
        %v975 = vtanh.pop %v959
        %v976 = vtanh.pop %v960
        %v977 = vtanh.pop %v961
        %v978 = vtanh.pop %v962
        %v979 = vtanh.pop %v963
        %v980 = vtanh.pop %v964
        %v981 = vtanh.pop %v965
        %v982 = vtanh.pop %v966
        %v983 = vtanh.pop %v967
        %v984 = vtanh.pop %v968
        %v985 = vtanh.pop %v969
        %v986 = vtanh.pop %v970
        %v987 = vtanh.pop %v971
        %v988 = vtanh.pop %v972
        %v989 = vtanh.pop %v973
        %v990 = vld [vmem:[%s2] sm:$0xff]
        %v991 = vld [vmem:[%s2 + $0x8] sm:$0xff]
        %v992 = vld [vmem:[%s2 + $0x10] sm:$0xff]
        %v993 = vld [vmem:[%s2 + $0x18] sm:$0xff]
        %v994 = vld [vmem:[%s2 + $0x20] sm:$0xff]
        %995 = vset.pattern.permute.xlu0 3
        %996 = vperm.xlu0 %995, %v273
        %v997 = vpop.permute.xlu0 %996
        %999 = vset.pattern.permute.xlu0 3
        %1000 = vperm.xlu0 %999, %v274
        %v1001 = vpop.permute.xlu0 %1000
        %1003 = vset.pattern.permute.xlu0 3
        %1004 = vperm.xlu0 %1003, %v275
        %v1005 = vpop.permute.xlu0 %1004
        %1007 = vset.pattern.permute.xlu0 3
        %1008 = vperm.xlu0 %1007, %v276
        %v1009 = vpop.permute.xlu0 %1008
        %1011 = vset.pattern.permute.xlu0 3
        %1012 = vperm.xlu0 %1011, %v277
        %v1013 = vpop.permute.xlu0 %1012
        %vm1015 = vcmask 261120
        %v1017 = vsel %vm1015, %v990, 0
        %v1020 = vsel %vm1015, %v991, 0
        %v1023 = vsel %vm1015, %v992, 0
        %v1026 = vsel %vm1015, %v993, 0
        %v1029 = vsel %vm1015, %v994, 0
        %1031 = vmatprep.subr.mxu0 %v975
        %1032 = vmatpush1.msra.mxu0 %v974
        %1033 = vmatprep.subr.mxu0 %v979
        %1034 = vmatpush1.msra.mxu0 %v978
        %1035 = vmatprep.subr.mxu0 %v983
        %1036 = vmatpush1.msra.mxu0 %v982
        %1037 = vmatprep.subr.mxu0 %v987
        %1038 = vmatpush1.msra.mxu0 %v986
        %1039 = vmatprep.subr.mxu0 0.0
        %1040 = vmatpush1.msra.mxu0 0.0
        %1041 = vmatprep.subr.mxu0 0.0
        %1042 = vmatpush1.msra.mxu0 0.0
        %1043 = vmatprep.subr.mxu0 0.0
        %1044 = vmatpush1.msra.mxu0 0.0
        %1045 = vmatprep.subr.mxu0 0.0
        %1046 = vmatpush1.msra.mxu0 0.0
        %1047 = vmatprep.subr.mxu0 0.0
        %1048 = vmatpush1.msra.mxu0 0.0
        %1049 = vmatprep.subr.mxu0 0.0
        %1050 = vmatpush1.msra.mxu0 0.0
        %1051 = vmatprep.subr.mxu0 0.0
        %1052 = vmatpush1.msra.mxu0 0.0
        %1053 = vmatprep.subr.mxu0 0.0
        %1054 = vmatpush1.msra.mxu0 0.0
        %1055 = vmatprep.subr.mxu0 0.0
        %1056 = vmatpush1.msra.mxu0 0.0
        %1057 = vmatprep.subr.mxu0 0.0
        %1058 = vmatpush1.msra.mxu0 0.0
        %1059 = vmatprep.subr.mxu0 0.0
        %1060 = vmatpush1.msra.mxu0 0.0
        %1061 = vmatprep.subr.mxu0 0.0
        %1062 = vmatpush1.msra.mxu0 0.0
        %1063 = vmatprep.subr.mxu0 0.0
        %1064 = vmatpush1.msra.mxu0 0.0
        %1065 = vmatprep.subr.mxu0 0.0
        %1066 = vmatpush1.msra.mxu0 0.0
        %1067 = vmatprep.subr.mxu0 0.0
        %1068 = vmatpush1.msra.mxu0 0.0
        %1069 = vmatprep.subr.mxu0 0.0
        %1070 = vmatpush1.msra.mxu0 0.0
        %1071 = vmatprep.subr.mxu0 0.0
        %1072 = vmatpush1.msra.mxu0 0.0
        %1073 = vmatprep.subr.mxu0 0.0
        %1074 = vmatpush1.msra.mxu0 0.0
        %1075 = vmatprep.subr.mxu0 0.0
        %1076 = vmatpush1.msra.mxu0 0.0
        %1077 = vmatprep.subr.mxu0 0.0
        %1078 = vmatpush1.msra.mxu0 0.0
        %1079 = vmatprep.subr.mxu0 0.0
        %1080 = vmatpush1.msra.mxu0 0.0
        %1081 = vmatprep.subr.mxu0 0.0
        %1082 = vmatpush1.msra.mxu0 0.0
        %1083 = vmatprep.subr.mxu0 0.0
        %1084 = vmatpush1.msra.mxu0 0.0
        %1085 = vmatprep.subr.mxu0 0.0
        %1086 = vmatpush1.msra.mxu0 0.0
        %1087 = vmatprep.subr.mxu0 0.0
        %1088 = vmatpush1.msra.mxu0 0.0
        %1089 = vmatprep.subr.mxu0 0.0
        %1090 = vmatpush1.msra.mxu0 0.0
        %1091 = vmatprep.subr.mxu0 0.0
        %1092 = vmatpush1.msra.mxu0 0.0
        %1093 = vmatprep.subr.mxu0 0.0
        %1094 = vmatpush1.msra.mxu0 0.0
        %1095 = vmatprep.mubr.f32.mxu0 0.0
        %1096 = vmatmul.mubr.f32.gmra.mrb[0].mxu0 %v1017
        %v1097 = vpop.f32.mrb[0].mxu0
        %v1098 = vadd.f32 %v997, %v1097
        %v1099 = vpop.f32.mrb[0].mxu0
        %v1100 = vadd.f32 %v997, %v1099
        %1101 = vmatprep.mubr.f32.mxu0 0.0
        %1102 = vmatmul.mubr.f32.gmra.mrb[0].mxu0 %v1020
        %v1103 = vpop.f32.mrb[0].mxu0
        %v1104 = vadd.f32 %v1001, %v1103
        %v1105 = vpop.f32.mrb[0].mxu0
        %v1106 = vadd.f32 %v1001, %v1105
        %1107 = vmatprep.mubr.f32.mxu0 0.0
        %1108 = vmatmul.mubr.f32.gmra.mrb[0].mxu0 %v1023
        %v1109 = vpop.f32.mrb[0].mxu0
        %v1110 = vadd.f32 %v1005, %v1109
        %v1111 = vpop.f32.mrb[0].mxu0
        %v1112 = vadd.f32 %v1005, %v1111
        %1113 = vmatprep.mubr.f32.mxu0 0.0
        %1114 = vmatmul.mubr.f32.gmra.mrb[0].mxu0 %v1026
        %v1115 = vpop.f32.mrb[0].mxu0
        %v1116 = vadd.f32 %v1009, %v1115
        %v1117 = vpop.f32.mrb[0].mxu0
        %v1118 = vadd.f32 %v1009, %v1117
        %1119 = vmatprep.mubr.f32.mxu0 0.0
        %1120 = vmatmul.mubr.f32.gmra.mrb[0].mxu0 %v1029
        %v1121 = vpop.f32.mrb[0].mxu0
        %v1122 = vadd.f32 %v1013, %v1121
        %v1123 = vpop.f32.mrb[0].mxu0
        %v1124 = vadd.f32 %v1013, %v1123
        %1125 = vdwg.mxu0
        %1126 = vmatprep.subr.mxu0 %v977
        %1127 = vmatpush1.msra.mxu0 %v976
        %1128 = vmatprep.subr.mxu0 %v981
        %1129 = vmatpush1.msra.mxu0 %v980
        %1130 = vmatprep.subr.mxu0 %v985
        %1131 = vmatpush1.msra.mxu0 %v984
        %1132 = vmatprep.subr.mxu0 %v989
        %1133 = vmatpush1.msra.mxu0 %v988
        %1134 = vmatprep.subr.mxu0 0.0
        %1135 = vmatpush1.msra.mxu0 0.0
        %1136 = vmatprep.subr.mxu0 0.0
        %1137 = vmatpush1.msra.mxu0 0.0
        %1138 = vmatprep.subr.mxu0 0.0
        %1139 = vmatpush1.msra.mxu0 0.0
        %1140 = vmatprep.subr.mxu0 0.0
        %1141 = vmatpush1.msra.mxu0 0.0
        %1142 = vmatprep.subr.mxu0 0.0
        %1143 = vmatpush1.msra.mxu0 0.0
        %1144 = vmatprep.subr.mxu0 0.0
        %1145 = vmatpush1.msra.mxu0 0.0
        %1146 = vmatprep.subr.mxu0 0.0
        %1147 = vmatpush1.msra.mxu0 0.0
        %1148 = vmatprep.subr.mxu0 0.0
        %1149 = vmatpush1.msra.mxu0 0.0
        %1150 = vmatprep.subr.mxu0 0.0
        %1151 = vmatpush1.msra.mxu0 0.0
        %1152 = vmatprep.subr.mxu0 0.0
        %1153 = vmatpush1.msra.mxu0 0.0
        %1154 = vmatprep.subr.mxu0 0.0
        %1155 = vmatpush1.msra.mxu0 0.0
        %1156 = vmatprep.subr.mxu0 0.0
        %1157 = vmatpush1.msra.mxu0 0.0
        %1158 = vmatprep.subr.mxu0 0.0
        %1159 = vmatpush1.msra.mxu0 0.0
        %1160 = vmatprep.subr.mxu0 0.0
        %1161 = vmatpush1.msra.mxu0 0.0
        %1162 = vmatprep.subr.mxu0 0.0
        %1163 = vmatpush1.msra.mxu0 0.0
        %1164 = vmatprep.subr.mxu0 0.0
        %1165 = vmatpush1.msra.mxu0 0.0
        %1166 = vmatprep.subr.mxu0 0.0
        %1167 = vmatpush1.msra.mxu0 0.0
        %1168 = vmatprep.subr.mxu0 0.0
        %1169 = vmatpush1.msra.mxu0 0.0
        %1170 = vmatprep.subr.mxu0 0.0
        %1171 = vmatpush1.msra.mxu0 0.0
        %1172 = vmatprep.subr.mxu0 0.0
        %1173 = vmatpush1.msra.mxu0 0.0
        %1174 = vmatprep.subr.mxu0 0.0
        %1175 = vmatpush1.msra.mxu0 0.0
        %1176 = vmatprep.subr.mxu0 0.0
        %1177 = vmatpush1.msra.mxu0 0.0
        %1178 = vmatprep.subr.mxu0 0.0
        %1179 = vmatpush1.msra.mxu0 0.0
        %1180 = vmatprep.subr.mxu0 0.0
        %1181 = vmatpush1.msra.mxu0 0.0
        %1182 = vmatprep.subr.mxu0 0.0
        %1183 = vmatpush1.msra.mxu0 0.0
        %1184 = vmatprep.subr.mxu0 0.0
        %1185 = vmatpush1.msra.mxu0 0.0
        %1186 = vmatprep.subr.mxu0 0.0
        %1187 = vmatpush1.msra.mxu0 0.0
        %1188 = vmatprep.subr.mxu0 0.0
        %1189 = vmatpush1.msra.mxu0 0.0
        %1190 = vmatprep.mubr.f32.mxu0 0.0
        %1191 = vmatmul.mubr.f32.gmra.mrb[0].mxu0 %v1017
        %v1192 = vpop.f32.mrb[0].mxu0
        %v1193 = vadd.f32 %v997, %v1192
        %v1194 = vpop.f32.mrb[0].mxu0
        %v1195 = vadd.f32 %v997, %v1194
        %1196 = vmatprep.mubr.f32.mxu0 0.0
        %1197 = vmatmul.mubr.f32.gmra.mrb[0].mxu0 %v1020
        %v1198 = vpop.f32.mrb[0].mxu0
        %v1199 = vadd.f32 %v1001, %v1198
        %v1200 = vpop.f32.mrb[0].mxu0
        %v1201 = vadd.f32 %v1001, %v1200
        %1202 = vmatprep.mubr.f32.mxu0 0.0
        %1203 = vmatmul.mubr.f32.gmra.mrb[0].mxu0 %v1023
        %v1204 = vpop.f32.mrb[0].mxu0
        %v1205 = vadd.f32 %v1005, %v1204
        %v1206 = vpop.f32.mrb[0].mxu0
        %v1207 = vadd.f32 %v1005, %v1206
        %1208 = vmatprep.mubr.f32.mxu0 0.0
        %1209 = vmatmul.mubr.f32.gmra.mrb[0].mxu0 %v1026
        %v1210 = vpop.f32.mrb[0].mxu0
        %v1211 = vadd.f32 %v1009, %v1210
        %v1212 = vpop.f32.mrb[0].mxu0
        %v1213 = vadd.f32 %v1009, %v1212
        %1214 = vmatprep.mubr.f32.mxu0 0.0
        %1215 = vmatmul.mubr.f32.gmra.mrb[0].mxu0 %v1029
        %v1216 = vpop.f32.mrb[0].mxu0
        %v1217 = vadd.f32 %v1013, %v1216
        %v1218 = vpop.f32.mrb[0].mxu0
        %v1219 = vadd.f32 %v1013, %v1218
        %1220 = vdwg.mxu0
        %v1221 = vmul.f32 %v1098, %v1098
        %v1222 = vmul.f32 %v1100, %v1100
        %v1223 = vmul.f32 %v1193, %v1193
        %v1224 = vmul.f32 %v1195, %v1195
        %v1225 = vmul.f32 %v1104, %v1104
        %v1226 = vmul.f32 %v1106, %v1106
        %v1227 = vmul.f32 %v1199, %v1199
        %v1228 = vmul.f32 %v1201, %v1201
        %v1229 = vmul.f32 %v1110, %v1110
        %v1230 = vmul.f32 %v1112, %v1112
        %v1231 = vmul.f32 %v1205, %v1205
        %v1232 = vmul.f32 %v1207, %v1207
        %v1233 = vmul.f32 %v1116, %v1116
        %v1234 = vmul.f32 %v1118, %v1118
        %v1235 = vmul.f32 %v1211, %v1211
        %v1236 = vmul.f32 %v1213, %v1213
        %v1237 = vadd.f32 %v1221, %v1225
        %v1238 = vadd.f32 %v1237, %v1229
        %v1239 = vadd.f32 %v1238, %v1233
        %v1240 = vrot.slane %v1239, 4
        %v1241 = vadd.f32 %v1239, %v1240
        %v1242 = vrot.slane %v1241, 2
        %v1243 = vadd.f32 %v1241, %v1242
        %v1244 = vrot.slane %v1243, 1
        %v1245 = vadd.f32 %v1243, %v1244
        %v1246 = vadd.f32 %v1222, %v1226
        %v1247 = vadd.f32 %v1246, %v1230
        %v1248 = vadd.f32 %v1247, %v1234
        %v1249 = vrot.slane %v1248, 4
        %v1250 = vadd.f32 %v1248, %v1249
        %v1251 = vrot.slane %v1250, 2
        %v1252 = vadd.f32 %v1250, %v1251
        %v1253 = vrot.slane %v1252, 1
        %v1254 = vadd.f32 %v1252, %v1253
        %v1255 = vadd.f32 %v1223, %v1227
        %v1256 = vadd.f32 %v1255, %v1231
        %v1257 = vadd.f32 %v1256, %v1235
        %v1258 = vrot.slane %v1257, 4
        %v1259 = vadd.f32 %v1257, %v1258
        %v1260 = vrot.slane %v1259, 2
        %v1261 = vadd.f32 %v1259, %v1260
        %v1262 = vrot.slane %v1261, 1
        %v1263 = vadd.f32 %v1261, %v1262
        %v1264 = vadd.f32 %v1224, %v1228
        %v1265 = vadd.f32 %v1264, %v1232
        %v1266 = vadd.f32 %v1265, %v1236
        %v1267 = vrot.slane %v1266, 4
        %v1268 = vadd.f32 %v1266, %v1267
        %v1269 = vrot.slane %v1268, 2
        %v1270 = vadd.f32 %v1268, %v1269
        %v1271 = vrot.slane %v1270, 1
        %v1272 = vadd.f32 %v1270, %v1271
        %v1273 = vmul.f32 %v1245, 0.03125
        %v1274 = vmul.f32 %v1254, 0.03125
        %v1275 = vmul.f32 %v1263, 0.03125
        %v1276 = vmul.f32 %v1272, 0.03125
        %v1277 = vmul.f32 %v1122, %v1122
        %v1278 = vmul.f32 %v1124, %v1124
        %v1279 = vmul.f32 %v1217, %v1217
        %v1280 = vmul.f32 %v1219, %v1219
        %v1281 = vsub.f32 %v1273, %v1277
        %v1282 = vsub.f32 %v1274, %v1278
        %v1283 = vsub.f32 %v1275, %v1279
        %v1284 = vsub.f32 %v1276, %v1280
        %v1285 = vmax.f32 %v1281, 0.0
        %v1286 = vmax.f32 %v1282, 0.0
        %v1287 = vmax.f32 %v1283, 0.0
        %v1288 = vmax.f32 %v1284, 0.0
        %v1289 = vlaneseq
        %v1290 = vshrl.u32 %v1289, 7
        %v1291 = vsub.s32 0, %v1290
        %v1292 = vrot.slane %v1122, %v1291
        %v1293 = vlaneseq
        %v1294 = vshrl.u32 %v1293, 7
        %v1295 = vsub.s32 0, %v1294
        %v1296 = vrot.slane %v1124, %v1295
        %v1297 = vlaneseq
        %v1298 = vshrl.u32 %v1297, 7
        %v1299 = vsub.s32 0, %v1298
        %v1300 = vrot.slane %v1217, %v1299
        %v1301 = vlaneseq
        %v1302 = vshrl.u32 %v1301, 7
        %v1303 = vsub.s32 0, %v1302
        %v1304 = vrot.slane %v1219, %v1303
        %v1305 = vsub.f32 %v1098, %v1292
        %v1306 = vsub.f32 %v1100, %v1296
        %v1307 = vsub.f32 %v1193, %v1300
        %v1308 = vsub.f32 %v1195, %v1304
        %v1309 = vsub.f32 %v1104, %v1292
        %v1310 = vsub.f32 %v1106, %v1296
        %v1311 = vsub.f32 %v1199, %v1300
        %v1312 = vsub.f32 %v1201, %v1304
        %v1313 = vsub.f32 %v1110, %v1292
        %v1314 = vsub.f32 %v1112, %v1296
        %v1315 = vsub.f32 %v1205, %v1300
        %v1316 = vsub.f32 %v1207, %v1304
        %v1317 = vsub.f32 %v1116, %v1292
        %v1318 = vsub.f32 %v1118, %v1296
        %v1319 = vsub.f32 %v1211, %v1300
        %v1320 = vsub.f32 %v1213, %v1304
        %v1321 = vadd.f32 %v1285, 1e-05
        %v1322 = vadd.f32 %v1286, 1e-05
        %v1323 = vadd.f32 %v1287, 1e-05
        %v1324 = vadd.f32 %v1288, 1e-05
        %v1325 = vrsqrt.pop %v1321
        %v1326 = vrsqrt.pop %v1322
        %v1327 = vrsqrt.pop %v1323
        %v1328 = vrsqrt.pop %v1324
        %v1329 = vlaneseq
        %v1330 = vshrl.u32 %v1329, 7
        %v1331 = vsub.s32 0, %v1330
        %v1332 = vrot.slane %v1325, %v1331
        %v1333 = vlaneseq
        %v1334 = vshrl.u32 %v1333, 7
        %v1335 = vsub.s32 0, %v1334
        %v1336 = vrot.slane %v1326, %v1335
        %v1337 = vlaneseq
        %v1338 = vshrl.u32 %v1337, 7
        %v1339 = vsub.s32 0, %v1338
        %v1340 = vrot.slane %v1327, %v1339
        %v1341 = vlaneseq
        %v1342 = vshrl.u32 %v1341, 7
        %v1343 = vsub.s32 0, %v1342
        %v1344 = vrot.slane %v1328, %v1343
        %v1345 = vmul.f32 %v1305, %v1332
        %v1346 = vmul.f32 %v1306, %v1336
        %v1347 = vmul.f32 %v1307, %v1340
        %v1348 = vmul.f32 %v1308, %v1344
        %v1349 = vmul.f32 %v1309, %v1332
        %v1350 = vmul.f32 %v1310, %v1336
        %v1351 = vmul.f32 %v1311, %v1340
        %v1352 = vmul.f32 %v1312, %v1344
        %v1353 = vmul.f32 %v1313, %v1332
        %v1354 = vmul.f32 %v1314, %v1336
        %v1355 = vmul.f32 %v1315, %v1340
        %v1356 = vmul.f32 %v1316, %v1344
        %v1357 = vmul.f32 %v1317, %v1332
        %v1358 = vmul.f32 %v1318, %v1336
        %v1359 = vmul.f32 %v1319, %v1340
        %v1360 = vmul.f32 %v1320, %v1344
        %1361 = vset.pattern.permute.xlu0 4
        %1362 = vperm.xlu0 %1361, %v273
        %v1363 = vpop.permute.xlu0 %1362
        %1365 = vset.pattern.permute.xlu0 4
        %1366 = vperm.xlu0 %1365, %v274
        %v1367 = vpop.permute.xlu0 %1366
        %1369 = vset.pattern.permute.xlu0 4
        %1370 = vperm.xlu0 %1369, %v275
        %v1371 = vpop.permute.xlu0 %1370
        %1373 = vset.pattern.permute.xlu0 4
        %1374 = vperm.xlu0 %1373, %v276
        %v1375 = vpop.permute.xlu0 %1374
        %v1377 = vmul.f32 %v1345, %v1363
        %v1378 = vmul.f32 %v1346, %v1363
        %v1379 = vmul.f32 %v1347, %v1363
        %v1380 = vmul.f32 %v1348, %v1363
        %v1381 = vmul.f32 %v1349, %v1367
        %v1382 = vmul.f32 %v1350, %v1367
        %v1383 = vmul.f32 %v1351, %v1367
        %v1384 = vmul.f32 %v1352, %v1367
        %v1385 = vmul.f32 %v1353, %v1371
        %v1386 = vmul.f32 %v1354, %v1371
        %v1387 = vmul.f32 %v1355, %v1371
        %v1388 = vmul.f32 %v1356, %v1371
        %v1389 = vmul.f32 %v1357, %v1375
        %v1390 = vmul.f32 %v1358, %v1375
        %v1391 = vmul.f32 %v1359, %v1375
        %v1392 = vmul.f32 %v1360, %v1375
        %1393 = vset.pattern.permute.xlu0 5
        %1394 = vperm.xlu0 %1393, %v273
        %v1395 = vpop.permute.xlu0 %1394
        %1397 = vset.pattern.permute.xlu0 5
        %1398 = vperm.xlu0 %1397, %v274
        %v1399 = vpop.permute.xlu0 %1398
        %1401 = vset.pattern.permute.xlu0 5
        %1402 = vperm.xlu0 %1401, %v275
        %v1403 = vpop.permute.xlu0 %1402
        %1405 = vset.pattern.permute.xlu0 5
        %1406 = vperm.xlu0 %1405, %v276
        %v1407 = vpop.permute.xlu0 %1406
        %v1409 = vadd.f32 %v1377, %v1395
        %v1410 = vadd.f32 %v1378, %v1395
        %v1411 = vadd.f32 %v1379, %v1395
        %v1412 = vadd.f32 %v1380, %v1395
        %v1413 = vadd.f32 %v1381, %v1399
        %v1414 = vadd.f32 %v1382, %v1399
        %v1415 = vadd.f32 %v1383, %v1399
        %v1416 = vadd.f32 %v1384, %v1399
        %v1417 = vadd.f32 %v1385, %v1403
        %v1418 = vadd.f32 %v1386, %v1403
        %v1419 = vadd.f32 %v1387, %v1403
        %v1420 = vadd.f32 %v1388, %v1403
        %v1421 = vadd.f32 %v1389, %v1407
        %v1422 = vadd.f32 %v1390, %v1407
        %v1423 = vadd.f32 %v1391, %v1407
        %v1424 = vadd.f32 %v1392, %v1407
        %v1425 = vtanh.pop %v1409
        %v1426 = vtanh.pop %v1410
        %v1427 = vtanh.pop %v1411
        %v1428 = vtanh.pop %v1412
        %v1429 = vtanh.pop %v1413
        %v1430 = vtanh.pop %v1414
        %v1431 = vtanh.pop %v1415
        %v1432 = vtanh.pop %v1416
        %v1433 = vtanh.pop %v1417
        %v1434 = vtanh.pop %v1418
        %v1435 = vtanh.pop %v1419
        %v1436 = vtanh.pop %v1420
        %v1437 = vtanh.pop %v1421
        %v1438 = vtanh.pop %v1422
        %v1439 = vtanh.pop %v1423
        %v1440 = vtanh.pop %v1424
        %v1441 = vld [vmem:[%s3] sm:$0xff]
        %v1442 = vld [vmem:[%s3 + $0x8] sm:$0xff]
        %v1443 = vld [vmem:[%s3 + $0x10] sm:$0xff]
        %v1444 = vld [vmem:[%s3 + $0x18] sm:$0xff]
        %v1445 = vld [vmem:[%s3 + $0x20] sm:$0xff]
        %1446 = vset.pattern.permute.xlu0 6
        %1447 = vperm.xlu0 %1446, %v273
        %v1448 = vpop.permute.xlu0 %1447
        %1450 = vset.pattern.permute.xlu0 6
        %1451 = vperm.xlu0 %1450, %v274
        %v1452 = vpop.permute.xlu0 %1451
        %1454 = vset.pattern.permute.xlu0 6
        %1455 = vperm.xlu0 %1454, %v275
        %v1456 = vpop.permute.xlu0 %1455
        %1458 = vset.pattern.permute.xlu0 6
        %1459 = vperm.xlu0 %1458, %v276
        %v1460 = vpop.permute.xlu0 %1459
        %1462 = vset.pattern.permute.xlu0 6
        %1463 = vperm.xlu0 %1462, %v277
        %v1464 = vpop.permute.xlu0 %1463
        %v1467 = vsel %vm1015, %v1441, 0
        %v1470 = vsel %vm1015, %v1442, 0
        %v1473 = vsel %vm1015, %v1443, 0
        %v1476 = vsel %vm1015, %v1444, 0
        %v1479 = vsel %vm1015, %v1445, 0
        %1481 = vmatprep.subr.mxu0 %v1426
        %1482 = vmatpush1.msra.mxu0 %v1425
        %1483 = vmatprep.subr.mxu0 %v1430
        %1484 = vmatpush1.msra.mxu0 %v1429
        %1485 = vmatprep.subr.mxu0 %v1434
        %1486 = vmatpush1.msra.mxu0 %v1433
        %1487 = vmatprep.subr.mxu0 %v1438
        %1488 = vmatpush1.msra.mxu0 %v1437
        %1489 = vmatprep.subr.mxu0 0.0
        %1490 = vmatpush1.msra.mxu0 0.0
        %1491 = vmatprep.subr.mxu0 0.0
        %1492 = vmatpush1.msra.mxu0 0.0
        %1493 = vmatprep.subr.mxu0 0.0
        %1494 = vmatpush1.msra.mxu0 0.0
        %1495 = vmatprep.subr.mxu0 0.0
        %1496 = vmatpush1.msra.mxu0 0.0
        %1497 = vmatprep.subr.mxu0 0.0
        %1498 = vmatpush1.msra.mxu0 0.0
        %1499 = vmatprep.subr.mxu0 0.0
        %1500 = vmatpush1.msra.mxu0 0.0
        %1501 = vmatprep.subr.mxu0 0.0
        %1502 = vmatpush1.msra.mxu0 0.0
        %1503 = vmatprep.subr.mxu0 0.0
        %1504 = vmatpush1.msra.mxu0 0.0
        %1505 = vmatprep.subr.mxu0 0.0
        %1506 = vmatpush1.msra.mxu0 0.0
        %1507 = vmatprep.subr.mxu0 0.0
        %1508 = vmatpush1.msra.mxu0 0.0
        %1509 = vmatprep.subr.mxu0 0.0
        %1510 = vmatpush1.msra.mxu0 0.0
        %1511 = vmatprep.subr.mxu0 0.0
        %1512 = vmatpush1.msra.mxu0 0.0
        %1513 = vmatprep.subr.mxu0 0.0
        %1514 = vmatpush1.msra.mxu0 0.0
        %1515 = vmatprep.subr.mxu0 0.0
        %1516 = vmatpush1.msra.mxu0 0.0
        %1517 = vmatprep.subr.mxu0 0.0
        %1518 = vmatpush1.msra.mxu0 0.0
        %1519 = vmatprep.subr.mxu0 0.0
        %1520 = vmatpush1.msra.mxu0 0.0
        %1521 = vmatprep.subr.mxu0 0.0
        %1522 = vmatpush1.msra.mxu0 0.0
        %1523 = vmatprep.subr.mxu0 0.0
        %1524 = vmatpush1.msra.mxu0 0.0
        %1525 = vmatprep.subr.mxu0 0.0
        %1526 = vmatpush1.msra.mxu0 0.0
        %1527 = vmatprep.subr.mxu0 0.0
        %1528 = vmatpush1.msra.mxu0 0.0
        %1529 = vmatprep.subr.mxu0 0.0
        %1530 = vmatpush1.msra.mxu0 0.0
        %1531 = vmatprep.subr.mxu0 0.0
        %1532 = vmatpush1.msra.mxu0 0.0
        %1533 = vmatprep.subr.mxu0 0.0
        %1534 = vmatpush1.msra.mxu0 0.0
        %1535 = vmatprep.subr.mxu0 0.0
        %1536 = vmatpush1.msra.mxu0 0.0
        %1537 = vmatprep.subr.mxu0 0.0
        %1538 = vmatpush1.msra.mxu0 0.0
        %1539 = vmatprep.subr.mxu0 0.0
        %1540 = vmatpush1.msra.mxu0 0.0
        %1541 = vmatprep.subr.mxu0 0.0
        %1542 = vmatpush1.msra.mxu0 0.0
        %1543 = vmatprep.subr.mxu0 0.0
        %1544 = vmatpush1.msra.mxu0 0.0
        %1545 = vmatprep.mubr.f32.mxu0 0.0
        %1546 = vmatmul.mubr.f32.gmra.mrb[0].mxu0 %v1467
        %v1547 = vpop.f32.mrb[0].mxu0
        %v1548 = vadd.f32 %v1448, %v1547
        %v1549 = vpop.f32.mrb[0].mxu0
        %v1550 = vadd.f32 %v1448, %v1549
        %1551 = vmatprep.mubr.f32.mxu0 0.0
        %1552 = vmatmul.mubr.f32.gmra.mrb[0].mxu0 %v1470
        %v1553 = vpop.f32.mrb[0].mxu0
        %v1554 = vadd.f32 %v1452, %v1553
        %v1555 = vpop.f32.mrb[0].mxu0
        %v1556 = vadd.f32 %v1452, %v1555
        %1557 = vmatprep.mubr.f32.mxu0 0.0
        %1558 = vmatmul.mubr.f32.gmra.mrb[0].mxu0 %v1473
        %v1559 = vpop.f32.mrb[0].mxu0
        %v1560 = vadd.f32 %v1456, %v1559
        %v1561 = vpop.f32.mrb[0].mxu0
        %v1562 = vadd.f32 %v1456, %v1561
        %1563 = vmatprep.mubr.f32.mxu0 0.0
        %1564 = vmatmul.mubr.f32.gmra.mrb[0].mxu0 %v1476
        %v1565 = vpop.f32.mrb[0].mxu0
        %v1566 = vadd.f32 %v1460, %v1565
        %v1567 = vpop.f32.mrb[0].mxu0
        %v1568 = vadd.f32 %v1460, %v1567
        %1569 = vmatprep.mubr.f32.mxu0 0.0
        %1570 = vmatmul.mubr.f32.gmra.mrb[0].mxu0 %v1479
        %v1571 = vpop.f32.mrb[0].mxu0
        %v1572 = vadd.f32 %v1464, %v1571
        %v1573 = vpop.f32.mrb[0].mxu0
        %v1574 = vadd.f32 %v1464, %v1573
        %1575 = vdwg.mxu0
        %1576 = vmatprep.subr.mxu0 %v1428
        %1577 = vmatpush1.msra.mxu0 %v1427
        %1578 = vmatprep.subr.mxu0 %v1432
        %1579 = vmatpush1.msra.mxu0 %v1431
        %1580 = vmatprep.subr.mxu0 %v1436
        %1581 = vmatpush1.msra.mxu0 %v1435
        %1582 = vmatprep.subr.mxu0 %v1440
        %1583 = vmatpush1.msra.mxu0 %v1439
        %1584 = vmatprep.subr.mxu0 0.0
        %1585 = vmatpush1.msra.mxu0 0.0
        %1586 = vmatprep.subr.mxu0 0.0
        %1587 = vmatpush1.msra.mxu0 0.0
        %1588 = vmatprep.subr.mxu0 0.0
        %1589 = vmatpush1.msra.mxu0 0.0
        %1590 = vmatprep.subr.mxu0 0.0
        %1591 = vmatpush1.msra.mxu0 0.0
        %1592 = vmatprep.subr.mxu0 0.0
        %1593 = vmatpush1.msra.mxu0 0.0
        %1594 = vmatprep.subr.mxu0 0.0
        %1595 = vmatpush1.msra.mxu0 0.0
        %1596 = vmatprep.subr.mxu0 0.0
        %1597 = vmatpush1.msra.mxu0 0.0
        %1598 = vmatprep.subr.mxu0 0.0
        %1599 = vmatpush1.msra.mxu0 0.0
        %1600 = vmatprep.subr.mxu0 0.0
        %1601 = vmatpush1.msra.mxu0 0.0
        %1602 = vmatprep.subr.mxu0 0.0
        %1603 = vmatpush1.msra.mxu0 0.0
        %1604 = vmatprep.subr.mxu0 0.0
        %1605 = vmatpush1.msra.mxu0 0.0
        %1606 = vmatprep.subr.mxu0 0.0
        %1607 = vmatpush1.msra.mxu0 0.0
        %1608 = vmatprep.subr.mxu0 0.0
        %1609 = vmatpush1.msra.mxu0 0.0
        %1610 = vmatprep.subr.mxu0 0.0
        %1611 = vmatpush1.msra.mxu0 0.0
        %1612 = vmatprep.subr.mxu0 0.0
        %1613 = vmatpush1.msra.mxu0 0.0
        %1614 = vmatprep.subr.mxu0 0.0
        %1615 = vmatpush1.msra.mxu0 0.0
        %1616 = vmatprep.subr.mxu0 0.0
        %1617 = vmatpush1.msra.mxu0 0.0
        %1618 = vmatprep.subr.mxu0 0.0
        %1619 = vmatpush1.msra.mxu0 0.0
        %1620 = vmatprep.subr.mxu0 0.0
        %1621 = vmatpush1.msra.mxu0 0.0
        %1622 = vmatprep.subr.mxu0 0.0
        %1623 = vmatpush1.msra.mxu0 0.0
        %1624 = vmatprep.subr.mxu0 0.0
        %1625 = vmatpush1.msra.mxu0 0.0
        %1626 = vmatprep.subr.mxu0 0.0
        %1627 = vmatpush1.msra.mxu0 0.0
        %1628 = vmatprep.subr.mxu0 0.0
        %1629 = vmatpush1.msra.mxu0 0.0
        %1630 = vmatprep.subr.mxu0 0.0
        %1631 = vmatpush1.msra.mxu0 0.0
        %1632 = vmatprep.subr.mxu0 0.0
        %1633 = vmatpush1.msra.mxu0 0.0
        %1634 = vmatprep.subr.mxu0 0.0
        %1635 = vmatpush1.msra.mxu0 0.0
        %1636 = vmatprep.subr.mxu0 0.0
        %1637 = vmatpush1.msra.mxu0 0.0
        %1638 = vmatprep.subr.mxu0 0.0
        %1639 = vmatpush1.msra.mxu0 0.0
        %1640 = vmatprep.mubr.f32.mxu0 0.0
        %1641 = vmatmul.mubr.f32.gmra.mrb[0].mxu0 %v1467
        %v1642 = vpop.f32.mrb[0].mxu0
        %v1643 = vadd.f32 %v1448, %v1642
        %v1644 = vpop.f32.mrb[0].mxu0
        %v1645 = vadd.f32 %v1448, %v1644
        %1646 = vmatprep.mubr.f32.mxu0 0.0
        %1647 = vmatmul.mubr.f32.gmra.mrb[0].mxu0 %v1470
        %v1648 = vpop.f32.mrb[0].mxu0
        %v1649 = vadd.f32 %v1452, %v1648
        %v1650 = vpop.f32.mrb[0].mxu0
        %v1651 = vadd.f32 %v1452, %v1650
        %1652 = vmatprep.mubr.f32.mxu0 0.0
        %1653 = vmatmul.mubr.f32.gmra.mrb[0].mxu0 %v1473
        %v1654 = vpop.f32.mrb[0].mxu0
        %v1655 = vadd.f32 %v1456, %v1654
        %v1656 = vpop.f32.mrb[0].mxu0
        %v1657 = vadd.f32 %v1456, %v1656
        %1658 = vmatprep.mubr.f32.mxu0 0.0
        %1659 = vmatmul.mubr.f32.gmra.mrb[0].mxu0 %v1476
        %v1660 = vpop.f32.mrb[0].mxu0
        %v1661 = vadd.f32 %v1460, %v1660
        %v1662 = vpop.f32.mrb[0].mxu0
        %v1663 = vadd.f32 %v1460, %v1662
        %1664 = vmatprep.mubr.f32.mxu0 0.0
        %1665 = vmatmul.mubr.f32.gmra.mrb[0].mxu0 %v1479
        %v1666 = vpop.f32.mrb[0].mxu0
        %v1667 = vadd.f32 %v1464, %v1666
        %v1668 = vpop.f32.mrb[0].mxu0
        %v1669 = vadd.f32 %v1464, %v1668
        %1670 = vdwg.mxu0
        %v1671 = vmul.f32 %v1548, %v1548
        %v1672 = vmul.f32 %v1550, %v1550
        %v1673 = vmul.f32 %v1643, %v1643
        %v1674 = vmul.f32 %v1645, %v1645
        %v1675 = vmul.f32 %v1554, %v1554
        %v1676 = vmul.f32 %v1556, %v1556
        %v1677 = vmul.f32 %v1649, %v1649
        %v1678 = vmul.f32 %v1651, %v1651
        %v1679 = vmul.f32 %v1560, %v1560
        %v1680 = vmul.f32 %v1562, %v1562
        %v1681 = vmul.f32 %v1655, %v1655
        %v1682 = vmul.f32 %v1657, %v1657
        %v1683 = vmul.f32 %v1566, %v1566
        %v1684 = vmul.f32 %v1568, %v1568
        %v1685 = vmul.f32 %v1661, %v1661
        %v1686 = vmul.f32 %v1663, %v1663
        %v1687 = vadd.f32 %v1671, %v1675
        %v1688 = vadd.f32 %v1687, %v1679
        %v1689 = vadd.f32 %v1688, %v1683
        %v1690 = vrot.slane %v1689, 4
        %v1691 = vadd.f32 %v1689, %v1690
        %v1692 = vrot.slane %v1691, 2
        %v1693 = vadd.f32 %v1691, %v1692
        %v1694 = vrot.slane %v1693, 1
        %v1695 = vadd.f32 %v1693, %v1694
        %v1696 = vadd.f32 %v1672, %v1676
        %v1697 = vadd.f32 %v1696, %v1680
        %v1698 = vadd.f32 %v1697, %v1684
        %v1699 = vrot.slane %v1698, 4
        %v1700 = vadd.f32 %v1698, %v1699
        %v1701 = vrot.slane %v1700, 2
        %v1702 = vadd.f32 %v1700, %v1701
        %v1703 = vrot.slane %v1702, 1
        %v1704 = vadd.f32 %v1702, %v1703
        %v1705 = vadd.f32 %v1673, %v1677
        %v1706 = vadd.f32 %v1705, %v1681
        %v1707 = vadd.f32 %v1706, %v1685
        %v1708 = vrot.slane %v1707, 4
        %v1709 = vadd.f32 %v1707, %v1708
        %v1710 = vrot.slane %v1709, 2
        %v1711 = vadd.f32 %v1709, %v1710
        %v1712 = vrot.slane %v1711, 1
        %v1713 = vadd.f32 %v1711, %v1712
        %v1714 = vadd.f32 %v1674, %v1678
        %v1715 = vadd.f32 %v1714, %v1682
        %v1716 = vadd.f32 %v1715, %v1686
        %v1717 = vrot.slane %v1716, 4
        %v1718 = vadd.f32 %v1716, %v1717
        %v1719 = vrot.slane %v1718, 2
        %v1720 = vadd.f32 %v1718, %v1719
        %v1721 = vrot.slane %v1720, 1
        %v1722 = vadd.f32 %v1720, %v1721
        %v1723 = vmul.f32 %v1695, 0.03125
        %v1724 = vmul.f32 %v1704, 0.03125
        %v1725 = vmul.f32 %v1713, 0.03125
        %v1726 = vmul.f32 %v1722, 0.03125
        %v1727 = vmul.f32 %v1572, %v1572
        %v1728 = vmul.f32 %v1574, %v1574
        %v1729 = vmul.f32 %v1667, %v1667
        %v1730 = vmul.f32 %v1669, %v1669
        %v1731 = vsub.f32 %v1723, %v1727
        %v1732 = vsub.f32 %v1724, %v1728
        %v1733 = vsub.f32 %v1725, %v1729
        %v1734 = vsub.f32 %v1726, %v1730
        %v1735 = vmax.f32 %v1731, 0.0
        %v1736 = vmax.f32 %v1732, 0.0
        %v1737 = vmax.f32 %v1733, 0.0
        %v1738 = vmax.f32 %v1734, 0.0
        %v1739 = vlaneseq
        %v1740 = vshrl.u32 %v1739, 7
        %v1741 = vsub.s32 0, %v1740
        %v1742 = vrot.slane %v1572, %v1741
        %v1743 = vlaneseq
        %v1744 = vshrl.u32 %v1743, 7
        %v1745 = vsub.s32 0, %v1744
        %v1746 = vrot.slane %v1574, %v1745
        %v1747 = vlaneseq
        %v1748 = vshrl.u32 %v1747, 7
        %v1749 = vsub.s32 0, %v1748
        %v1750 = vrot.slane %v1667, %v1749
        %v1751 = vlaneseq
        %v1752 = vshrl.u32 %v1751, 7
        %v1753 = vsub.s32 0, %v1752
        %v1754 = vrot.slane %v1669, %v1753
        %v1755 = vsub.f32 %v1548, %v1742
        %v1756 = vsub.f32 %v1550, %v1746
        %v1757 = vsub.f32 %v1643, %v1750
        %v1758 = vsub.f32 %v1645, %v1754
        %v1759 = vsub.f32 %v1554, %v1742
        %v1760 = vsub.f32 %v1556, %v1746
        %v1761 = vsub.f32 %v1649, %v1750
        %v1762 = vsub.f32 %v1651, %v1754
        %v1763 = vsub.f32 %v1560, %v1742
        %v1764 = vsub.f32 %v1562, %v1746
        %v1765 = vsub.f32 %v1655, %v1750
        %v1766 = vsub.f32 %v1657, %v1754
        %v1767 = vsub.f32 %v1566, %v1742
        %v1768 = vsub.f32 %v1568, %v1746
        %v1769 = vsub.f32 %v1661, %v1750
        %v1770 = vsub.f32 %v1663, %v1754
        %v1771 = vadd.f32 %v1735, 1e-05
        %v1772 = vadd.f32 %v1736, 1e-05
        %v1773 = vadd.f32 %v1737, 1e-05
        %v1774 = vadd.f32 %v1738, 1e-05
        %v1775 = vrsqrt.pop %v1771
        %v1776 = vrsqrt.pop %v1772
        %v1777 = vrsqrt.pop %v1773
        %v1778 = vrsqrt.pop %v1774
        %v1779 = vlaneseq
        %v1780 = vshrl.u32 %v1779, 7
        %v1781 = vsub.s32 0, %v1780
        %v1782 = vrot.slane %v1775, %v1781
        %v1783 = vlaneseq
        %v1784 = vshrl.u32 %v1783, 7
        %v1785 = vsub.s32 0, %v1784
        %v1786 = vrot.slane %v1776, %v1785
        %v1787 = vlaneseq
        %v1788 = vshrl.u32 %v1787, 7
        %v1789 = vsub.s32 0, %v1788
        %v1790 = vrot.slane %v1777, %v1789
        %v1791 = vlaneseq
        %v1792 = vshrl.u32 %v1791, 7
        %v1793 = vsub.s32 0, %v1792
        %v1794 = vrot.slane %v1778, %v1793
        %v1795 = vmul.f32 %v1755, %v1782
        %v1796 = vmul.f32 %v1756, %v1786
        %v1797 = vmul.f32 %v1757, %v1790
        %v1798 = vmul.f32 %v1758, %v1794
        %v1799 = vmul.f32 %v1759, %v1782
        %v1800 = vmul.f32 %v1760, %v1786
        %v1801 = vmul.f32 %v1761, %v1790
        %v1802 = vmul.f32 %v1762, %v1794
        %v1803 = vmul.f32 %v1763, %v1782
        %v1804 = vmul.f32 %v1764, %v1786
        %v1805 = vmul.f32 %v1765, %v1790
        %v1806 = vmul.f32 %v1766, %v1794
        %v1807 = vmul.f32 %v1767, %v1782
        %v1808 = vmul.f32 %v1768, %v1786
        %v1809 = vmul.f32 %v1769, %v1790
        %v1810 = vmul.f32 %v1770, %v1794
        %1811 = vset.pattern.permute.xlu0 7
        %1812 = vperm.xlu0 %1811, %v273
        %v1813 = vpop.permute.xlu0 %1812
        %1815 = vset.pattern.permute.xlu0 7
        %1816 = vperm.xlu0 %1815, %v274
        %v1817 = vpop.permute.xlu0 %1816
        %1819 = vset.pattern.permute.xlu0 7
        %1820 = vperm.xlu0 %1819, %v275
        %v1821 = vpop.permute.xlu0 %1820
        %1823 = vset.pattern.permute.xlu0 7
        %1824 = vperm.xlu0 %1823, %v276
        %v1825 = vpop.permute.xlu0 %1824
        %v1827 = vmul.f32 %v1795, %v1813
        %v1828 = vmul.f32 %v1796, %v1813
        %v1829 = vmul.f32 %v1797, %v1813
        %v1830 = vmul.f32 %v1798, %v1813
        %v1831 = vmul.f32 %v1799, %v1817
        %v1832 = vmul.f32 %v1800, %v1817
        %v1833 = vmul.f32 %v1801, %v1817
        %v1834 = vmul.f32 %v1802, %v1817
        %v1835 = vmul.f32 %v1803, %v1821
        %v1836 = vmul.f32 %v1804, %v1821
        %v1837 = vmul.f32 %v1805, %v1821
        %v1838 = vmul.f32 %v1806, %v1821
        %v1839 = vmul.f32 %v1807, %v1825
        %v1840 = vmul.f32 %v1808, %v1825
        %v1841 = vmul.f32 %v1809, %v1825
        %v1842 = vmul.f32 %v1810, %v1825
        %1843 = vset.pattern.permute.xlu0 8
        %1844 = vperm.xlu0 %1843, %v273
        %v1845 = vpop.permute.xlu0 %1844
        %1847 = vset.pattern.permute.xlu0 8
        %1848 = vperm.xlu0 %1847, %v274
        %v1849 = vpop.permute.xlu0 %1848
        %1851 = vset.pattern.permute.xlu0 8
        %1852 = vperm.xlu0 %1851, %v275
        %v1853 = vpop.permute.xlu0 %1852
        %1855 = vset.pattern.permute.xlu0 8
        %1856 = vperm.xlu0 %1855, %v276
        %v1857 = vpop.permute.xlu0 %1856
        %v1859 = vadd.f32 %v1827, %v1845
        %v1860 = vadd.f32 %v1828, %v1845
        %v1861 = vadd.f32 %v1829, %v1845
        %v1862 = vadd.f32 %v1830, %v1845
        %v1863 = vadd.f32 %v1831, %v1849
        %v1864 = vadd.f32 %v1832, %v1849
        %v1865 = vadd.f32 %v1833, %v1849
        %v1866 = vadd.f32 %v1834, %v1849
        %v1867 = vadd.f32 %v1835, %v1853
        %v1868 = vadd.f32 %v1836, %v1853
        %v1869 = vadd.f32 %v1837, %v1853
        %v1870 = vadd.f32 %v1838, %v1853
        %v1871 = vadd.f32 %v1839, %v1857
        %v1872 = vadd.f32 %v1840, %v1857
        %v1873 = vadd.f32 %v1841, %v1857
        %v1874 = vadd.f32 %v1842, %v1857
        %v1875 = vtanh.pop %v1859
        %v1876 = vtanh.pop %v1860
        %v1877 = vtanh.pop %v1861
        %v1878 = vtanh.pop %v1862
        %v1879 = vtanh.pop %v1863
        %v1880 = vtanh.pop %v1864
        %v1881 = vtanh.pop %v1865
        %v1882 = vtanh.pop %v1866
        %v1883 = vtanh.pop %v1867
        %v1884 = vtanh.pop %v1868
        %v1885 = vtanh.pop %v1869
        %v1886 = vtanh.pop %v1870
        %v1887 = vtanh.pop %v1871
        %v1888 = vtanh.pop %v1872
        %v1889 = vtanh.pop %v1873
        %v1890 = vtanh.pop %v1874
        %v1891 = vld [vmem:[%s4] sm:$0xff]
        %v1892 = vld [vmem:[%s4 + $0x8] sm:$0xff]
        %v1893 = vld [vmem:[%s4 + $0x10] sm:$0xff]
        %v1894 = vld [vmem:[%s4 + $0x18] sm:$0xff]
        %v1895 = vld [vmem:[%s4 + $0x20] sm:$0xff]
        %1896 = vset.pattern.permute.xlu0 9
        %1897 = vperm.xlu0 %1896, %v273
        %v1898 = vpop.permute.xlu0 %1897
        %1900 = vset.pattern.permute.xlu0 9
        %1901 = vperm.xlu0 %1900, %v274
        %v1902 = vpop.permute.xlu0 %1901
        %1904 = vset.pattern.permute.xlu0 9
        %1905 = vperm.xlu0 %1904, %v275
        %v1906 = vpop.permute.xlu0 %1905
        %1908 = vset.pattern.permute.xlu0 9
        %1909 = vperm.xlu0 %1908, %v276
        %v1910 = vpop.permute.xlu0 %1909
        %1912 = vset.pattern.permute.xlu0 9
        %1913 = vperm.xlu0 %1912, %v277
        %v1914 = vpop.permute.xlu0 %1913
        %v1917 = vsel %vm1015, %v1891, 0
        %v1920 = vsel %vm1015, %v1892, 0
        %v1923 = vsel %vm1015, %v1893, 0
        %v1926 = vsel %vm1015, %v1894, 0
        %v1929 = vsel %vm1015, %v1895, 0
        %1931 = vmatprep.subr.mxu0 %v1876
        %1932 = vmatpush1.msra.mxu0 %v1875
        %1933 = vmatprep.subr.mxu0 %v1880
        %1934 = vmatpush1.msra.mxu0 %v1879
        %1935 = vmatprep.subr.mxu0 %v1884
        %1936 = vmatpush1.msra.mxu0 %v1883
        %1937 = vmatprep.subr.mxu0 %v1888
        %1938 = vmatpush1.msra.mxu0 %v1887
        %1939 = vmatprep.subr.mxu0 0.0
        %1940 = vmatpush1.msra.mxu0 0.0
        %1941 = vmatprep.subr.mxu0 0.0
        %1942 = vmatpush1.msra.mxu0 0.0
        %1943 = vmatprep.subr.mxu0 0.0
        %1944 = vmatpush1.msra.mxu0 0.0
        %1945 = vmatprep.subr.mxu0 0.0
        %1946 = vmatpush1.msra.mxu0 0.0
        %1947 = vmatprep.subr.mxu0 0.0
        %1948 = vmatpush1.msra.mxu0 0.0
        %1949 = vmatprep.subr.mxu0 0.0
        %1950 = vmatpush1.msra.mxu0 0.0
        %1951 = vmatprep.subr.mxu0 0.0
        %1952 = vmatpush1.msra.mxu0 0.0
        %1953 = vmatprep.subr.mxu0 0.0
        %1954 = vmatpush1.msra.mxu0 0.0
        %1955 = vmatprep.subr.mxu0 0.0
        %1956 = vmatpush1.msra.mxu0 0.0
        %1957 = vmatprep.subr.mxu0 0.0
        %1958 = vmatpush1.msra.mxu0 0.0
        %1959 = vmatprep.subr.mxu0 0.0
        %1960 = vmatpush1.msra.mxu0 0.0
        %1961 = vmatprep.subr.mxu0 0.0
        %1962 = vmatpush1.msra.mxu0 0.0
        %1963 = vmatprep.subr.mxu0 0.0
        %1964 = vmatpush1.msra.mxu0 0.0
        %1965 = vmatprep.subr.mxu0 0.0
        %1966 = vmatpush1.msra.mxu0 0.0
        %1967 = vmatprep.subr.mxu0 0.0
        %1968 = vmatpush1.msra.mxu0 0.0
        %1969 = vmatprep.subr.mxu0 0.0
        %1970 = vmatpush1.msra.mxu0 0.0
        %1971 = vmatprep.subr.mxu0 0.0
        %1972 = vmatpush1.msra.mxu0 0.0
        %1973 = vmatprep.subr.mxu0 0.0
        %1974 = vmatpush1.msra.mxu0 0.0
        %1975 = vmatprep.subr.mxu0 0.0
        %1976 = vmatpush1.msra.mxu0 0.0
        %1977 = vmatprep.subr.mxu0 0.0
        %1978 = vmatpush1.msra.mxu0 0.0
        %1979 = vmatprep.subr.mxu0 0.0
        %1980 = vmatpush1.msra.mxu0 0.0
        %1981 = vmatprep.subr.mxu0 0.0
        %1982 = vmatpush1.msra.mxu0 0.0
        %1983 = vmatprep.subr.mxu0 0.0
        %1984 = vmatpush1.msra.mxu0 0.0
        %1985 = vmatprep.subr.mxu0 0.0
        %1986 = vmatpush1.msra.mxu0 0.0
        %1987 = vmatprep.subr.mxu0 0.0
        %1988 = vmatpush1.msra.mxu0 0.0
        %1989 = vmatprep.subr.mxu0 0.0
        %1990 = vmatpush1.msra.mxu0 0.0
        %1991 = vmatprep.subr.mxu0 0.0
        %1992 = vmatpush1.msra.mxu0 0.0
        %1993 = vmatprep.subr.mxu0 0.0
        %1994 = vmatpush1.msra.mxu0 0.0
        %1995 = vmatprep.mubr.f32.mxu0 0.0
        %1996 = vmatmul.mubr.f32.gmra.mrb[0].mxu0 %v1917
        %v1997 = vpop.f32.mrb[0].mxu0
        %v1998 = vadd.f32 %v1898, %v1997
        %v1999 = vpop.f32.mrb[0].mxu0
        %v2000 = vadd.f32 %v1898, %v1999
        %2001 = vmatprep.mubr.f32.mxu0 0.0
        %2002 = vmatmul.mubr.f32.gmra.mrb[0].mxu0 %v1920
        %v2003 = vpop.f32.mrb[0].mxu0
        %v2004 = vadd.f32 %v1902, %v2003
        %v2005 = vpop.f32.mrb[0].mxu0
        %v2006 = vadd.f32 %v1902, %v2005
        %2007 = vmatprep.mubr.f32.mxu0 0.0
        %2008 = vmatmul.mubr.f32.gmra.mrb[0].mxu0 %v1923
        %v2009 = vpop.f32.mrb[0].mxu0
        %v2010 = vadd.f32 %v1906, %v2009
        %v2011 = vpop.f32.mrb[0].mxu0
        %v2012 = vadd.f32 %v1906, %v2011
        %2013 = vmatprep.mubr.f32.mxu0 0.0
        %2014 = vmatmul.mubr.f32.gmra.mrb[0].mxu0 %v1926
        %v2015 = vpop.f32.mrb[0].mxu0
        %v2016 = vadd.f32 %v1910, %v2015
        %v2017 = vpop.f32.mrb[0].mxu0
        %v2018 = vadd.f32 %v1910, %v2017
        %2019 = vmatprep.mubr.f32.mxu0 0.0
        %2020 = vmatmul.mubr.f32.gmra.mrb[0].mxu0 %v1929
        %v2021 = vpop.f32.mrb[0].mxu0
        %v2022 = vadd.f32 %v1914, %v2021
        %v2023 = vpop.f32.mrb[0].mxu0
        %v2024 = vadd.f32 %v1914, %v2023
        %2025 = vdwg.mxu0
        %2026 = vmatprep.subr.mxu0 %v1878
        %2027 = vmatpush1.msra.mxu0 %v1877
        %2028 = vmatprep.subr.mxu0 %v1882
        %2029 = vmatpush1.msra.mxu0 %v1881
        %2030 = vmatprep.subr.mxu0 %v1886
        %2031 = vmatpush1.msra.mxu0 %v1885
        %2032 = vmatprep.subr.mxu0 %v1890
        %2033 = vmatpush1.msra.mxu0 %v1889
        %2034 = vmatprep.subr.mxu0 0.0
        %2035 = vmatpush1.msra.mxu0 0.0
        %2036 = vmatprep.subr.mxu0 0.0
        %2037 = vmatpush1.msra.mxu0 0.0
        %2038 = vmatprep.subr.mxu0 0.0
        %2039 = vmatpush1.msra.mxu0 0.0
        %2040 = vmatprep.subr.mxu0 0.0
        %2041 = vmatpush1.msra.mxu0 0.0
        %2042 = vmatprep.subr.mxu0 0.0
        %2043 = vmatpush1.msra.mxu0 0.0
        %2044 = vmatprep.subr.mxu0 0.0
        %2045 = vmatpush1.msra.mxu0 0.0
        %2046 = vmatprep.subr.mxu0 0.0
        %2047 = vmatpush1.msra.mxu0 0.0
        %2048 = vmatprep.subr.mxu0 0.0
        %2049 = vmatpush1.msra.mxu0 0.0
        %2050 = vmatprep.subr.mxu0 0.0
        %2051 = vmatpush1.msra.mxu0 0.0
        %2052 = vmatprep.subr.mxu0 0.0
        %2053 = vmatpush1.msra.mxu0 0.0
        %2054 = vmatprep.subr.mxu0 0.0
        %2055 = vmatpush1.msra.mxu0 0.0
        %2056 = vmatprep.subr.mxu0 0.0
        %2057 = vmatpush1.msra.mxu0 0.0
        %2058 = vmatprep.subr.mxu0 0.0
        %2059 = vmatpush1.msra.mxu0 0.0
        %2060 = vmatprep.subr.mxu0 0.0
        %2061 = vmatpush1.msra.mxu0 0.0
        %2062 = vmatprep.subr.mxu0 0.0
        %2063 = vmatpush1.msra.mxu0 0.0
        %2064 = vmatprep.subr.mxu0 0.0
        %2065 = vmatpush1.msra.mxu0 0.0
        %2066 = vmatprep.subr.mxu0 0.0
        %2067 = vmatpush1.msra.mxu0 0.0
        %2068 = vmatprep.subr.mxu0 0.0
        %2069 = vmatpush1.msra.mxu0 0.0
        %2070 = vmatprep.subr.mxu0 0.0
        %2071 = vmatpush1.msra.mxu0 0.0
        %2072 = vmatprep.subr.mxu0 0.0
        %2073 = vmatpush1.msra.mxu0 0.0
        %2074 = vmatprep.subr.mxu0 0.0
        %2075 = vmatpush1.msra.mxu0 0.0
        %2076 = vmatprep.subr.mxu0 0.0
        %2077 = vmatpush1.msra.mxu0 0.0
        %2078 = vmatprep.subr.mxu0 0.0
        %2079 = vmatpush1.msra.mxu0 0.0
        %2080 = vmatprep.subr.mxu0 0.0
        %2081 = vmatpush1.msra.mxu0 0.0
        %2082 = vmatprep.subr.mxu0 0.0
        %2083 = vmatpush1.msra.mxu0 0.0
        %2084 = vmatprep.subr.mxu0 0.0
        %2085 = vmatpush1.msra.mxu0 0.0
        %2086 = vmatprep.subr.mxu0 0.0
        %2087 = vmatpush1.msra.mxu0 0.0
        %2088 = vmatprep.subr.mxu0 0.0
        %2089 = vmatpush1.msra.mxu0 0.0
        %2090 = vmatprep.mubr.f32.mxu0 0.0
        %2091 = vmatmul.mubr.f32.gmra.mrb[0].mxu0 %v1917
        %v2092 = vpop.f32.mrb[0].mxu0
        %v2093 = vadd.f32 %v1898, %v2092
        %v2094 = vpop.f32.mrb[0].mxu0
        %v2095 = vadd.f32 %v1898, %v2094
        %2096 = vmatprep.mubr.f32.mxu0 0.0
        %2097 = vmatmul.mubr.f32.gmra.mrb[0].mxu0 %v1920
        %v2098 = vpop.f32.mrb[0].mxu0
        %v2099 = vadd.f32 %v1902, %v2098
        %v2100 = vpop.f32.mrb[0].mxu0
        %v2101 = vadd.f32 %v1902, %v2100
        %2102 = vmatprep.mubr.f32.mxu0 0.0
        %2103 = vmatmul.mubr.f32.gmra.mrb[0].mxu0 %v1923
        %v2104 = vpop.f32.mrb[0].mxu0
        %v2105 = vadd.f32 %v1906, %v2104
        %v2106 = vpop.f32.mrb[0].mxu0
        %v2107 = vadd.f32 %v1906, %v2106
        %2108 = vmatprep.mubr.f32.mxu0 0.0
        %2109 = vmatmul.mubr.f32.gmra.mrb[0].mxu0 %v1926
        %v2110 = vpop.f32.mrb[0].mxu0
        %v2111 = vadd.f32 %v1910, %v2110
        %v2112 = vpop.f32.mrb[0].mxu0
        %v2113 = vadd.f32 %v1910, %v2112
        %2114 = vmatprep.mubr.f32.mxu0 0.0
        %2115 = vmatmul.mubr.f32.gmra.mrb[0].mxu0 %v1929
        %v2116 = vpop.f32.mrb[0].mxu0
        %v2117 = vadd.f32 %v1914, %v2116
        %v2118 = vpop.f32.mrb[0].mxu0
        %v2119 = vadd.f32 %v1914, %v2118
        %2120 = vdwg.mxu0
        %v2121 = vmul.f32 %v1998, %v1998
        %v2122 = vmul.f32 %v2000, %v2000
        %v2123 = vmul.f32 %v2093, %v2093
        %v2124 = vmul.f32 %v2095, %v2095
        %v2125 = vmul.f32 %v2004, %v2004
        %v2126 = vmul.f32 %v2006, %v2006
        %v2127 = vmul.f32 %v2099, %v2099
        %v2128 = vmul.f32 %v2101, %v2101
        %v2129 = vmul.f32 %v2010, %v2010
        %v2130 = vmul.f32 %v2012, %v2012
        %v2131 = vmul.f32 %v2105, %v2105
        %v2132 = vmul.f32 %v2107, %v2107
        %v2133 = vmul.f32 %v2016, %v2016
        %v2134 = vmul.f32 %v2018, %v2018
        %v2135 = vmul.f32 %v2111, %v2111
        %v2136 = vmul.f32 %v2113, %v2113
        %v2137 = vadd.f32 %v2121, %v2125
        %v2138 = vadd.f32 %v2137, %v2129
        %v2139 = vadd.f32 %v2138, %v2133
        %v2140 = vrot.slane %v2139, 4
        %v2141 = vadd.f32 %v2139, %v2140
        %v2142 = vrot.slane %v2141, 2
        %v2143 = vadd.f32 %v2141, %v2142
        %v2144 = vrot.slane %v2143, 1
        %v2145 = vadd.f32 %v2143, %v2144
        %v2146 = vadd.f32 %v2122, %v2126
        %v2147 = vadd.f32 %v2146, %v2130
        %v2148 = vadd.f32 %v2147, %v2134
        %v2149 = vrot.slane %v2148, 4
        %v2150 = vadd.f32 %v2148, %v2149
        %v2151 = vrot.slane %v2150, 2
        %v2152 = vadd.f32 %v2150, %v2151
        %v2153 = vrot.slane %v2152, 1
        %v2154 = vadd.f32 %v2152, %v2153
        %v2155 = vadd.f32 %v2123, %v2127
        %v2156 = vadd.f32 %v2155, %v2131
        %v2157 = vadd.f32 %v2156, %v2135
        %v2158 = vrot.slane %v2157, 4
        %v2159 = vadd.f32 %v2157, %v2158
        %v2160 = vrot.slane %v2159, 2
        %v2161 = vadd.f32 %v2159, %v2160
        %v2162 = vrot.slane %v2161, 1
        %v2163 = vadd.f32 %v2161, %v2162
        %v2164 = vadd.f32 %v2124, %v2128
        %v2165 = vadd.f32 %v2164, %v2132
        %v2166 = vadd.f32 %v2165, %v2136
        %v2167 = vrot.slane %v2166, 4
        %v2168 = vadd.f32 %v2166, %v2167
        %v2169 = vrot.slane %v2168, 2
        %v2170 = vadd.f32 %v2168, %v2169
        %v2171 = vrot.slane %v2170, 1
        %v2172 = vadd.f32 %v2170, %v2171
        %v2173 = vmul.f32 %v2145, 0.03125
        %v2174 = vmul.f32 %v2154, 0.03125
        %v2175 = vmul.f32 %v2163, 0.03125
        %v2176 = vmul.f32 %v2172, 0.03125
        %v2177 = vmul.f32 %v2022, %v2022
        %v2178 = vmul.f32 %v2024, %v2024
        %v2179 = vmul.f32 %v2117, %v2117
        %v2180 = vmul.f32 %v2119, %v2119
        %v2181 = vsub.f32 %v2173, %v2177
        %v2182 = vsub.f32 %v2174, %v2178
        %v2183 = vsub.f32 %v2175, %v2179
        %v2184 = vsub.f32 %v2176, %v2180
        %v2185 = vmax.f32 %v2181, 0.0
        %v2186 = vmax.f32 %v2182, 0.0
        %v2187 = vmax.f32 %v2183, 0.0
        %v2188 = vmax.f32 %v2184, 0.0
        %v2189 = vlaneseq
        %v2190 = vshrl.u32 %v2189, 7
        %v2191 = vsub.s32 0, %v2190
        %v2192 = vrot.slane %v2022, %v2191
        %v2193 = vlaneseq
        %v2194 = vshrl.u32 %v2193, 7
        %v2195 = vsub.s32 0, %v2194
        %v2196 = vrot.slane %v2024, %v2195
        %v2197 = vlaneseq
        %v2198 = vshrl.u32 %v2197, 7
        %v2199 = vsub.s32 0, %v2198
        %v2200 = vrot.slane %v2117, %v2199
        %v2201 = vlaneseq
        %v2202 = vshrl.u32 %v2201, 7
        %v2203 = vsub.s32 0, %v2202
        %v2204 = vrot.slane %v2119, %v2203
        %v2205 = vsub.f32 %v1998, %v2192
        %v2206 = vsub.f32 %v2000, %v2196
        %v2207 = vsub.f32 %v2093, %v2200
        %v2208 = vsub.f32 %v2095, %v2204
        %v2209 = vsub.f32 %v2004, %v2192
        %v2210 = vsub.f32 %v2006, %v2196
        %v2211 = vsub.f32 %v2099, %v2200
        %v2212 = vsub.f32 %v2101, %v2204
        %v2213 = vsub.f32 %v2010, %v2192
        %v2214 = vsub.f32 %v2012, %v2196
        %v2215 = vsub.f32 %v2105, %v2200
        %v2216 = vsub.f32 %v2107, %v2204
        %v2217 = vsub.f32 %v2016, %v2192
        %v2218 = vsub.f32 %v2018, %v2196
        %v2219 = vsub.f32 %v2111, %v2200
        %v2220 = vsub.f32 %v2113, %v2204
        %v2221 = vadd.f32 %v2185, 1e-05
        %v2222 = vadd.f32 %v2186, 1e-05
        %v2223 = vadd.f32 %v2187, 1e-05
        %v2224 = vadd.f32 %v2188, 1e-05
        %v2225 = vrsqrt.pop %v2221
        %v2226 = vrsqrt.pop %v2222
        %v2227 = vrsqrt.pop %v2223
        %v2228 = vrsqrt.pop %v2224
        %v2229 = vlaneseq
        %v2230 = vshrl.u32 %v2229, 7
        %v2231 = vsub.s32 0, %v2230
        %v2232 = vrot.slane %v2225, %v2231
        %v2233 = vlaneseq
        %v2234 = vshrl.u32 %v2233, 7
        %v2235 = vsub.s32 0, %v2234
        %v2236 = vrot.slane %v2226, %v2235
        %v2237 = vlaneseq
        %v2238 = vshrl.u32 %v2237, 7
        %v2239 = vsub.s32 0, %v2238
        %v2240 = vrot.slane %v2227, %v2239
        %v2241 = vlaneseq
        %v2242 = vshrl.u32 %v2241, 7
        %v2243 = vsub.s32 0, %v2242
        %v2244 = vrot.slane %v2228, %v2243
        %v2245 = vmul.f32 %v2205, %v2232
        %v2246 = vmul.f32 %v2206, %v2236
        %v2247 = vmul.f32 %v2207, %v2240
        %v2248 = vmul.f32 %v2208, %v2244
        %v2249 = vmul.f32 %v2209, %v2232
        %v2250 = vmul.f32 %v2210, %v2236
        %v2251 = vmul.f32 %v2211, %v2240
        %v2252 = vmul.f32 %v2212, %v2244
        %v2253 = vmul.f32 %v2213, %v2232
        %v2254 = vmul.f32 %v2214, %v2236
        %v2255 = vmul.f32 %v2215, %v2240
        %v2256 = vmul.f32 %v2216, %v2244
        %v2257 = vmul.f32 %v2217, %v2232
        %v2258 = vmul.f32 %v2218, %v2236
        %v2259 = vmul.f32 %v2219, %v2240
        %v2260 = vmul.f32 %v2220, %v2244
        %2261 = vset.pattern.permute.xlu0 10
        %2262 = vperm.xlu0 %2261, %v273
        %v2263 = vpop.permute.xlu0 %2262
        %2265 = vset.pattern.permute.xlu0 10
        %2266 = vperm.xlu0 %2265, %v274
        %v2267 = vpop.permute.xlu0 %2266
        %2269 = vset.pattern.permute.xlu0 10
        %2270 = vperm.xlu0 %2269, %v275
        %v2271 = vpop.permute.xlu0 %2270
        %2273 = vset.pattern.permute.xlu0 10
        %2274 = vperm.xlu0 %2273, %v276
        %v2275 = vpop.permute.xlu0 %2274
        %v2277 = vmul.f32 %v2245, %v2263
        %v2278 = vmul.f32 %v2246, %v2263
        %v2279 = vmul.f32 %v2247, %v2263
        %v2280 = vmul.f32 %v2248, %v2263
        %v2281 = vmul.f32 %v2249, %v2267
        %v2282 = vmul.f32 %v2250, %v2267
        %v2283 = vmul.f32 %v2251, %v2267
        %v2284 = vmul.f32 %v2252, %v2267
        %v2285 = vmul.f32 %v2253, %v2271
        %v2286 = vmul.f32 %v2254, %v2271
        %v2287 = vmul.f32 %v2255, %v2271
        %v2288 = vmul.f32 %v2256, %v2271
        %v2289 = vmul.f32 %v2257, %v2275
        %v2290 = vmul.f32 %v2258, %v2275
        %v2291 = vmul.f32 %v2259, %v2275
        %v2292 = vmul.f32 %v2260, %v2275
        %2293 = vset.pattern.permute.xlu0 11
        %2294 = vperm.xlu0 %2293, %v273
        %v2295 = vpop.permute.xlu0 %2294
        %2297 = vset.pattern.permute.xlu0 11
        %2298 = vperm.xlu0 %2297, %v274
        %v2299 = vpop.permute.xlu0 %2298
        %2301 = vset.pattern.permute.xlu0 11
        %2302 = vperm.xlu0 %2301, %v275
        %v2303 = vpop.permute.xlu0 %2302
        %2305 = vset.pattern.permute.xlu0 11
        %2306 = vperm.xlu0 %2305, %v276
        %v2307 = vpop.permute.xlu0 %2306
        %v2309 = vadd.f32 %v2277, %v2295
        %v2310 = vadd.f32 %v2278, %v2295
        %v2311 = vadd.f32 %v2279, %v2295
        %v2312 = vadd.f32 %v2280, %v2295
        %v2313 = vadd.f32 %v2281, %v2299
        %v2314 = vadd.f32 %v2282, %v2299
        %v2315 = vadd.f32 %v2283, %v2299
        %v2316 = vadd.f32 %v2284, %v2299
        %v2317 = vadd.f32 %v2285, %v2303
        %v2318 = vadd.f32 %v2286, %v2303
        %v2319 = vadd.f32 %v2287, %v2303
        %v2320 = vadd.f32 %v2288, %v2303
        %v2321 = vadd.f32 %v2289, %v2307
        %v2322 = vadd.f32 %v2290, %v2307
        %v2323 = vadd.f32 %v2291, %v2307
        %v2324 = vadd.f32 %v2292, %v2307
        %v2325 = vtanh.pop %v2309
        %v2326 = vtanh.pop %v2310
        %v2327 = vtanh.pop %v2311
        %v2328 = vtanh.pop %v2312
        %v2329 = vtanh.pop %v2313
        %v2330 = vtanh.pop %v2314
        %v2331 = vtanh.pop %v2315
        %v2332 = vtanh.pop %v2316
        %v2333 = vtanh.pop %v2317
        %v2334 = vtanh.pop %v2318
        %v2335 = vtanh.pop %v2319
        %v2336 = vtanh.pop %v2320
        %v2337 = vtanh.pop %v2321
        %v2338 = vtanh.pop %v2322
        %v2339 = vtanh.pop %v2323
        %v2340 = vtanh.pop %v2324
        %2341 = vst [vmem:[%s257] sm:$0xff] %v2325
        %2342 = vst [vmem:[%s257 + $0x8] sm:$0xff] %v2326
        %2343 = vst [vmem:[%s257 + $0x10] sm:$0xff] %v2327
        %2344 = vst [vmem:[%s257 + $0x18] sm:$0xff] %v2328
        %2345 = vst [vmem:[%s257 + $0x20] sm:$0xff] %v2329
        %2346 = vst [vmem:[%s257 + $0x28] sm:$0xff] %v2330
        %2347 = vst [vmem:[%s257 + $0x30] sm:$0xff] %v2331
        %2348 = vst [vmem:[%s257 + $0x38] sm:$0xff] %v2332
        %2349 = vst [vmem:[%s257 + $0x40] sm:$0xff] %v2333
        %2350 = vst [vmem:[%s257 + $0x48] sm:$0xff] %v2334
        %2351 = vst [vmem:[%s257 + $0x50] sm:$0xff] %v2335
        %2352 = vst [vmem:[%s257 + $0x58] sm:$0xff] %v2336
        %2353 = vst [vmem:[%s257 + $0x60] sm:$0xff] %v2337
        %2354 = vst [vmem:[%s257 + $0x68] sm:$0xff] %v2338
        %2355 = vst [vmem:[%s257 + $0x70] sm:$0xff] %v2339
        %2356 = vst [vmem:[%s257 + $0x78] sm:$0xff] %v2340
        %s2357 = sand.u32 %s159, 1
        %s2358 = scalar_lea.sflag [#allocation3], %s2357
        %s2359 = sand.u32 %s159, 1
        %s2360 = smul.addr %s2359, 128
        %s2361 = scalar_lea.vmem [#allocation2], %s2360
        // Predicated region
        $region45: #{tpu_custom_call.1} parent=43 // pred_check
          %p2362 = pneg %p169
        $region46: #{tpu_custom_call.1} parent=43 // pred_check_branch
          %2364 = sbr.rel (%p2362) target = $region48
        $region47: #{tpu_custom_call.1} parent=43 // pred_region
          %s2365 = smul.u32 4, %s20
          %s2367 = ssub.s32 2048, 2048
          %2368 = vsyncadd %s2358, %s2367
          %s2369 = smul.addr %s2365, 128
          %s2370 = scalar_lea.hbm %s6, %s2369
          %s2371 = sshll.u32 %s2361, 4
          %s2372 = int_to_ptr.vmem [resolvable:$true] %s2371
          %2377 = dma.vmem_to_hbm [thread:$0]  %s2372, 2048, %s2370, %s2358, 512, 1024, 32
        $region48: #{tpu_custom_call.1} parent=43 // pred_fallthru
          _
      $region44: #{tpu_custom_call.1} parent=5 // pred_fallthru
        _
      %p2378 = scmp.le.s32.totalorder 2, %s15
      // Predicated region
      $region49: #{tpu_custom_call.1} parent=5 // pred_check
        %p2379 = pneg %p2378
      $region50: #{tpu_custom_call.1} parent=5 // pred_check_branch
        %2381 = sbr.rel (%p2379) target = $region52
      $region51: #{tpu_custom_call.1} parent=5 // pred_region
        %s2382 = ssub.s32 %s15, 2
        // Predicated region
        $region53: #{tpu_custom_call.1} parent=51 // pred_check
          %p2383 = pneg %p175
        $region54: #{tpu_custom_call.1} parent=51 // pred_check_branch
          %2385 = sbr.rel (%p2383) target = $region56
        $region55: #{tpu_custom_call.1} parent=51 // pred_region
          %s2386 = sand.u32 %s160, 1
          %s2387 = scalar_lea.sflag [#allocation3], %s2386
          %s2388 = sand.u32 %s160, 1
          %s2389 = smul.addr %s2388, 128
          %s2390 = scalar_lea.vmem [#allocation2], %s2389
          %2391 = dma.done %s2387, 2048
        $region56: #{tpu_custom_call.1} parent=51 // pred_fallthru
          _
      $region52: #{tpu_custom_call.1} parent=5 // pred_fallthru
        _
    $region6: #{tpu_custom_call.1} parent=1 // loop_footer
      %s19 = sadd.s32 1, %s15
    $region7: #{tpu_custom_call.1} parent=1 // loop_footer_branch
      %14 = sbr.rel target = $region3
    $region8: #{tpu_custom_call.1} parent=1 // loop_exit
      _
    %2392 = vsyncpa [#allocation3], 1
    %s2393 = scalar_lea.sflag [#allocation3], 1
    %2394 = vsyncpa %s2393, 1

</llo_original>
